<compile_context>
chip_gen: v7x
topology: tpu7x:2x2x1
jax: 0.10.0
libtpu: 0.0.40
codegen_flags: <defaults>
</compile_context>

<pallas_src>
import functools

import jax
import jax.numpy as jnp
from jax.experimental import pallas as pl
from jax.experimental.pallas import tpu as pltpu

LANE = 128


def _round_up(v, m):
    return (v + m - 1) // m * m


def _pad2(a, rows, cols):
    return jnp.zeros((rows, cols), a.dtype).at[: a.shape[0], : a.shape[1]].set(a)


# ----------------------------------------------------------------------------
# Fused Pallas kernel
# ----------------------------------------------------------------------------

def _egnn_fused_kernel(
    # graph tensors
    xpe_ref, pos_ref, s_ref, r_ref, rt_ref, p_ref,
    # embed MLP
    ew1_ref, eb1_ref, ew2_ref, eb2_ref,
    # stacked per-layer (split) weights
    mw1s_ref, mw1r_ref, mw1d_ref, mb1_ref, mw2_ref, mb2_ref,
    uw1x_ref, uw1a_ref, ub1_ref, uw2_ref, ub2_ref,
    # pre_readout MLP
    pw1_ref, pb1_ref, pw2_ref, pb2_ref,
    # readout MLP
    rw1_ref, rb1_ref, rw2_ref, rb2_ref,
    # output
    o_ref,
    # scratch
    h_scr,
):
    f32 = jnp.float32
    S = s_ref[...]          # (E, N) one-hot of send
    R = r_ref[...]          # (E, N) one-hot of rec
    RT = rt_ref[...]        # (N, E) = R^T, precomputed (no in-kernel transpose)

    # --- distance: hoisted, computed once for all layers --------------------
    pos = pos_ref[...]                                              # (N, 3)
    p_send = jnp.dot(S, pos, preferred_element_type=f32)            # (E, 3)
    p_rec = jnp.dot(R, pos, preferred_element_type=f32)             # (E, 3)
    diff = p_send - p_rec
    dist = jnp.sqrt(jnp.sum(diff * diff, axis=1, keepdims=True))    # (E, 1)

    # --- embed MLP -----------------------------------------------------------
    h = jax.nn.silu(
        jnp.dot(xpe_ref[...], ew1_ref[...], preferred_element_type=f32)
        + eb1_ref[...]
    )
    h = jnp.dot(h, ew2_ref[...], preferred_element_type=f32) + eb2_ref[...]
    h_scr[...] = h                                                  # (N, HP)

    num_layers = mw1s_ref.shape[0]

    def layer_body(l, carry):
        h = h_scr[...]                                              # (N, HP)
        # message first-Linear with SPLIT weights, projected at node level,
        # then gathered via one-hot matmuls (no lane-axis concat anywhere).
        hs = jnp.dot(h, mw1s_ref[l], preferred_element_type=f32)    # (N, HP)
        hr = jnp.dot(h, mw1r_ref[l], preferred_element_type=f32)    # (N, HP)
        pre = (
            jnp.dot(S, hs, preferred_element_type=f32)              # x[send] part
            + jnp.dot(R, hr, preferred_element_type=f32)            # x[rec]  part
            + dist * mw1d_ref[l]                                    # (E,1)*(1,HP)
            + mb1_ref[l]
        )
        m = jax.nn.silu(pre)
        m = jax.nn.silu(
            jnp.dot(m, mw2_ref[l], preferred_element_type=f32) + mb2_ref[l]
        )                                                           # (E, HP)
        # scatter_add over rec via precomputed R^T
        aggr = jnp.dot(RT, m, preferred_element_type=f32)           # (N, HP)
        # update MLP with SPLIT weights
        u = jax.nn.silu(
            jnp.dot(h, uw1x_ref[l], preferred_element_type=f32)
            + jnp.dot(aggr, uw1a_ref[l], preferred_element_type=f32)
            + ub1_ref[l]
        )
        u = jnp.dot(u, uw2_ref[l], preferred_element_type=f32) + ub2_ref[l]
        h_scr[...] = h + u                                          # residual
        return carry

    jax.lax.fori_loop(0, num_layers, layer_body, 0, unroll=True)

    # --- pre_readout ---------------------------------------------------------
    h = h_scr[...]
    h = jax.nn.silu(
        jnp.dot(h, pw1_ref[...], preferred_element_type=f32) + pb1_ref[...]
    )
    h = jnp.dot(h, pw2_ref[...], preferred_element_type=f32) + pb2_ref[...]

    # --- global_add_pool + readout ------------------------------------------
    pooled = jnp.dot(p_ref[...], h, preferred_element_type=f32)     # (G, HP)
    r = jax.nn.silu(
        jnp.dot(pooled, rw1_ref[...], preferred_element_type=f32) + rb1_ref[...]
    )
    o_ref[...] = (
        jnp.dot(r, rw2_ref[...], preferred_element_type=f32) + rb2_ref[...]
    )


# ----------------------------------------------------------------------------
# Parameter packing: split message/update W1, pad feature dims to 128 lanes,
# stack per-layer weights along a leading L axis.
# ----------------------------------------------------------------------------

def _pack_params(params):
    ew1, eb1, ew2, eb2 = params["embed"]
    H = ew2.shape[1]
    HP = _round_up(H, LANE)
    F0P = _round_up(ew1.shape[0], LANE)

    p = {
        "ew1": _pad2(ew1, F0P, HP), "eb1": _pad2(eb1, 1, HP),
        "ew2": _pad2(ew2, HP, HP), "eb2": _pad2(eb2, 1, HP),
    }

    mw1s, mw1r, mw1d, mb1, mw2, mb2 = [], [], [], [], [], []
    uw1x, uw1a, ub1, uw2, ub2 = [], [], [], [], []
    for lp in params["layers"]:
        mw1 = lp["mw1"]                                      # (2H+1, H)
        mw1s.append(_pad2(mw1[:H], HP, HP))
        mw1r.append(_pad2(mw1[H:2 * H], HP, HP))
        mw1d.append(_pad2(mw1[2 * H:2 * H + 1], 1, HP))
        mb1.append(_pad2(lp["mb1"], 1, HP))
        mw2.append(_pad2(lp["mw2"], HP, HP))
        mb2.append(_pad2(lp["mb2"], 1, HP))
        uw1 = lp["uw1"]                                      # (2H, H)
        uw1x.append(_pad2(uw1[:H], HP, HP))
        uw1a.append(_pad2(uw1[H:], HP, HP))
        ub1.append(_pad2(lp["ub1"], 1, HP))
        uw2.append(_pad2(lp["uw2"], HP, HP))
        ub2.append(_pad2(lp["ub2"], 1, HP))

    stk = lambda xs: jnp.stack(xs, axis=0)
    p.update(
        mw1s=stk(mw1s), mw1r=stk(mw1r), mw1d=stk(mw1d), mb1=stk(mb1),
        mw2=stk(mw2), mb2=stk(mb2),
        uw1x=stk(uw1x), uw1a=stk(uw1a), ub1=stk(ub1),
        uw2=stk(uw2), ub2=stk(ub2),
    )

    pw1, pb1, pw2, pb2 = params["pre_readout"]
    p["pw1"] = _pad2(pw1, HP, HP); p["pb1"] = _pad2(pb1, 1, HP)
    p["pw2"] = _pad2(pw2, HP, HP); p["pb2"] = _pad2(pb2, 1, HP)

    rw1, rb1, rw2, rb2 = params["readout"]
    OUTP = _round_up(rw2.shape[1], LANE)
    p["rw1"] = _pad2(rw1, HP, HP); p["rb1"] = _pad2(rb1, 1, HP)
    p["rw2"] = _pad2(rw2, HP, OUTP); p["rb2"] = _pad2(rb2, 1, OUTP)
    return p, HP, F0P


# ----------------------------------------------------------------------------
# Full forward (one pallas_call; wrapper only builds one-hots and pads)
# ----------------------------------------------------------------------------

@functools.partial(jax.jit, static_argnames=("num_graphs",))
def egnn_forward(params, x, pe, pos, send, rec, batch, num_graphs):
    n = x.shape[0]
    out_ch = params["readout"][2].shape[1]

    S = jax.nn.one_hot(send, n, dtype=jnp.float32)              # (E, N)
    R = jax.nn.one_hot(rec, n, dtype=jnp.float32)               # (E, N)
    RT = R.T                                                    # (N, E)
    P = jax.nn.one_hot(batch, num_graphs, dtype=jnp.float32).T  # (G, N)

    packed, HP, F0P = _pack_params(params)
    xpe_p = _pad2(jnp.concatenate([x, pe], axis=-1), n, F0P)    # (N, F0P)

    args = (
        xpe_p, pos, S, R, RT, P,
        packed["ew1"], packed["eb1"], packed["ew2"], packed["eb2"],
        packed["mw1s"], packed["mw1r"], packed["mw1d"], packed["mb1"],
        packed["mw2"], packed["mb2"],
        packed["uw1x"], packed["uw1a"], packed["ub1"],
        packed["uw2"], packed["ub2"],
        packed["pw1"], packed["pb1"], packed["pw2"], packed["pb2"],
        packed["rw1"], packed["rb1"], packed["rw2"], packed["rb2"],
    )
    out_p = pl.pallas_call(
        _egnn_fused_kernel,
        out_shape=jax.ShapeDtypeStruct(
            (num_graphs, packed["rw2"].shape[1]), jnp.float32
        ),
        in_specs=[pl.BlockSpec(memory_space=pltpu.MemorySpace.VMEM)] * len(args),
        out_specs=pl.BlockSpec(memory_space=pltpu.MemorySpace.VMEM),
        scratch_shapes=[pltpu.VMEM((n, HP), jnp.float32)],
    )(*args)
    return jnp.squeeze(out_p[:, :out_ch])


# ----------------------------------------------------------------------------
# Parameter construction (deterministic, synthetic) + pure-JAX reference
# ----------------------------------------------------------------------------

def _linear(key, fan_in, fan_out):
    kw, kb = jax.random.split(key)
    w = jax.random.normal(kw, (fan_in, fan_out), jnp.float32) * 0.1
    b = jax.random.normal(kb, (1, fan_out), jnp.float32) * 0.01
    return w, b


def init_params(key, in_channels, pe_dim, hidden, num_layers, out_channels):
    keys = jax.random.split(key, 4 + num_layers)
    params = {}
    w1, b1 = _linear(jax.random.fold_in(keys[0], 0), in_channels + pe_dim, hidden)
    w2, b2 = _linear(jax.random.fold_in(keys[0], 1), hidden, hidden)
    params["embed"] = (w1, b1, w2, b2)
    params["layers"] = []
    for l in range(num_layers):
        k = keys[1 + l]
        mw1, mb1 = _linear(jax.random.fold_in(k, 0), 2 * hidden + 1, hidden)
        mw2, mb2 = _linear(jax.random.fold_in(k, 1), hidden, hidden)
        uw1, ub1 = _linear(jax.random.fold_in(k, 2), 2 * hidden, hidden)
        uw2, ub2 = _linear(jax.random.fold_in(k, 3), hidden, hidden)
        params["layers"].append(dict(
            mw1=mw1, mb1=mb1, mw2=mw2, mb2=mb2,
            uw1=uw1, ub1=ub1, uw2=uw2, ub2=ub2,
        ))
    w1, b1 = _linear(jax.random.fold_in(keys[-2], 0), hidden, hidden)
    w2, b2 = _linear(jax.random.fold_in(keys[-2], 1), hidden, hidden)
    params["pre_readout"] = (w1, b1, w2, b2)
    w1, b1 = _linear(jax.random.fold_in(keys[-1], 0), hidden, hidden)
    w2, b2 = _linear(jax.random.fold_in(keys[-1], 1), hidden, out_channels)
    params["readout"] = (w1, b1, w2, b2)
    return params


def egnn_forward_ref(params, x, pe, pos, send, rec, batch, num_graphs):
    def mlp2_ref(x, w1, b1, w2, b2):
        return jax.nn.silu(x @ w1 + b1) @ w2 + b2

    h = jnp.concatenate([x, pe], axis=-1)
    h = mlp2_ref(h, *params["embed"])
    n = x.shape[0]
    for lp in params["layers"]:
        xs, xr = h[send], h[rec]
        dist = jnp.linalg.norm(pos[send] - pos[rec], axis=1, keepdims=True)
        state = jnp.concatenate([xs, xr, dist], axis=1)
        m = jax.nn.silu(state @ lp["mw1"] + lp["mb1"])
        m = jax.nn.silu(m @ lp["mw2"] + lp["mb2"])
        aggr = jnp.zeros((n, m.shape[1]), jnp.float32).at[rec].add(m)
        u = jax.nn.silu(jnp.concatenate([h, aggr], axis=1) @ lp["uw1"] + lp["ub1"])
        u = u @ lp["uw2"] + lp["ub2"]
        h = h + u
    h = mlp2_ref(h, *params["pre_readout"])
    pooled = jnp.zeros((num_graphs, h.shape[1]), jnp.float32).at[batch].add(h)
    out = mlp2_ref(pooled, *params["readout"])
    return jnp.squeeze(out)


if __name__ == "__main__":
    IN_CH, PE_DIM, HIDDEN, LAYERS, OUT_CH = 4, 8, 32, 2, 3
    N, E, G = 16, 48, 2

    key = jax.random.PRNGKey(0)
    k_params, k_x, k_pe, k_pos, k_s, k_r = jax.random.split(key, 6)

    params = init_params(k_params, IN_CH, PE_DIM, HIDDEN, LAYERS, OUT_CH)

    x = jax.random.normal(k_x, (N, IN_CH), jnp.float32)
    pe = jax.random.normal(k_pe, (N, PE_DIM), jnp.float32)
    pos = jax.random.normal(k_pos, (N, 3), jnp.float32)
    send = jax.random.randint(k_s, (E,), 0, N)
    rec = jax.random.randint(k_r, (E,), 0, N)
    batch = jnp.concatenate(
        [jnp.zeros(N // 2, jnp.int32), jnp.ones(N - N // 2, jnp.int32)]
    )

    out = egnn_forward(params, x, pe, pos, send, rec, batch, G)
    out = jax.block_until_ready(out)

    ref = egnn_forward_ref(params, x, pe, pos, send, rec, batch, G)
    assert out.shape == ref.shape, (out.shape, ref.shape)
    assert jnp.allclose(out, ref, atol=1e-2, rtol=1e-2), (
        "mismatch vs reference", out, ref
    )
    print("KERNEL_OK")
</pallas_src>

<mosaic_0001>
module attributes {stable_mosaic.version = 11 : i64} {
  func.func @_egnn_fused_kernel(%arg0: memref<16x128xf32, #tpu.memory_space<vmem>>, %arg1: memref<16x3xf32, #tpu.memory_space<vmem>>, %arg2: memref<48x16xf32, #tpu.memory_space<vmem>>, %arg3: memref<48x16xf32, #tpu.memory_space<vmem>>, %arg4: memref<16x48xf32, #tpu.memory_space<vmem>>, %arg5: memref<2x16xf32, #tpu.memory_space<vmem>>, %arg6: memref<128x128xf32, #tpu.memory_space<vmem>>, %arg7: memref<1x128xf32, #tpu.memory_space<vmem>>, %arg8: memref<128x128xf32, #tpu.memory_space<vmem>>, %arg9: memref<1x128xf32, #tpu.memory_space<vmem>>, %arg10: memref<2x128x128xf32, #tpu.memory_space<vmem>>, %arg11: memref<2x128x128xf32, #tpu.memory_space<vmem>>, %arg12: memref<2x1x128xf32, #tpu.memory_space<vmem>>, %arg13: memref<2x1x128xf32, #tpu.memory_space<vmem>>, %arg14: memref<2x128x128xf32, #tpu.memory_space<vmem>>, %arg15: memref<2x1x128xf32, #tpu.memory_space<vmem>>, %arg16: memref<2x128x128xf32, #tpu.memory_space<vmem>>, %arg17: memref<2x128x128xf32, #tpu.memory_space<vmem>>, %arg18: memref<2x1x128xf32, #tpu.memory_space<vmem>>, %arg19: memref<2x128x128xf32, #tpu.memory_space<vmem>>, %arg20: memref<2x1x128xf32, #tpu.memory_space<vmem>>, %arg21: memref<128x128xf32, #tpu.memory_space<vmem>>, %arg22: memref<1x128xf32, #tpu.memory_space<vmem>>, %arg23: memref<128x128xf32, #tpu.memory_space<vmem>>, %arg24: memref<1x128xf32, #tpu.memory_space<vmem>>, %arg25: memref<128x128xf32, #tpu.memory_space<vmem>>, %arg26: memref<1x128xf32, #tpu.memory_space<vmem>>, %arg27: memref<128x128xf32, #tpu.memory_space<vmem>>, %arg28: memref<1x128xf32, #tpu.memory_space<vmem>>, %arg29: memref<2x128xf32, #tpu.memory_space<vmem>>, %arg30: memref<16x128xf32, #tpu.memory_space<vmem>>) attributes {dimension_semantics = [], scalar_prefetch = 0 : i64, scratch_operands = 1 : i64, tpu.core_type = #tpu.core_type<tc>} {
    %c0 = arith.constant 0 : index
    %c0_0 = arith.constant 0 : index
    %0 = vector.load %arg2[%c0, %c0_0] : memref<48x16xf32, #tpu.memory_space<vmem>>, vector<48x16xf32>
    %c0_1 = arith.constant 0 : index
    %c0_2 = arith.constant 0 : index
    %1 = vector.load %arg3[%c0_1, %c0_2] : memref<48x16xf32, #tpu.memory_space<vmem>>, vector<48x16xf32>
    %c0_3 = arith.constant 0 : index
    %c0_4 = arith.constant 0 : index
    %2 = vector.load %arg4[%c0_3, %c0_4] : memref<16x48xf32, #tpu.memory_space<vmem>>, vector<16x48xf32>
    %c0_5 = arith.constant 0 : index
    %c0_6 = arith.constant 0 : index
    %3 = vector.load %arg1[%c0_5, %c0_6] : memref<16x3xf32, #tpu.memory_space<vmem>>, vector<16x3xf32>
    %cst = arith.constant dense<0.000000e+00> : vector<48x3xf32>
    %4 = tpu.matmul %0, %3, %cst {dimension_numbers = #tpu.dot_dimension_numbers<[1], [0], [0], [1], [0, 0, 1, 1], [], []>} : vector<48x16xf32>, vector<16x3xf32>, vector<48x3xf32> -> vector<48x3xf32>
    %cst_7 = arith.constant dense<0.000000e+00> : vector<48x3xf32>
    %5 = tpu.matmul %1, %3, %cst_7 {dimension_numbers = #tpu.dot_dimension_numbers<[1], [0], [0], [1], [0, 0, 1, 1], [], []>} : vector<48x16xf32>, vector<16x3xf32>, vector<48x3xf32> -> vector<48x3xf32>
    %6 = arith.subf %4, %5 : vector<48x3xf32>
    %7 = arith.mulf %6, %6 : vector<48x3xf32>
    %cst_8 = arith.constant dense<0.000000e+00> : vector<48xf32>
    %8 = vector.multi_reduction <add>, %7, %cst_8 [1] : vector<48x3xf32> to vector<48xf32>
    %9 = vector.shape_cast %8 : vector<48xf32> to vector<48x1xf32>
    %10 = math.sqrt %9 : vector<48x1xf32>
    %c0_9 = arith.constant 0 : index
    %c0_10 = arith.constant 0 : index
    %11 = vector.load %arg0[%c0_9, %c0_10] : memref<16x128xf32, #tpu.memory_space<vmem>>, vector<16x128xf32>
    %c0_11 = arith.constant 0 : index
    %c0_12 = arith.constant 0 : index
    %12 = vector.load %arg6[%c0_11, %c0_12] : memref<128x128xf32, #tpu.memory_space<vmem>>, vector<128x128xf32>
    %cst_13 = arith.constant dense<0.000000e+00> : vector<16x128xf32>
    %13 = tpu.matmul %11, %12, %cst_13 {dimension_numbers = #tpu.dot_dimension_numbers<[1], [0], [0], [1], [0, 0, 1, 1], [], []>} : vector<16x128xf32>, vector<128x128xf32>, vector<16x128xf32> -> vector<16x128xf32>
    %c0_14 = arith.constant 0 : index
    %c0_15 = arith.constant 0 : index
    %14 = vector.load %arg7[%c0_14, %c0_15] : memref<1x128xf32, #tpu.memory_space<vmem>>, vector<1x128xf32>
    %15 = vector.broadcast %14 : vector<1x128xf32> to vector<16x128xf32>
    %16 = arith.addf %13, %15 : vector<16x128xf32>
    %17 = arith.negf %16 : vector<16x128xf32>
    %18 = math.exp %17 : vector<16x128xf32>
    %cst_16 = arith.constant 1.000000e+00 : f32
    %19 = vector.broadcast %cst_16 : f32 to vector<16x128xf32>
    %20 = arith.addf %19, %18 : vector<16x128xf32>
    %21 = arith.divf %19, %20 : vector<16x128xf32>
    %22 = arith.mulf %16, %21 : vector<16x128xf32>
    %c0_17 = arith.constant 0 : index
    %c0_18 = arith.constant 0 : index
    %23 = vector.load %arg8[%c0_17, %c0_18] : memref<128x128xf32, #tpu.memory_space<vmem>>, vector<128x128xf32>
    %cst_19 = arith.constant dense<0.000000e+00> : vector<16x128xf32>
    %24 = tpu.matmul %22, %23, %cst_19 {dimension_numbers = #tpu.dot_dimension_numbers<[1], [0], [0], [1], [0, 0, 1, 1], [], []>} : vector<16x128xf32>, vector<128x128xf32>, vector<16x128xf32> -> vector<16x128xf32>
    %c0_20 = arith.constant 0 : index
    %c0_21 = arith.constant 0 : index
    %25 = vector.load %arg9[%c0_20, %c0_21] : memref<1x128xf32, #tpu.memory_space<vmem>>, vector<1x128xf32>
    %26 = vector.broadcast %25 : vector<1x128xf32> to vector<16x128xf32>
    %27 = arith.addf %24, %26 : vector<16x128xf32>
    %c0_22 = arith.constant 0 : index
    %c0_23 = arith.constant 0 : index
    %28 = vector.load %arg30[%c0_22, %c0_23] : memref<16x128xf32, #tpu.memory_space<vmem>>, vector<16x128xf32>
    tpu.vector_store %arg30[%c0_22, %c0_23], %27 {strides = array<i32>} : memref<16x128xf32, #tpu.memory_space<vmem>>, vector<16x128xf32>,
    %c0_i32 = arith.constant 0 : i32
    %c0_24 = arith.constant 0 : index
    %c0_25 = arith.constant 0 : index
    %29 = vector.load %arg30[%c0_24, %c0_25] : memref<16x128xf32, #tpu.memory_space<vmem>>, vector<16x128xf32>
    %30 = arith.index_cast %c0_i32 : i32 to index
    %c0_26 = arith.constant 0 : index
    %c0_27 = arith.constant 0 : index
    %31 = vector.load %arg10[%30, %c0_26, %c0_27] : memref<2x128x128xf32, #tpu.memory_space<vmem>>, vector<1x128x128xf32>
    %32 = vector.shape_cast %31 : vector<1x128x128xf32> to vector<128x128xf32>
    %cst_28 = arith.constant dense<0.000000e+00> : vector<16x128xf32>
    %33 = tpu.matmul %29, %32, %cst_28 {dimension_numbers = #tpu.dot_dimension_numbers<[1], [0], [0], [1], [0, 0, 1, 1], [], []>} : vector<16x128xf32>, vector<128x128xf32>, vector<16x128xf32> -> vector<16x128xf32>
    %34 = arith.index_cast %c0_i32 : i32 to index
    %c0_29 = arith.constant 0 : index
    %c0_30 = arith.constant 0 : index
    %35 = vector.load %arg11[%34, %c0_29, %c0_30] : memref<2x128x128xf32, #tpu.memory_space<vmem>>, vector<1x128x128xf32>
    %36 = vector.shape_cast %35 : vector<1x128x128xf32> to vector<128x128xf32>
    %cst_31 = arith.constant dense<0.000000e+00> : vector<16x128xf32>
    %37 = tpu.matmul %29, %36, %cst_31 {dimension_numbers = #tpu.dot_dimension_numbers<[1], [0], [0], [1], [0, 0, 1, 1], [], []>} : vector<16x128xf32>, vector<128x128xf32>, vector<16x128xf32> -> vector<16x128xf32>
    %cst_32 = arith.constant dense<0.000000e+00> : vector<48x128xf32>
    %38 = tpu.matmul %0, %33, %cst_32 {dimension_numbers = #tpu.dot_dimension_numbers<[1], [0], [0], [1], [0, 0, 1, 1], [], []>} : vector<48x16xf32>, vector<16x128xf32>, vector<48x128xf32> -> vector<48x128xf32>
    %cst_33 = arith.constant dense<0.000000e+00> : vector<48x128xf32>
    %39 = tpu.matmul %1, %37, %cst_33 {dimension_numbers = #tpu.dot_dimension_numbers<[1], [0], [0], [1], [0, 0, 1, 1], [], []>} : vector<48x16xf32>, vector<16x128xf32>, vector<48x128xf32> -> vector<48x128xf32>
    %40 = arith.addf %38, %39 : vector<48x128xf32>
    %41 = arith.index_cast %c0_i32 : i32 to index
    %c0_34 = arith.constant 0 : index
    %c0_35 = arith.constant 0 : index
    %42 = vector.load %arg12[%41, %c0_34, %c0_35] : memref<2x1x128xf32, #tpu.memory_space<vmem>>, vector<1x1x128xf32>
    %43 = vector.shape_cast %42 : vector<1x1x128xf32> to vector<1x128xf32>
    %44 = vector.broadcast %10 : vector<48x1xf32> to vector<48x128xf32>
    %45 = vector.broadcast %43 : vector<1x128xf32> to vector<48x128xf32>
    %46 = arith.mulf %44, %45 : vector<48x128xf32>
    %47 = arith.addf %40, %46 : vector<48x128xf32>
    %48 = arith.index_cast %c0_i32 : i32 to index
    %c0_36 = arith.constant 0 : index
    %c0_37 = arith.constant 0 : index
    %49 = vector.load %arg13[%48, %c0_36, %c0_37] : memref<2x1x128xf32, #tpu.memory_space<vmem>>, vector<1x1x128xf32>
    %50 = vector.shape_cast %49 : vector<1x1x128xf32> to vector<1x128xf32>
    %51 = vector.broadcast %50 : vector<1x128xf32> to vector<48x128xf32>
    %52 = arith.addf %47, %51 : vector<48x128xf32>
    %53 = arith.negf %52 : vector<48x128xf32>
    %54 = math.exp %53 : vector<48x128xf32>
    %cst_38 = arith.constant 1.000000e+00 : f32
    %55 = vector.broadcast %cst_38 : f32 to vector<48x128xf32>
    %56 = arith.addf %55, %54 : vector<48x128xf32>
    %57 = arith.divf %55, %56 : vector<48x128xf32>
    %58 = arith.mulf %52, %57 : vector<48x128xf32>
    %59 = arith.index_cast %c0_i32 : i32 to index
    %c0_39 = arith.constant 0 : index
    %c0_40 = arith.constant 0 : index
    %60 = vector.load %arg14[%59, %c0_39, %c0_40] : memref<2x128x128xf32, #tpu.memory_space<vmem>>, vector<1x128x128xf32>
    %61 = vector.shape_cast %60 : vector<1x128x128xf32> to vector<128x128xf32>
    %cst_41 = arith.constant dense<0.000000e+00> : vector<48x128xf32>
    %62 = tpu.matmul %58, %61, %cst_41 {dimension_numbers = #tpu.dot_dimension_numbers<[1], [0], [0], [1], [0, 0, 1, 1], [], []>} : vector<48x128xf32>, vector<128x128xf32>, vector<48x128xf32> -> vector<48x128xf32>
    %63 = arith.index_cast %c0_i32 : i32 to index
    %c0_42 = arith.constant 0 : index
    %c0_43 = arith.constant 0 : index
    %64 = vector.load %arg15[%63, %c0_42, %c0_43] : memref<2x1x128xf32, #tpu.memory_space<vmem>>, vector<1x1x128xf32>
    %65 = vector.shape_cast %64 : vector<1x1x128xf32> to vector<1x128xf32>
    %66 = vector.broadcast %65 : vector<1x128xf32> to vector<48x128xf32>
    %67 = arith.addf %62, %66 : vector<48x128xf32>
    %68 = arith.negf %67 : vector<48x128xf32>
    %69 = math.exp %68 : vector<48x128xf32>
    %cst_44 = arith.constant 1.000000e+00 : f32
    %70 = vector.broadcast %cst_44 : f32 to vector<48x128xf32>
    %71 = arith.addf %70, %69 : vector<48x128xf32>
    %72 = arith.divf %70, %71 : vector<48x128xf32>
    %73 = arith.mulf %67, %72 : vector<48x128xf32>
    %cst_45 = arith.constant dense<0.000000e+00> : vector<16x128xf32>
    %74 = tpu.matmul %2, %73, %cst_45 {dimension_numbers = #tpu.dot_dimension_numbers<[1], [0], [0], [1], [0, 0, 1, 1], [], []>} : vector<16x48xf32>, vector<48x128xf32>, vector<16x128xf32> -> vector<16x128xf32>
    %75 = arith.index_cast %c0_i32 : i32 to index
    %c0_46 = arith.constant 0 : index
    %c0_47 = arith.constant 0 : index
    %76 = vector.load %arg16[%75, %c0_46, %c0_47] : memref<2x128x128xf32, #tpu.memory_space<vmem>>, vector<1x128x128xf32>
    %77 = vector.shape_cast %76 : vector<1x128x128xf32> to vector<128x128xf32>
    %cst_48 = arith.constant dense<0.000000e+00> : vector<16x128xf32>
    %78 = tpu.matmul %29, %77, %cst_48 {dimension_numbers = #tpu.dot_dimension_numbers<[1], [0], [0], [1], [0, 0, 1, 1], [], []>} : vector<16x128xf32>, vector<128x128xf32>, vector<16x128xf32> -> vector<16x128xf32>
    %79 = arith.index_cast %c0_i32 : i32 to index
    %c0_49 = arith.constant 0 : index
    %c0_50 = arith.constant 0 : index
    %80 = vector.load %arg17[%79, %c0_49, %c0_50] : memref<2x128x128xf32, #tpu.memory_space<vmem>>, vector<1x128x128xf32>
    %81 = vector.shape_cast %80 : vector<1x128x128xf32> to vector<128x128xf32>
    %cst_51 = arith.constant dense<0.000000e+00> : vector<16x128xf32>
    %82 = tpu.matmul %74, %81, %cst_51 {dimension_numbers = #tpu.dot_dimension_numbers<[1], [0], [0], [1], [0, 0, 1, 1], [], []>} : vector<16x128xf32>, vector<128x128xf32>, vector<16x128xf32> -> vector<16x128xf32>
    %83 = arith.addf %78, %82 : vector<16x128xf32>
    %84 = arith.index_cast %c0_i32 : i32 to index
    %c0_52 = arith.constant 0 : index
    %c0_53 = arith.constant 0 : index
    %85 = vector.load %arg18[%84, %c0_52, %c0_53] : memref<2x1x128xf32, #tpu.memory_space<vmem>>, vector<1x1x128xf32>
    %86 = vector.shape_cast %85 : vector<1x1x128xf32> to vector<1x128xf32>
    %87 = vector.broadcast %86 : vector<1x128xf32> to vector<16x128xf32>
    %88 = arith.addf %83, %87 : vector<16x128xf32>
    %89 = arith.negf %88 : vector<16x128xf32>
    %90 = math.exp %89 : vector<16x128xf32>
    %cst_54 = arith.constant 1.000000e+00 : f32
    %91 = vector.broadcast %cst_54 : f32 to vector<16x128xf32>
    %92 = arith.addf %91, %90 : vector<16x128xf32>
    %93 = arith.divf %91, %92 : vector<16x128xf32>
    %94 = arith.mulf %88, %93 : vector<16x128xf32>
    %95 = arith.index_cast %c0_i32 : i32 to index
    %c0_55 = arith.constant 0 : index
    %c0_56 = arith.constant 0 : index
    %96 = vector.load %arg19[%95, %c0_55, %c0_56] : memref<2x128x128xf32, #tpu.memory_space<vmem>>, vector<1x128x128xf32>
    %97 = vector.shape_cast %96 : vector<1x128x128xf32> to vector<128x128xf32>
    %cst_57 = arith.constant dense<0.000000e+00> : vector<16x128xf32>
    %98 = tpu.matmul %94, %97, %cst_57 {dimension_numbers = #tpu.dot_dimension_numbers<[1], [0], [0], [1], [0, 0, 1, 1], [], []>} : vector<16x128xf32>, vector<128x128xf32>, vector<16x128xf32> -> vector<16x128xf32>
    %99 = arith.index_cast %c0_i32 : i32 to index
    %c0_58 = arith.constant 0 : index
    %c0_59 = arith.constant 0 : index
    %100 = vector.load %arg20[%99, %c0_58, %c0_59] : memref<2x1x128xf32, #tpu.memory_space<vmem>>, vector<1x1x128xf32>
    %101 = vector.shape_cast %100 : vector<1x1x128xf32> to vector<1x128xf32>
    %102 = vector.broadcast %101 : vector<1x128xf32> to vector<16x128xf32>
    %103 = arith.addf %98, %102 : vector<16x128xf32>
    %104 = arith.addf %29, %103 : vector<16x128xf32>
    %c0_60 = arith.constant 0 : index
    %c0_61 = arith.constant 0 : index
    %105 = vector.load %arg30[%c0_60, %c0_61] : memref<16x128xf32, #tpu.memory_space<vmem>>, vector<16x128xf32>
    tpu.vector_store %arg30[%c0_60, %c0_61], %104 {strides = array<i32>} : memref<16x128xf32, #tpu.memory_space<vmem>>, vector<16x128xf32>,
    %c1_i32 = arith.constant 1 : i32
    %c0_62 = arith.constant 0 : index
    %c0_63 = arith.constant 0 : index
    %106 = vector.load %arg30[%c0_62, %c0_63] : memref<16x128xf32, #tpu.memory_space<vmem>>, vector<16x128xf32>
    %107 = arith.index_cast %c1_i32 : i32 to index
    %c0_64 = arith.constant 0 : index
    %c0_65 = arith.constant 0 : index
    %108 = vector.load %arg10[%107, %c0_64, %c0_65] : memref<2x128x128xf32, #tpu.memory_space<vmem>>, vector<1x128x128xf32>
    %109 = vector.shape_cast %108 : vector<1x128x128xf32> to vector<128x128xf32>
    %cst_66 = arith.constant dense<0.000000e+00> : vector<16x128xf32>
    %110 = tpu.matmul %106, %109, %cst_66 {dimension_numbers = #tpu.dot_dimension_numbers<[1], [0], [0], [1], [0, 0, 1, 1], [], []>} : vector<16x128xf32>, vector<128x128xf32>, vector<16x128xf32> -> vector<16x128xf32>
    %111 = arith.index_cast %c1_i32 : i32 to index
    %c0_67 = arith.constant 0 : index
    %c0_68 = arith.constant 0 : index
    %112 = vector.load %arg11[%111, %c0_67, %c0_68] : memref<2x128x128xf32, #tpu.memory_space<vmem>>, vector<1x128x128xf32>
    %113 = vector.shape_cast %112 : vector<1x128x128xf32> to vector<128x128xf32>
    %cst_69 = arith.constant dense<0.000000e+00> : vector<16x128xf32>
    %114 = tpu.matmul %106, %113, %cst_69 {dimension_numbers = #tpu.dot_dimension_numbers<[1], [0], [0], [1], [0, 0, 1, 1], [], []>} : vector<16x128xf32>, vector<128x128xf32>, vector<16x128xf32> -> vector<16x128xf32>
    %cst_70 = arith.constant dense<0.000000e+00> : vector<48x128xf32>
    %115 = tpu.matmul %0, %110, %cst_70 {dimension_numbers = #tpu.dot_dimension_numbers<[1], [0], [0], [1], [0, 0, 1, 1], [], []>} : vector<48x16xf32>, vector<16x128xf32>, vector<48x128xf32> -> vector<48x128xf32>
    %cst_71 = arith.constant dense<0.000000e+00> : vector<48x128xf32>
    %116 = tpu.matmul %1, %114, %cst_71 {dimension_numbers = #tpu.dot_dimension_numbers<[1], [0], [0], [1], [0, 0, 1, 1], [], []>} : vector<48x16xf32>, vector<16x128xf32>, vector<48x128xf32> -> vector<48x128xf32>
    %117 = arith.addf %115, %116 : vector<48x128xf32>
    %118 = arith.index_cast %c1_i32 : i32 to index
    %c0_72 = arith.constant 0 : index
    %c0_73 = arith.constant 0 : index
    %119 = vector.load %arg12[%118, %c0_72, %c0_73] : memref<2x1x128xf32, #tpu.memory_space<vmem>>, vector<1x1x128xf32>
    %120 = vector.shape_cast %119 : vector<1x1x128xf32> to vector<1x128xf32>
    %121 = vector.broadcast %10 : vector<48x1xf32> to vector<48x128xf32>
    %122 = vector.broadcast %120 : vector<1x128xf32> to vector<48x128xf32>
    %123 = arith.mulf %121, %122 : vector<48x128xf32>
    %124 = arith.addf %117, %123 : vector<48x128xf32>
    %125 = arith.index_cast %c1_i32 : i32 to index
    %c0_74 = arith.constant 0 : index
    %c0_75 = arith.constant 0 : index
    %126 = vector.load %arg13[%125, %c0_74, %c0_75] : memref<2x1x128xf32, #tpu.memory_space<vmem>>, vector<1x1x128xf32>
    %127 = vector.shape_cast %126 : vector<1x1x128xf32> to vector<1x128xf32>
    %128 = vector.broadcast %127 : vector<1x128xf32> to vector<48x128xf32>
    %129 = arith.addf %124, %128 : vector<48x128xf32>
    %130 = arith.negf %129 : vector<48x128xf32>
    %131 = math.exp %130 : vector<48x128xf32>
    %cst_76 = arith.constant 1.000000e+00 : f32
    %132 = vector.broadcast %cst_76 : f32 to vector<48x128xf32>
    %133 = arith.addf %132, %131 : vector<48x128xf32>
    %134 = arith.divf %132, %133 : vector<48x128xf32>
    %135 = arith.mulf %129, %134 : vector<48x128xf32>
    %136 = arith.index_cast %c1_i32 : i32 to index
    %c0_77 = arith.constant 0 : index
    %c0_78 = arith.constant 0 : index
    %137 = vector.load %arg14[%136, %c0_77, %c0_78] : memref<2x128x128xf32, #tpu.memory_space<vmem>>, vector<1x128x128xf32>
    %138 = vector.shape_cast %137 : vector<1x128x128xf32> to vector<128x128xf32>
    %cst_79 = arith.constant dense<0.000000e+00> : vector<48x128xf32>
    %139 = tpu.matmul %135, %138, %cst_79 {dimension_numbers = #tpu.dot_dimension_numbers<[1], [0], [0], [1], [0, 0, 1, 1], [], []>} : vector<48x128xf32>, vector<128x128xf32>, vector<48x128xf32> -> vector<48x128xf32>
    %140 = arith.index_cast %c1_i32 : i32 to index
    %c0_80 = arith.constant 0 : index
    %c0_81 = arith.constant 0 : index
    %141 = vector.load %arg15[%140, %c0_80, %c0_81] : memref<2x1x128xf32, #tpu.memory_space<vmem>>, vector<1x1x128xf32>
    %142 = vector.shape_cast %141 : vector<1x1x128xf32> to vector<1x128xf32>
    %143 = vector.broadcast %142 : vector<1x128xf32> to vector<48x128xf32>
    %144 = arith.addf %139, %143 : vector<48x128xf32>
    %145 = arith.negf %144 : vector<48x128xf32>
    %146 = math.exp %145 : vector<48x128xf32>
    %cst_82 = arith.constant 1.000000e+00 : f32
    %147 = vector.broadcast %cst_82 : f32 to vector<48x128xf32>
    %148 = arith.addf %147, %146 : vector<48x128xf32>
    %149 = arith.divf %147, %148 : vector<48x128xf32>
    %150 = arith.mulf %144, %149 : vector<48x128xf32>
    %cst_83 = arith.constant dense<0.000000e+00> : vector<16x128xf32>
    %151 = tpu.matmul %2, %150, %cst_83 {dimension_numbers = #tpu.dot_dimension_numbers<[1], [0], [0], [1], [0, 0, 1, 1], [], []>} : vector<16x48xf32>, vector<48x128xf32>, vector<16x128xf32> -> vector<16x128xf32>
    %152 = arith.index_cast %c1_i32 : i32 to index
    %c0_84 = arith.constant 0 : index
    %c0_85 = arith.constant 0 : index
    %153 = vector.load %arg16[%152, %c0_84, %c0_85] : memref<2x128x128xf32, #tpu.memory_space<vmem>>, vector<1x128x128xf32>
    %154 = vector.shape_cast %153 : vector<1x128x128xf32> to vector<128x128xf32>
    %cst_86 = arith.constant dense<0.000000e+00> : vector<16x128xf32>
    %155 = tpu.matmul %106, %154, %cst_86 {dimension_numbers = #tpu.dot_dimension_numbers<[1], [0], [0], [1], [0, 0, 1, 1], [], []>} : vector<16x128xf32>, vector<128x128xf32>, vector<16x128xf32> -> vector<16x128xf32>
    %156 = arith.index_cast %c1_i32 : i32 to index
    %c0_87 = arith.constant 0 : index
    %c0_88 = arith.constant 0 : index
    %157 = vector.load %arg17[%156, %c0_87, %c0_88] : memref<2x128x128xf32, #tpu.memory_space<vmem>>, vector<1x128x128xf32>
    %158 = vector.shape_cast %157 : vector<1x128x128xf32> to vector<128x128xf32>
    %cst_89 = arith.constant dense<0.000000e+00> : vector<16x128xf32>
    %159 = tpu.matmul %151, %158, %cst_89 {dimension_numbers = #tpu.dot_dimension_numbers<[1], [0], [0], [1], [0, 0, 1, 1], [], []>} : vector<16x128xf32>, vector<128x128xf32>, vector<16x128xf32> -> vector<16x128xf32>
    %160 = arith.addf %155, %159 : vector<16x128xf32>
    %161 = arith.index_cast %c1_i32 : i32 to index
    %c0_90 = arith.constant 0 : index
    %c0_91 = arith.constant 0 : index
    %162 = vector.load %arg18[%161, %c0_90, %c0_91] : memref<2x1x128xf32, #tpu.memory_space<vmem>>, vector<1x1x128xf32>
    %163 = vector.shape_cast %162 : vector<1x1x128xf32> to vector<1x128xf32>
    %164 = vector.broadcast %163 : vector<1x128xf32> to vector<16x128xf32>
    %165 = arith.addf %160, %164 : vector<16x128xf32>
    %166 = arith.negf %165 : vector<16x128xf32>
    %167 = math.exp %166 : vector<16x128xf32>
    %cst_92 = arith.constant 1.000000e+00 : f32
    %168 = vector.broadcast %cst_92 : f32 to vector<16x128xf32>
    %169 = arith.addf %168, %167 : vector<16x128xf32>
    %170 = arith.divf %168, %169 : vector<16x128xf32>
    %171 = arith.mulf %165, %170 : vector<16x128xf32>
    %172 = arith.index_cast %c1_i32 : i32 to index
    %c0_93 = arith.constant 0 : index
    %c0_94 = arith.constant 0 : index
    %173 = vector.load %arg19[%172, %c0_93, %c0_94] : memref<2x128x128xf32, #tpu.memory_space<vmem>>, vector<1x128x128xf32>
    %174 = vector.shape_cast %173 : vector<1x128x128xf32> to vector<128x128xf32>
    %cst_95 = arith.constant dense<0.000000e+00> : vector<16x128xf32>
    %175 = tpu.matmul %171, %174, %cst_95 {dimension_numbers = #tpu.dot_dimension_numbers<[1], [0], [0], [1], [0, 0, 1, 1], [], []>} : vector<16x128xf32>, vector<128x128xf32>, vector<16x128xf32> -> vector<16x128xf32>
    %176 = arith.index_cast %c1_i32 : i32 to index
    %c0_96 = arith.constant 0 : index
    %c0_97 = arith.constant 0 : index
    %177 = vector.load %arg20[%176, %c0_96, %c0_97] : memref<2x1x128xf32, #tpu.memory_space<vmem>>, vector<1x1x128xf32>
    %178 = vector.shape_cast %177 : vector<1x1x128xf32> to vector<1x128xf32>
    %179 = vector.broadcast %178 : vector<1x128xf32> to vector<16x128xf32>
    %180 = arith.addf %175, %179 : vector<16x128xf32>
    %181 = arith.addf %106, %180 : vector<16x128xf32>
    %c0_98 = arith.constant 0 : index
    %c0_99 = arith.constant 0 : index
    %182 = vector.load %arg30[%c0_98, %c0_99] : memref<16x128xf32, #tpu.memory_space<vmem>>, vector<16x128xf32>
    tpu.vector_store %arg30[%c0_98, %c0_99], %181 {strides = array<i32>} : memref<16x128xf32, #tpu.memory_space<vmem>>, vector<16x128xf32>,
    %c2_i32 = arith.constant 2 : i32
    %c0_100 = arith.constant 0 : index
    %c0_101 = arith.constant 0 : index
    %183 = vector.load %arg30[%c0_100, %c0_101] : memref<16x128xf32, #tpu.memory_space<vmem>>, vector<16x128xf32>
    %c0_102 = arith.constant 0 : index
    %c0_103 = arith.constant 0 : index
    %184 = vector.load %arg21[%c0_102, %c0_103] : memref<128x128xf32, #tpu.memory_space<vmem>>, vector<128x128xf32>
    %cst_104 = arith.constant dense<0.000000e+00> : vector<16x128xf32>
    %185 = tpu.matmul %183, %184, %cst_104 {dimension_numbers = #tpu.dot_dimension_numbers<[1], [0], [0], [1], [0, 0, 1, 1], [], []>} : vector<16x128xf32>, vector<128x128xf32>, vector<16x128xf32> -> vector<16x128xf32>
    %c0_105 = arith.constant 0 : index
    %c0_106 = arith.constant 0 : index
    %186 = vector.load %arg22[%c0_105, %c0_106] : memref<1x128xf32, #tpu.memory_space<vmem>>, vector<1x128xf32>
    %187 = vector.broadcast %186 : vector<1x128xf32> to vector<16x128xf32>
    %188 = arith.addf %185, %187 : vector<16x128xf32>
    %189 = arith.negf %188 : vector<16x128xf32>
    %190 = math.exp %189 : vector<16x128xf32>
    %cst_107 = arith.constant 1.000000e+00 : f32
    %191 = vector.broadcast %cst_107 : f32 to vector<16x128xf32>
    %192 = arith.addf %191, %190 : vector<16x128xf32>
    %193 = arith.divf %191, %192 : vector<16x128xf32>
    %194 = arith.mulf %188, %193 : vector<16x128xf32>
    %c0_108 = arith.constant 0 : index
    %c0_109 = arith.constant 0 : index
    %195 = vector.load %arg23[%c0_108, %c0_109] : memref<128x128xf32, #tpu.memory_space<vmem>>, vector<128x128xf32>
    %cst_110 = arith.constant dense<0.000000e+00> : vector<16x128xf32>
    %196 = tpu.matmul %194, %195, %cst_110 {dimension_numbers = #tpu.dot_dimension_numbers<[1], [0], [0], [1], [0, 0, 1, 1], [], []>} : vector<16x128xf32>, vector<128x128xf32>, vector<16x128xf32> -> vector<16x128xf32>
    %c0_111 = arith.constant 0 : index
    %c0_112 = arith.constant 0 : index
    %197 = vector.load %arg24[%c0_111, %c0_112] : memref<1x128xf32, #tpu.memory_space<vmem>>, vector<1x128xf32>
    %198 = vector.broadcast %197 : vector<1x128xf32> to vector<16x128xf32>
    %199 = arith.addf %196, %198 : vector<16x128xf32>
    %c0_113 = arith.constant 0 : index
    %c0_114 = arith.constant 0 : index
    %200 = vector.load %arg5[%c0_113, %c0_114] : memref<2x16xf32, #tpu.memory_space<vmem>>, vector<2x16xf32>
    %cst_115 = arith.constant dense<0.000000e+00> : vector<2x128xf32>
    %201 = tpu.matmul %200, %199, %cst_115 {dimension_numbers = #tpu.dot_dimension_numbers<[1], [0], [0], [1], [0, 0, 1, 1], [], []>} : vector<2x16xf32>, vector<16x128xf32>, vector<2x128xf32> -> vector<2x128xf32>
    %c0_116 = arith.constant 0 : index
    %c0_117 = arith.constant 0 : index
    %202 = vector.load %arg25[%c0_116, %c0_117] : memref<128x128xf32, #tpu.memory_space<vmem>>, vector<128x128xf32>
    %cst_118 = arith.constant dense<0.000000e+00> : vector<2x128xf32>
    %203 = tpu.matmul %201, %202, %cst_118 {dimension_numbers = #tpu.dot_dimension_numbers<[1], [0], [0], [1], [0, 0, 1, 1], [], []>} : vector<2x128xf32>, vector<128x128xf32>, vector<2x128xf32> -> vector<2x128xf32>
    %c0_119 = arith.constant 0 : index
    %c0_120 = arith.constant 0 : index
    %204 = vector.load %arg26[%c0_119, %c0_120] : memref<1x128xf32, #tpu.memory_space<vmem>>, vector<1x128xf32>
    %205 = vector.broadcast %204 : vector<1x128xf32> to vector<2x128xf32>
    %206 = arith.addf %203, %205 : vector<2x128xf32>
    %207 = arith.negf %206 : vector<2x128xf32>
    %208 = math.exp %207 : vector<2x128xf32>
    %cst_121 = arith.constant 1.000000e+00 : f32
    %209 = vector.broadcast %cst_121 : f32 to vector<2x128xf32>
    %210 = arith.addf %209, %208 : vector<2x128xf32>
    %211 = arith.divf %209, %210 : vector<2x128xf32>
    %212 = arith.mulf %206, %211 : vector<2x128xf32>
    %c0_122 = arith.constant 0 : index
    %c0_123 = arith.constant 0 : index
    %213 = vector.load %arg27[%c0_122, %c0_123] : memref<128x128xf32, #tpu.memory_space<vmem>>, vector<128x128xf32>
    %cst_124 = arith.constant dense<0.000000e+00> : vector<2x128xf32>
    %214 = tpu.matmul %212, %213, %cst_124 {dimension_numbers = #tpu.dot_dimension_numbers<[1], [0], [0], [1], [0, 0, 1, 1], [], []>} : vector<2x128xf32>, vector<128x128xf32>, vector<2x128xf32> -> vector<2x128xf32>
    %c0_125 = arith.constant 0 : index
    %c0_126 = arith.constant 0 : index
    %215 = vector.load %arg28[%c0_125, %c0_126] : memref<1x128xf32, #tpu.memory_space<vmem>>, vector<1x128xf32>
    %216 = vector.broadcast %215 : vector<1x128xf32> to vector<2x128xf32>
    %217 = arith.addf %214, %216 : vector<2x128xf32>
    %c0_127 = arith.constant 0 : index
    %c0_128 = arith.constant 0 : index
    %218 = vector.load %arg29[%c0_127, %c0_128] : memref<2x128xf32, #tpu.memory_space<vmem>>, vector<2x128xf32>
    tpu.vector_store %arg29[%c0_127, %c0_128], %217 {strides = array<i32>} : memref<2x128xf32, #tpu.memory_space<vmem>>, vector<2x128xf32>,
    return
  }
}

</mosaic_0001>

<llo_original>
// kernel: egnn_forward.1
$region0: #{egnn_forward.1}
  #allocation0 [shape = 'u32[]', space=smem, size = 0x4, offset = 0x4, fixed_abs, tag = 'smem constant byte address 0x4 - core index']
  #allocation1 [shape = 'u32[144,128]{1,0:T(1,128)}', space=vmem, size = 0x12000, scoped, tag = 'internal scratch']
  #allocation2 [shape = 'f32[16,128]{1,0:T(8,128)}', space=vmem, size = 0x2000, scoped, tag = 'scratch operand']
  %s0 = inlined_call_operand.smem [shape: u32[30], index: -1, kind: input, shape index: {}]
  %s1 = sld [smem:[%s0]]
  %s2 = scalar_lea.smem %s0, 1
  %s3 = sld [smem:[%s2]]
  %s4 = scalar_lea.smem %s0, 2
  %s5 = sld [smem:[%s4]]
  %s6 = scalar_lea.smem %s0, 3
  %s7 = sld [smem:[%s6]]
  %s8 = scalar_lea.smem %s0, 4
  %s9 = sld [smem:[%s8]]
  %s10 = scalar_lea.smem %s0, 5
  %s11 = sld [smem:[%s10]]
  %s12 = scalar_lea.smem %s0, 6
  %s13 = sld [smem:[%s12]]
  %s14 = scalar_lea.smem %s0, 7
  %s15 = sld [smem:[%s14]]
  %s16 = scalar_lea.smem %s0, 8
  %s17 = sld [smem:[%s16]]
  %s18 = scalar_lea.smem %s0, 9
  %s19 = sld [smem:[%s18]]
  %s20 = scalar_lea.smem %s0, 10
  %s21 = sld [smem:[%s20]]
  %s22 = scalar_lea.smem %s0, 11
  %s23 = sld [smem:[%s22]]
  %s24 = scalar_lea.smem %s0, 12
  %s25 = sld [smem:[%s24]]
  %s26 = scalar_lea.smem %s0, 13
  %s27 = sld [smem:[%s26]]
  %s28 = scalar_lea.smem %s0, 14
  %s29 = sld [smem:[%s28]]
  %s30 = scalar_lea.smem %s0, 15
  %s31 = sld [smem:[%s30]]
  %s32 = scalar_lea.smem %s0, 16
  %s33 = sld [smem:[%s32]]
  %s34 = scalar_lea.smem %s0, 17
  %s35 = sld [smem:[%s34]]
  %s36 = scalar_lea.smem %s0, 18
  %s37 = sld [smem:[%s36]]
  %s38 = scalar_lea.smem %s0, 19
  %s39 = sld [smem:[%s38]]
  %s40 = scalar_lea.smem %s0, 20
  %s41 = sld [smem:[%s40]]
  %s42 = scalar_lea.smem %s0, 21
  %s43 = sld [smem:[%s42]]
  %s44 = scalar_lea.smem %s0, 22
  %s45 = sld [smem:[%s44]]
  %s46 = scalar_lea.smem %s0, 23
  %s47 = sld [smem:[%s46]]
  %s48 = scalar_lea.smem %s0, 24
  %s49 = sld [smem:[%s48]]
  %s50 = scalar_lea.smem %s0, 25
  %s51 = sld [smem:[%s50]]
  %s52 = scalar_lea.smem %s0, 26
  %s53 = sld [smem:[%s52]]
  %s54 = scalar_lea.smem %s0, 27
  %s55 = sld [smem:[%s54]]
  %s56 = scalar_lea.smem %s0, 28
  %s57 = sld [smem:[%s56]]
  %s58 = scalar_lea.smem %s0, 29
  %s59 = sld [smem:[%s58]]
  %s60 = sld [smem:[#allocation0]]
  $region126: #{egnn_forward.1} parent=0
    _
  %s62 = ssub.s32 1, %s60
  %s63 = scalar_select 0, %s62, %s60
  $region1: #{egnn_forward.1} parent=0
    #allocation3 [shape = 'u8[1024]{0}', space=vmem, size = 0x400, scoped, tag = 'output window, operand 0, single buffered']
    #allocation4 [shape = 's32[1]{0}', space=sflag, size = 0x4, scoped, tag = 'scoped memory for egnn_forward.1']
    %64 = vsyncpa [#allocation4], 0
    // Predicated region
    $region2: #{egnn_forward.1} parent=1 // pred_check
      _
    $region3: #{egnn_forward.1} parent=1 // pred_check_branch
      %66 = sbr.rel (0) target = $region5
    $region4: #{egnn_forward.1} parent=1 // pred_region
      _
    $region5: #{egnn_forward.1} parent=1 // pred_fallthru
      _
    // Predicated region
    $region6: #{egnn_forward.1} parent=1 // pred_check
      _
    $region7: #{egnn_forward.1} parent=1 // pred_check_branch
      %68 = sbr.rel (0) target = $region9
    $region8: #{egnn_forward.1} parent=1 // pred_region
      _
    $region9: #{egnn_forward.1} parent=1 // pred_fallthru
      _
    // Predicated region
    $region10: #{egnn_forward.1} parent=1 // pred_check
      _
    $region11: #{egnn_forward.1} parent=1 // pred_check_branch
      %70 = sbr.rel (0) target = $region13
    $region12: #{egnn_forward.1} parent=1 // pred_region
      _
    $region13: #{egnn_forward.1} parent=1 // pred_fallthru
      _
    // Predicated region
    $region14: #{egnn_forward.1} parent=1 // pred_check
      _
    $region15: #{egnn_forward.1} parent=1 // pred_check_branch
      %72 = sbr.rel (0) target = $region17
    $region16: #{egnn_forward.1} parent=1 // pred_region
      _
    $region17: #{egnn_forward.1} parent=1 // pred_fallthru
      _
    // Predicated region
    $region18: #{egnn_forward.1} parent=1 // pred_check
      _
    $region19: #{egnn_forward.1} parent=1 // pred_check_branch
      %74 = sbr.rel (0) target = $region21
    $region20: #{egnn_forward.1} parent=1 // pred_region
      _
    $region21: #{egnn_forward.1} parent=1 // pred_fallthru
      _
    // Predicated region
    $region22: #{egnn_forward.1} parent=1 // pred_check
      _
    $region23: #{egnn_forward.1} parent=1 // pred_check_branch
      %76 = sbr.rel (0) target = $region25
    $region24: #{egnn_forward.1} parent=1 // pred_region
      _
    $region25: #{egnn_forward.1} parent=1 // pred_fallthru
      _
    // Predicated region
    $region26: #{egnn_forward.1} parent=1 // pred_check
      _
    $region27: #{egnn_forward.1} parent=1 // pred_check_branch
      %78 = sbr.rel (0) target = $region29
    $region28: #{egnn_forward.1} parent=1 // pred_region
      _
    $region29: #{egnn_forward.1} parent=1 // pred_fallthru
      _
    // Predicated region
    $region30: #{egnn_forward.1} parent=1 // pred_check
      _
    $region31: #{egnn_forward.1} parent=1 // pred_check_branch
      %80 = sbr.rel (0) target = $region33
    $region32: #{egnn_forward.1} parent=1 // pred_region
      _
    $region33: #{egnn_forward.1} parent=1 // pred_fallthru
      _
    // Predicated region
    $region34: #{egnn_forward.1} parent=1 // pred_check
      _
    $region35: #{egnn_forward.1} parent=1 // pred_check_branch
      %82 = sbr.rel (0) target = $region37
    $region36: #{egnn_forward.1} parent=1 // pred_region
      _
    $region37: #{egnn_forward.1} parent=1 // pred_fallthru
      _
    // Predicated region
    $region38: #{egnn_forward.1} parent=1 // pred_check
      _
    $region39: #{egnn_forward.1} parent=1 // pred_check_branch
      %84 = sbr.rel (0) target = $region41
    $region40: #{egnn_forward.1} parent=1 // pred_region
      _
    $region41: #{egnn_forward.1} parent=1 // pred_fallthru
      _
    // Predicated region
    $region42: #{egnn_forward.1} parent=1 // pred_check
      _
    $region43: #{egnn_forward.1} parent=1 // pred_check_branch
      %86 = sbr.rel (0) target = $region45
    $region44: #{egnn_forward.1} parent=1 // pred_region
      _
    $region45: #{egnn_forward.1} parent=1 // pred_fallthru
      _
    // Predicated region
    $region46: #{egnn_forward.1} parent=1 // pred_check
      _
    $region47: #{egnn_forward.1} parent=1 // pred_check_branch
      %88 = sbr.rel (0) target = $region49
    $region48: #{egnn_forward.1} parent=1 // pred_region
      _
    $region49: #{egnn_forward.1} parent=1 // pred_fallthru
      _
    // Predicated region
    $region50: #{egnn_forward.1} parent=1 // pred_check
      _
    $region51: #{egnn_forward.1} parent=1 // pred_check_branch
      %90 = sbr.rel (0) target = $region53
    $region52: #{egnn_forward.1} parent=1 // pred_region
      _
    $region53: #{egnn_forward.1} parent=1 // pred_fallthru
      _
    // Predicated region
    $region54: #{egnn_forward.1} parent=1 // pred_check
      _
    $region55: #{egnn_forward.1} parent=1 // pred_check_branch
      %92 = sbr.rel (0) target = $region57
    $region56: #{egnn_forward.1} parent=1 // pred_region
      _
    $region57: #{egnn_forward.1} parent=1 // pred_fallthru
      _
    // Predicated region
    $region58: #{egnn_forward.1} parent=1 // pred_check
      _
    $region59: #{egnn_forward.1} parent=1 // pred_check_branch
      %94 = sbr.rel (0) target = $region61
    $region60: #{egnn_forward.1} parent=1 // pred_region
      _
    $region61: #{egnn_forward.1} parent=1 // pred_fallthru
      _
    // Predicated region
    $region62: #{egnn_forward.1} parent=1 // pred_check
      _
    $region63: #{egnn_forward.1} parent=1 // pred_check_branch
      %96 = sbr.rel (0) target = $region65
    $region64: #{egnn_forward.1} parent=1 // pred_region
      _
    $region65: #{egnn_forward.1} parent=1 // pred_fallthru
      _
    // Predicated region
    $region66: #{egnn_forward.1} parent=1 // pred_check
      _
    $region67: #{egnn_forward.1} parent=1 // pred_check_branch
      %98 = sbr.rel (0) target = $region69
    $region68: #{egnn_forward.1} parent=1 // pred_region
      _
    $region69: #{egnn_forward.1} parent=1 // pred_fallthru
      _
    // Predicated region
    $region70: #{egnn_forward.1} parent=1 // pred_check
      _
    $region71: #{egnn_forward.1} parent=1 // pred_check_branch
      %100 = sbr.rel (0) target = $region73
    $region72: #{egnn_forward.1} parent=1 // pred_region
      _
    $region73: #{egnn_forward.1} parent=1 // pred_fallthru
      _
    // Predicated region
    $region74: #{egnn_forward.1} parent=1 // pred_check
      _
    $region75: #{egnn_forward.1} parent=1 // pred_check_branch
      %102 = sbr.rel (0) target = $region77
    $region76: #{egnn_forward.1} parent=1 // pred_region
      _
    $region77: #{egnn_forward.1} parent=1 // pred_fallthru
      _
    // Predicated region
    $region78: #{egnn_forward.1} parent=1 // pred_check
      _
    $region79: #{egnn_forward.1} parent=1 // pred_check_branch
      %104 = sbr.rel (0) target = $region81
    $region80: #{egnn_forward.1} parent=1 // pred_region
      _
    $region81: #{egnn_forward.1} parent=1 // pred_fallthru
      _
    // Predicated region
    $region82: #{egnn_forward.1} parent=1 // pred_check
      _
    $region83: #{egnn_forward.1} parent=1 // pred_check_branch
      %106 = sbr.rel (0) target = $region85
    $region84: #{egnn_forward.1} parent=1 // pred_region
      _
    $region85: #{egnn_forward.1} parent=1 // pred_fallthru
      _
    // Predicated region
    $region86: #{egnn_forward.1} parent=1 // pred_check
      _
    $region87: #{egnn_forward.1} parent=1 // pred_check_branch
      %108 = sbr.rel (0) target = $region89
    $region88: #{egnn_forward.1} parent=1 // pred_region
      _
    $region89: #{egnn_forward.1} parent=1 // pred_fallthru
      _
    // Predicated region
    $region90: #{egnn_forward.1} parent=1 // pred_check
      _
    $region91: #{egnn_forward.1} parent=1 // pred_check_branch
      %110 = sbr.rel (0) target = $region93
    $region92: #{egnn_forward.1} parent=1 // pred_region
      _
    $region93: #{egnn_forward.1} parent=1 // pred_fallthru
      _
    // Predicated region
    $region94: #{egnn_forward.1} parent=1 // pred_check
      _
    $region95: #{egnn_forward.1} parent=1 // pred_check_branch
      %112 = sbr.rel (0) target = $region97
    $region96: #{egnn_forward.1} parent=1 // pred_region
      _
    $region97: #{egnn_forward.1} parent=1 // pred_fallthru
      _
    // Predicated region
    $region98: #{egnn_forward.1} parent=1 // pred_check
      _
    $region99: #{egnn_forward.1} parent=1 // pred_check_branch
      %114 = sbr.rel (0) target = $region101
    $region100: #{egnn_forward.1} parent=1 // pred_region
      _
    $region101: #{egnn_forward.1} parent=1 // pred_fallthru
      _
    // Predicated region
    $region102: #{egnn_forward.1} parent=1 // pred_check
      _
    $region103: #{egnn_forward.1} parent=1 // pred_check_branch
      %116 = sbr.rel (0) target = $region105
    $region104: #{egnn_forward.1} parent=1 // pred_region
      _
    $region105: #{egnn_forward.1} parent=1 // pred_fallthru
      _
    // Predicated region
    $region106: #{egnn_forward.1} parent=1 // pred_check
      _
    $region107: #{egnn_forward.1} parent=1 // pred_check_branch
      %118 = sbr.rel (0) target = $region109
    $region108: #{egnn_forward.1} parent=1 // pred_region
      _
    $region109: #{egnn_forward.1} parent=1 // pred_fallthru
      _
    // Predicated region
    $region110: #{egnn_forward.1} parent=1 // pred_check
      _
    $region111: #{egnn_forward.1} parent=1 // pred_check_branch
      %120 = sbr.rel (0) target = $region113
    $region112: #{egnn_forward.1} parent=1 // pred_region
      _
    $region113: #{egnn_forward.1} parent=1 // pred_fallthru
      _
    // Predicated region
    $region114: #{egnn_forward.1} parent=1 // pred_check
      _
    $region115: #{egnn_forward.1} parent=1 // pred_check_branch
      %122 = sbr.rel (0) target = $region117
    $region116: #{egnn_forward.1} parent=1 // pred_region
      _
    $region117: #{egnn_forward.1} parent=1 // pred_fallthru
      _
    %v123 = vld [vmem:[%s5] sm:$0xff]
    %v124 = vld [vmem:[%s5 + $0x8] sm:$0xff]
    %v125 = vld [vmem:[%s5 + $0x10] sm:$0xff]
    %v126 = vld [vmem:[%s5 + $0x18] sm:$0xff]
    %v127 = vld [vmem:[%s5 + $0x20] sm:$0xff]
    %v128 = vld [vmem:[%s5 + $0x28] sm:$0xff]
    %v129 = vld [vmem:[%s7] sm:$0xff]
    %v130 = vld [vmem:[%s7 + $0x8] sm:$0xff]
    %v131 = vld [vmem:[%s7 + $0x10] sm:$0xff]
    %v132 = vld [vmem:[%s7 + $0x18] sm:$0xff]
    %v133 = vld [vmem:[%s7 + $0x20] sm:$0xff]
    %v134 = vld [vmem:[%s7 + $0x28] sm:$0xff]
    %v135 = vld [vmem:[%s9] sm:$0xff]
    %v136 = vld [vmem:[%s9 + $0x8] sm:$0xff]
    %v137 = vld [vmem:[%s3] sm:$0xff]
    %v138 = vld [vmem:[%s3 + $0x8] sm:$0xff]
    %vm139 = vcmask 130048
    %v141 = vsel %vm139, %v123, 0
    %v144 = vsel %vm139, %v124, 0
    %v147 = vsel %vm139, %v125, 0
    %v150 = vsel %vm139, %v126, 0
    %v153 = vsel %vm139, %v127, 0
    %v156 = vsel %vm139, %v128, 0
    %158 = vmatprep.subr.mxu0 0.0
    %159 = vmatpush1.msra.mxu0 %v137
    %160 = vmatprep.subr.mxu0 0.0
    %161 = vmatpush1.msra.mxu0 %v138
    %162 = vmatprep.subr.mxu0 0.0
    %163 = vmatpush1.msra.mxu0 0.0
    %164 = vmatprep.subr.mxu0 0.0
    %165 = vmatpush1.msra.mxu0 0.0
    %166 = vmatprep.subr.mxu0 0.0
    %167 = vmatpush1.msra.mxu0 0.0
    %168 = vmatprep.subr.mxu0 0.0
    %169 = vmatpush1.msra.mxu0 0.0
    %170 = vmatprep.subr.mxu0 0.0
    %171 = vmatpush1.msra.mxu0 0.0
    %172 = vmatprep.subr.mxu0 0.0
    %173 = vmatpush1.msra.mxu0 0.0
    %174 = vmatprep.subr.mxu0 0.0
    %175 = vmatpush1.msra.mxu0 0.0
    %176 = vmatprep.subr.mxu0 0.0
    %177 = vmatpush1.msra.mxu0 0.0
    %178 = vmatprep.subr.mxu0 0.0
    %179 = vmatpush1.msra.mxu0 0.0
    %180 = vmatprep.subr.mxu0 0.0
    %181 = vmatpush1.msra.mxu0 0.0
    %182 = vmatprep.subr.mxu0 0.0
    %183 = vmatpush1.msra.mxu0 0.0
    %184 = vmatprep.subr.mxu0 0.0
    %185 = vmatpush1.msra.mxu0 0.0
    %186 = vmatprep.subr.mxu0 0.0
    %187 = vmatpush1.msra.mxu0 0.0
    %188 = vmatprep.subr.mxu0 0.0
    %189 = vmatpush1.msra.mxu0 0.0
    %190 = vmatprep.subr.mxu0 0.0
    %191 = vmatpush1.msra.mxu0 0.0
    %192 = vmatprep.subr.mxu0 0.0
    %193 = vmatpush1.msra.mxu0 0.0
    %194 = vmatprep.subr.mxu0 0.0
    %195 = vmatpush1.msra.mxu0 0.0
    %196 = vmatprep.subr.mxu0 0.0
    %197 = vmatpush1.msra.mxu0 0.0
    %198 = vmatprep.subr.mxu0 0.0
    %199 = vmatpush1.msra.mxu0 0.0
    %200 = vmatprep.subr.mxu0 0.0
    %201 = vmatpush1.msra.mxu0 0.0
    %202 = vmatprep.subr.mxu0 0.0
    %203 = vmatpush1.msra.mxu0 0.0
    %204 = vmatprep.subr.mxu0 0.0
    %205 = vmatpush1.msra.mxu0 0.0
    %206 = vmatprep.subr.mxu0 0.0
    %207 = vmatpush1.msra.mxu0 0.0
    %208 = vmatprep.subr.mxu0 0.0
    %209 = vmatpush1.msra.mxu0 0.0
    %210 = vmatprep.subr.mxu0 0.0
    %211 = vmatpush1.msra.mxu0 0.0
    %212 = vmatprep.subr.mxu0 0.0
    %213 = vmatpush1.msra.mxu0 0.0
    %214 = vmatprep.subr.mxu0 0.0
    %215 = vmatpush1.msra.mxu0 0.0
    %216 = vmatprep.subr.mxu0 0.0
    %217 = vmatpush1.msra.mxu0 0.0
    %218 = vmatprep.subr.mxu0 0.0
    %219 = vmatpush1.msra.mxu0 0.0
    %220 = vmatprep.subr.mxu0 0.0
    %221 = vmatpush1.msra.mxu0 0.0
    %222 = vmatprep.mubr.f32.mxu0 0.0
    %223 = vmatmul.mubr.f32.gmra.mrb[0].mxu0 %v141
    %v224 = vpop.f32.mrb[0].mxu0
    %v225 = vadd.f32 0.0, %v224
    %v226 = vpop.f32.mrb[0].mxu0
    %227 = vmatprep.mubr.f32.mxu0 0.0
    %228 = vmatmul.mubr.f32.gmra.mrb[0].mxu0 %v144
    %v229 = vpop.f32.mrb[0].mxu0
    %v230 = vadd.f32 0.0, %v229
    %v231 = vpop.f32.mrb[0].mxu0
    %232 = vmatprep.mubr.f32.mxu0 0.0
    %233 = vmatmul.mubr.f32.gmra.mrb[0].mxu0 %v147
    %v234 = vpop.f32.mrb[0].mxu0
    %v235 = vadd.f32 0.0, %v234
    %v236 = vpop.f32.mrb[0].mxu0
    %237 = vmatprep.mubr.f32.mxu0 0.0
    %238 = vmatmul.mubr.f32.gmra.mrb[0].mxu0 %v150
    %v239 = vpop.f32.mrb[0].mxu0
    %v240 = vadd.f32 0.0, %v239
    %v241 = vpop.f32.mrb[0].mxu0
    %242 = vmatprep.mubr.f32.mxu0 0.0
    %243 = vmatmul.mubr.f32.gmra.mrb[0].mxu0 %v153
    %v244 = vpop.f32.mrb[0].mxu0
    %v245 = vadd.f32 0.0, %v244
    %v246 = vpop.f32.mrb[0].mxu0
    %247 = vmatprep.mubr.f32.mxu0 0.0
    %248 = vmatmul.mubr.f32.gmra.mrb[0].mxu0 %v156
    %v249 = vpop.f32.mrb[0].mxu0
    %v250 = vadd.f32 0.0, %v249
    %v251 = vpop.f32.mrb[0].mxu0
    %252 = vdwg.mxu0
    %v254 = vsel %vm139, %v129, 0
    %v257 = vsel %vm139, %v130, 0
    %v260 = vsel %vm139, %v131, 0
    %v263 = vsel %vm139, %v132, 0
    %v266 = vsel %vm139, %v133, 0
    %v269 = vsel %vm139, %v134, 0
    %271 = vmatprep.subr.mxu0 0.0
    %272 = vmatpush1.msra.mxu0 %v137
    %273 = vmatprep.subr.mxu0 0.0
    %274 = vmatpush1.msra.mxu0 %v138
    %275 = vmatprep.subr.mxu0 0.0
    %276 = vmatpush1.msra.mxu0 0.0
    %277 = vmatprep.subr.mxu0 0.0
    %278 = vmatpush1.msra.mxu0 0.0
    %279 = vmatprep.subr.mxu0 0.0
    %280 = vmatpush1.msra.mxu0 0.0
    %281 = vmatprep.subr.mxu0 0.0
    %282 = vmatpush1.msra.mxu0 0.0
    %283 = vmatprep.subr.mxu0 0.0
    %284 = vmatpush1.msra.mxu0 0.0
    %285 = vmatprep.subr.mxu0 0.0
    %286 = vmatpush1.msra.mxu0 0.0
    %287 = vmatprep.subr.mxu0 0.0
    %288 = vmatpush1.msra.mxu0 0.0
    %289 = vmatprep.subr.mxu0 0.0
    %290 = vmatpush1.msra.mxu0 0.0
    %291 = vmatprep.subr.mxu0 0.0
    %292 = vmatpush1.msra.mxu0 0.0
    %293 = vmatprep.subr.mxu0 0.0
    %294 = vmatpush1.msra.mxu0 0.0
    %295 = vmatprep.subr.mxu0 0.0
    %296 = vmatpush1.msra.mxu0 0.0
    %297 = vmatprep.subr.mxu0 0.0
    %298 = vmatpush1.msra.mxu0 0.0
    %299 = vmatprep.subr.mxu0 0.0
    %300 = vmatpush1.msra.mxu0 0.0
    %301 = vmatprep.subr.mxu0 0.0
    %302 = vmatpush1.msra.mxu0 0.0
    %303 = vmatprep.subr.mxu0 0.0
    %304 = vmatpush1.msra.mxu0 0.0
    %305 = vmatprep.subr.mxu0 0.0
    %306 = vmatpush1.msra.mxu0 0.0
    %307 = vmatprep.subr.mxu0 0.0
    %308 = vmatpush1.msra.mxu0 0.0
    %309 = vmatprep.subr.mxu0 0.0
    %310 = vmatpush1.msra.mxu0 0.0
    %311 = vmatprep.subr.mxu0 0.0
    %312 = vmatpush1.msra.mxu0 0.0
    %313 = vmatprep.subr.mxu0 0.0
    %314 = vmatpush1.msra.mxu0 0.0
    %315 = vmatprep.subr.mxu0 0.0
    %316 = vmatpush1.msra.mxu0 0.0
    %317 = vmatprep.subr.mxu0 0.0
    %318 = vmatpush1.msra.mxu0 0.0
    %319 = vmatprep.subr.mxu0 0.0
    %320 = vmatpush1.msra.mxu0 0.0
    %321 = vmatprep.subr.mxu0 0.0
    %322 = vmatpush1.msra.mxu0 0.0
    %323 = vmatprep.subr.mxu0 0.0
    %324 = vmatpush1.msra.mxu0 0.0
    %325 = vmatprep.subr.mxu0 0.0
    %326 = vmatpush1.msra.mxu0 0.0
    %327 = vmatprep.subr.mxu0 0.0
    %328 = vmatpush1.msra.mxu0 0.0
    %329 = vmatprep.subr.mxu0 0.0
    %330 = vmatpush1.msra.mxu0 0.0
    %331 = vmatprep.subr.mxu0 0.0
    %332 = vmatpush1.msra.mxu0 0.0
    %333 = vmatprep.subr.mxu0 0.0
    %334 = vmatpush1.msra.mxu0 0.0
    %335 = vmatprep.mubr.f32.mxu0 0.0
    %336 = vmatmul.mubr.f32.gmra.mrb[0].mxu0 %v254
    %v337 = vpop.f32.mrb[0].mxu0
    %v338 = vadd.f32 0.0, %v337
    %v339 = vpop.f32.mrb[0].mxu0
    %340 = vmatprep.mubr.f32.mxu0 0.0
    %341 = vmatmul.mubr.f32.gmra.mrb[0].mxu0 %v257
    %v342 = vpop.f32.mrb[0].mxu0
    %v343 = vadd.f32 0.0, %v342
    %v344 = vpop.f32.mrb[0].mxu0
    %345 = vmatprep.mubr.f32.mxu0 0.0
    %346 = vmatmul.mubr.f32.gmra.mrb[0].mxu0 %v260
    %v347 = vpop.f32.mrb[0].mxu0
    %v348 = vadd.f32 0.0, %v347
    %v349 = vpop.f32.mrb[0].mxu0
    %350 = vmatprep.mubr.f32.mxu0 0.0
    %351 = vmatmul.mubr.f32.gmra.mrb[0].mxu0 %v263
    %v352 = vpop.f32.mrb[0].mxu0
    %v353 = vadd.f32 0.0, %v352
    %v354 = vpop.f32.mrb[0].mxu0
    %355 = vmatprep.mubr.f32.mxu0 0.0
    %356 = vmatmul.mubr.f32.gmra.mrb[0].mxu0 %v266
    %v357 = vpop.f32.mrb[0].mxu0
    %v358 = vadd.f32 0.0, %v357
    %v359 = vpop.f32.mrb[0].mxu0
    %360 = vmatprep.mubr.f32.mxu0 0.0
    %361 = vmatmul.mubr.f32.gmra.mrb[0].mxu0 %v269
    %v362 = vpop.f32.mrb[0].mxu0
    %v363 = vadd.f32 0.0, %v362
    %v364 = vpop.f32.mrb[0].mxu0
    %365 = vdwg.mxu0
    %v366 = vsub.f32 %v225, %v338
    %v367 = vsub.f32 %v230, %v343
    %v368 = vsub.f32 %v235, %v348
    %v369 = vsub.f32 %v240, %v353
    %v370 = vsub.f32 %v245, %v358
    %v371 = vsub.f32 %v250, %v363
    %v372 = vmul.f32 %v366, %v366
    %v373 = vmul.f32 %v367, %v367
    %v374 = vmul.f32 %v368, %v368
    %v375 = vmul.f32 %v369, %v369
    %v376 = vmul.f32 %v370, %v370
    %v377 = vmul.f32 %v371, %v371
    %vm378 = vcmask 23552
    %v379 = vsel %vm378, %v372, 0.0
    %380 = vadd.xlane.f32.xlu0 %v379
    %v381 = vpop.xlane.xlu0 %380
    %v382 = vsel %vm378, %v373, 0.0
    %383 = vadd.xlane.f32.xlu0 %v382
    %v384 = vpop.xlane.xlu0 %383
    %v385 = vsel %vm378, %v374, 0.0
    %386 = vadd.xlane.f32.xlu0 %v385
    %v387 = vpop.xlane.xlu0 %386
    %v388 = vsel %vm378, %v375, 0.0
    %389 = vadd.xlane.f32.xlu0 %v388
    %v390 = vpop.xlane.xlu0 %389
    %v391 = vsel %vm378, %v376, 0.0
    %392 = vadd.xlane.f32.xlu0 %v391
    %v393 = vpop.xlane.xlu0 %392
    %v394 = vsel %vm378, %v377, 0.0
    %395 = vadd.xlane.f32.xlu0 %v394
    %v396 = vpop.xlane.xlu0 %395
    %v397 = vrsqrt.pop %v381
    %v398 = vmul.f32 %v381, %v397
    %vm399 = vcmp.eq.f32.partialorder %v381, inf
    %v400 = vsel %vm399, %v381, %v398
    %vm401 = vcmp.eq.f32.partialorder %v381, 0.0
    %v402 = vand.u32 %v381, 2147483648
    %v403 = vsel %vm401, %v402, %v400
    %v404 = vrsqrt.pop %v384
    %v405 = vmul.f32 %v384, %v404
    %vm406 = vcmp.eq.f32.partialorder %v384, inf
    %v407 = vsel %vm406, %v384, %v405
    %vm408 = vcmp.eq.f32.partialorder %v384, 0.0
    %v409 = vand.u32 %v384, 2147483648
    %v410 = vsel %vm408, %v409, %v407
    %v411 = vrsqrt.pop %v387
    %v412 = vmul.f32 %v387, %v411
    %vm413 = vcmp.eq.f32.partialorder %v387, inf
    %v414 = vsel %vm413, %v387, %v412
    %vm415 = vcmp.eq.f32.partialorder %v387, 0.0
    %v416 = vand.u32 %v387, 2147483648
    %v417 = vsel %vm415, %v416, %v414
    %v418 = vrsqrt.pop %v390
    %v419 = vmul.f32 %v390, %v418
    %vm420 = vcmp.eq.f32.partialorder %v390, inf
    %v421 = vsel %vm420, %v390, %v419
    %vm422 = vcmp.eq.f32.partialorder %v390, 0.0
    %v423 = vand.u32 %v390, 2147483648
    %v424 = vsel %vm422, %v423, %v421
    %v425 = vrsqrt.pop %v393
    %v426 = vmul.f32 %v393, %v425
    %vm427 = vcmp.eq.f32.partialorder %v393, inf
    %v428 = vsel %vm427, %v393, %v426
    %vm429 = vcmp.eq.f32.partialorder %v393, 0.0
    %v430 = vand.u32 %v393, 2147483648
    %v431 = vsel %vm429, %v430, %v428
    %v432 = vrsqrt.pop %v396
    %v433 = vmul.f32 %v396, %v432
    %vm434 = vcmp.eq.f32.partialorder %v396, inf
    %v435 = vsel %vm434, %v396, %v433
    %vm436 = vcmp.eq.f32.partialorder %v396, 0.0
    %v437 = vand.u32 %v396, 2147483648
    %v438 = vsel %vm436, %v437, %v435
    %v439 = vld [vmem:[%s1] sm:$0xff]
    %v440 = vld [vmem:[%s1 + $0x8] sm:$0xff]
    %v441 = vld [vmem:[%s13] sm:$0xff]
    %v442 = vld [vmem:[%s13 + $0x8] sm:$0xff]
    %v443 = vld [vmem:[%s13 + $0x10] sm:$0xff]
    %v444 = vld [vmem:[%s13 + $0x18] sm:$0xff]
    %v445 = vld [vmem:[%s13 + $0x20] sm:$0xff]
    %v446 = vld [vmem:[%s13 + $0x28] sm:$0xff]
    %v447 = vld [vmem:[%s13 + $0x30] sm:$0xff]
    %v448 = vld [vmem:[%s13 + $0x38] sm:$0xff]
    %v449 = vld [vmem:[%s13 + $0x40] sm:$0xff]
    %v450 = vld [vmem:[%s13 + $0x48] sm:$0xff]
    %v451 = vld [vmem:[%s13 + $0x50] sm:$0xff]
    %v452 = vld [vmem:[%s13 + $0x58] sm:$0xff]
    %v453 = vld [vmem:[%s13 + $0x60] sm:$0xff]
    %v454 = vld [vmem:[%s13 + $0x68] sm:$0xff]
    %v455 = vld [vmem:[%s13 + $0x70] sm:$0xff]
    %v456 = vld [vmem:[%s13 + $0x78] sm:$0xff]
    %v457 = vld [vmem:[%s15] sm:$0x1]
    %v459 = vlaneseq
    %v460 = vshrl.u32 %v459, 7
    %v461 = vsub.s32 0, %v460
    %v462 = vrot.slane %v457, %v461
    %464 = vmatprep.subr.mxu0 0.0
    %465 = vmatpush1.msra.mxu0 %v441
    %466 = vmatprep.subr.mxu0 0.0
    %467 = vmatpush1.msra.mxu0 %v442
    %468 = vmatprep.subr.mxu0 0.0
    %469 = vmatpush1.msra.mxu0 %v443
    %470 = vmatprep.subr.mxu0 0.0
    %471 = vmatpush1.msra.mxu0 %v444
    %472 = vmatprep.subr.mxu0 0.0
    %473 = vmatpush1.msra.mxu0 %v445
    %474 = vmatprep.subr.mxu0 0.0
    %475 = vmatpush1.msra.mxu0 %v446
    %476 = vmatprep.subr.mxu0 0.0
    %477 = vmatpush1.msra.mxu0 %v447
    %478 = vmatprep.subr.mxu0 0.0
    %479 = vmatpush1.msra.mxu0 %v448
    %480 = vmatprep.subr.mxu0 0.0
    %481 = vmatpush1.msra.mxu0 %v449
    %482 = vmatprep.subr.mxu0 0.0
    %483 = vmatpush1.msra.mxu0 %v450
    %484 = vmatprep.subr.mxu0 0.0
    %485 = vmatpush1.msra.mxu0 %v451
    %486 = vmatprep.subr.mxu0 0.0
    %487 = vmatpush1.msra.mxu0 %v452
    %488 = vmatprep.subr.mxu0 0.0
    %489 = vmatpush1.msra.mxu0 %v453
    %490 = vmatprep.subr.mxu0 0.0
    %491 = vmatpush1.msra.mxu0 %v454
    %492 = vmatprep.subr.mxu0 0.0
    %493 = vmatpush1.msra.mxu0 %v455
    %494 = vmatprep.subr.mxu0 0.0
    %495 = vmatpush1.msra.mxu0 %v456
    %496 = vmatprep.subr.mxu0 0.0
    %497 = vmatpush1.msra.mxu0 0.0
    %498 = vmatprep.subr.mxu0 0.0
    %499 = vmatpush1.msra.mxu0 0.0
    %500 = vmatprep.subr.mxu0 0.0
    %501 = vmatpush1.msra.mxu0 0.0
    %502 = vmatprep.subr.mxu0 0.0
    %503 = vmatpush1.msra.mxu0 0.0
    %504 = vmatprep.subr.mxu0 0.0
    %505 = vmatpush1.msra.mxu0 0.0
    %506 = vmatprep.subr.mxu0 0.0
    %507 = vmatpush1.msra.mxu0 0.0
    %508 = vmatprep.subr.mxu0 0.0
    %509 = vmatpush1.msra.mxu0 0.0
    %510 = vmatprep.subr.mxu0 0.0
    %511 = vmatpush1.msra.mxu0 0.0
    %512 = vmatprep.subr.mxu0 0.0
    %513 = vmatpush1.msra.mxu0 0.0
    %514 = vmatprep.subr.mxu0 0.0
    %515 = vmatpush1.msra.mxu0 0.0
    %516 = vmatprep.subr.mxu0 0.0
    %517 = vmatpush1.msra.mxu0 0.0
    %518 = vmatprep.subr.mxu0 0.0
    %519 = vmatpush1.msra.mxu0 0.0
    %520 = vmatprep.subr.mxu0 0.0
    %521 = vmatpush1.msra.mxu0 0.0
    %522 = vmatprep.subr.mxu0 0.0
    %523 = vmatpush1.msra.mxu0 0.0
    %524 = vmatprep.subr.mxu0 0.0
    %525 = vmatpush1.msra.mxu0 0.0
    %526 = vmatprep.subr.mxu0 0.0
    %527 = vmatpush1.msra.mxu0 0.0
    %528 = vmatprep.mubr.f32.mxu0 0.0
    %529 = vmatmul.mubr.f32.gmra.mrb[0].mxu0 %v439
    %v530 = vpop.f32.mrb[0].mxu0
    %v531 = vadd.f32 %v462, %v530
    %v532 = vpop.f32.mrb[0].mxu0
    %533 = vmatprep.mubr.f32.mxu0 0.0
    %534 = vmatmul.mubr.f32.gmra.mrb[0].mxu0 %v440
    %v535 = vpop.f32.mrb[0].mxu0
    %v536 = vadd.f32 %v462, %v535
    %v537 = vpop.f32.mrb[0].mxu0
    %538 = vdwg.mxu0
    %v539 = vxor.u32 %v531, 2147483648
    %v540 = vxor.u32 %v536, 2147483648
    %v541 = vmul.f32 %v539, 1.442695
    %v542 = vpow.pop %v541
    %v543 = vmul.f32 %v540, 1.442695
    %v544 = vpow.pop %v543
    %v545 = vadd.f32 %v542, 1.0
    %v546 = vadd.f32 %v544, 1.0
    %v547 = vrcp.pop %v545
    %v548 = vmul.f32 1.0, %v547
    %v549 = vrcp.pop %v546
    %v550 = vmul.f32 1.0, %v549
    %v551 = vmul.f32 %v531, %v548
    %v552 = vmul.f32 %v536, %v550
    %v553 = vld [vmem:[%s17] sm:$0xff]
    %v554 = vld [vmem:[%s17 + $0x8] sm:$0xff]
    %v555 = vld [vmem:[%s17 + $0x10] sm:$0xff]
    %v556 = vld [vmem:[%s17 + $0x18] sm:$0xff]
    %v557 = vld [vmem:[%s17 + $0x20] sm:$0xff]
    %v558 = vld [vmem:[%s17 + $0x28] sm:$0xff]
    %v559 = vld [vmem:[%s17 + $0x30] sm:$0xff]
    %v560 = vld [vmem:[%s17 + $0x38] sm:$0xff]
    %v561 = vld [vmem:[%s17 + $0x40] sm:$0xff]
    %v562 = vld [vmem:[%s17 + $0x48] sm:$0xff]
    %v563 = vld [vmem:[%s17 + $0x50] sm:$0xff]
    %v564 = vld [vmem:[%s17 + $0x58] sm:$0xff]
    %v565 = vld [vmem:[%s17 + $0x60] sm:$0xff]
    %v566 = vld [vmem:[%s17 + $0x68] sm:$0xff]
    %v567 = vld [vmem:[%s17 + $0x70] sm:$0xff]
    %v568 = vld [vmem:[%s17 + $0x78] sm:$0xff]
    %v569 = vld [vmem:[%s19] sm:$0x1]
    %v571 = vlaneseq
    %v572 = vshrl.u32 %v571, 7
    %v573 = vsub.s32 0, %v572
    %v574 = vrot.slane %v569, %v573
    %576 = vmatprep.subr.mxu0 0.0
    %577 = vmatpush1.msra.mxu0 %v553
    %578 = vmatprep.subr.mxu0 0.0
    %579 = vmatpush1.msra.mxu0 %v554
    %580 = vmatprep.subr.mxu0 0.0
    %581 = vmatpush1.msra.mxu0 %v555
    %582 = vmatprep.subr.mxu0 0.0
    %583 = vmatpush1.msra.mxu0 %v556
    %584 = vmatprep.subr.mxu0 0.0
    %585 = vmatpush1.msra.mxu0 %v557
    %586 = vmatprep.subr.mxu0 0.0
    %587 = vmatpush1.msra.mxu0 %v558
    %588 = vmatprep.subr.mxu0 0.0
    %589 = vmatpush1.msra.mxu0 %v559
    %590 = vmatprep.subr.mxu0 0.0
    %591 = vmatpush1.msra.mxu0 %v560
    %592 = vmatprep.subr.mxu0 0.0
    %593 = vmatpush1.msra.mxu0 %v561
    %594 = vmatprep.subr.mxu0 0.0
    %595 = vmatpush1.msra.mxu0 %v562
    %596 = vmatprep.subr.mxu0 0.0
    %597 = vmatpush1.msra.mxu0 %v563
    %598 = vmatprep.subr.mxu0 0.0
    %599 = vmatpush1.msra.mxu0 %v564
    %600 = vmatprep.subr.mxu0 0.0
    %601 = vmatpush1.msra.mxu0 %v565
    %602 = vmatprep.subr.mxu0 0.0
    %603 = vmatpush1.msra.mxu0 %v566
    %604 = vmatprep.subr.mxu0 0.0
    %605 = vmatpush1.msra.mxu0 %v567
    %606 = vmatprep.subr.mxu0 0.0
    %607 = vmatpush1.msra.mxu0 %v568
    %608 = vmatprep.subr.mxu0 0.0
    %609 = vmatpush1.msra.mxu0 0.0
    %610 = vmatprep.subr.mxu0 0.0
    %611 = vmatpush1.msra.mxu0 0.0
    %612 = vmatprep.subr.mxu0 0.0
    %613 = vmatpush1.msra.mxu0 0.0
    %614 = vmatprep.subr.mxu0 0.0
    %615 = vmatpush1.msra.mxu0 0.0
    %616 = vmatprep.subr.mxu0 0.0
    %617 = vmatpush1.msra.mxu0 0.0
    %618 = vmatprep.subr.mxu0 0.0
    %619 = vmatpush1.msra.mxu0 0.0
    %620 = vmatprep.subr.mxu0 0.0
    %621 = vmatpush1.msra.mxu0 0.0
    %622 = vmatprep.subr.mxu0 0.0
    %623 = vmatpush1.msra.mxu0 0.0
    %624 = vmatprep.subr.mxu0 0.0
    %625 = vmatpush1.msra.mxu0 0.0
    %626 = vmatprep.subr.mxu0 0.0
    %627 = vmatpush1.msra.mxu0 0.0
    %628 = vmatprep.subr.mxu0 0.0
    %629 = vmatpush1.msra.mxu0 0.0
    %630 = vmatprep.subr.mxu0 0.0
    %631 = vmatpush1.msra.mxu0 0.0
    %632 = vmatprep.subr.mxu0 0.0
    %633 = vmatpush1.msra.mxu0 0.0
    %634 = vmatprep.subr.mxu0 0.0
    %635 = vmatpush1.msra.mxu0 0.0
    %636 = vmatprep.subr.mxu0 0.0
    %637 = vmatpush1.msra.mxu0 0.0
    %638 = vmatprep.subr.mxu0 0.0
    %639 = vmatpush1.msra.mxu0 0.0
    %640 = vmatprep.mubr.f32.mxu0 0.0
    %641 = vmatmul.mubr.f32.gmra.mrb[0].mxu0 %v551
    %v642 = vpop.f32.mrb[0].mxu0
    %v643 = vadd.f32 %v574, %v642
    %v644 = vpop.f32.mrb[0].mxu0
    %645 = vmatprep.mubr.f32.mxu0 0.0
    %646 = vmatmul.mubr.f32.gmra.mrb[0].mxu0 %v552
    %v647 = vpop.f32.mrb[0].mxu0
    %v648 = vadd.f32 %v574, %v647
    %v649 = vpop.f32.mrb[0].mxu0
    %650 = vdwg.mxu0
    %651 = vst [vmem:[#allocation2] sm:$0xff] %v643
    %652 = vst [vmem:[#allocation2 + $0x8] sm:$0xff] %v648
    %v653 = vld [vmem:[#allocation2] sm:$0xff]
    %v654 = vld [vmem:[#allocation2 + $0x8] sm:$0xff]
    %v655 = vld [vmem:[%s21] sm:$0xff]
    %v656 = vld [vmem:[%s21 + $0x8] sm:$0xff]
    %v657 = vld [vmem:[%s21 + $0x10] sm:$0xff]
    %v658 = vld [vmem:[%s21 + $0x18] sm:$0xff]
    %v659 = vld [vmem:[%s21 + $0x20] sm:$0xff]
    %v660 = vld [vmem:[%s21 + $0x28] sm:$0xff]
    %v661 = vld [vmem:[%s21 + $0x30] sm:$0xff]
    %v662 = vld [vmem:[%s21 + $0x38] sm:$0xff]
    %v663 = vld [vmem:[%s21 + $0x40] sm:$0xff]
    %v664 = vld [vmem:[%s21 + $0x48] sm:$0xff]
    %v665 = vld [vmem:[%s21 + $0x50] sm:$0xff]
    %v666 = vld [vmem:[%s21 + $0x58] sm:$0xff]
    %v667 = vld [vmem:[%s21 + $0x60] sm:$0xff]
    %v668 = vld [vmem:[%s21 + $0x68] sm:$0xff]
    %v669 = vld [vmem:[%s21 + $0x70] sm:$0xff]
    %v670 = vld [vmem:[%s21 + $0x78] sm:$0xff]
    %671 = vmatprep.subr.mxu0 0.0
    %672 = vmatpush1.msra.mxu0 %v655
    %673 = vmatprep.subr.mxu0 0.0
    %674 = vmatpush1.msra.mxu0 %v656
    %675 = vmatprep.subr.mxu0 0.0
    %676 = vmatpush1.msra.mxu0 %v657
    %677 = vmatprep.subr.mxu0 0.0
    %678 = vmatpush1.msra.mxu0 %v658
    %679 = vmatprep.subr.mxu0 0.0
    %680 = vmatpush1.msra.mxu0 %v659
    %681 = vmatprep.subr.mxu0 0.0
    %682 = vmatpush1.msra.mxu0 %v660
    %683 = vmatprep.subr.mxu0 0.0
    %684 = vmatpush1.msra.mxu0 %v661
    %685 = vmatprep.subr.mxu0 0.0
    %686 = vmatpush1.msra.mxu0 %v662
    %687 = vmatprep.subr.mxu0 0.0
    %688 = vmatpush1.msra.mxu0 %v663
    %689 = vmatprep.subr.mxu0 0.0
    %690 = vmatpush1.msra.mxu0 %v664
    %691 = vmatprep.subr.mxu0 0.0
    %692 = vmatpush1.msra.mxu0 %v665
    %693 = vmatprep.subr.mxu0 0.0
    %694 = vmatpush1.msra.mxu0 %v666
    %695 = vmatprep.subr.mxu0 0.0
    %696 = vmatpush1.msra.mxu0 %v667
    %697 = vmatprep.subr.mxu0 0.0
    %698 = vmatpush1.msra.mxu0 %v668
    %699 = vmatprep.subr.mxu0 0.0
    %700 = vmatpush1.msra.mxu0 %v669
    %701 = vmatprep.subr.mxu0 0.0
    %702 = vmatpush1.msra.mxu0 %v670
    %703 = vmatprep.subr.mxu0 0.0
    %704 = vmatpush1.msra.mxu0 0.0
    %705 = vmatprep.subr.mxu0 0.0
    %706 = vmatpush1.msra.mxu0 0.0
    %707 = vmatprep.subr.mxu0 0.0
    %708 = vmatpush1.msra.mxu0 0.0
    %709 = vmatprep.subr.mxu0 0.0
    %710 = vmatpush1.msra.mxu0 0.0
    %711 = vmatprep.subr.mxu0 0.0
    %712 = vmatpush1.msra.mxu0 0.0
    %713 = vmatprep.subr.mxu0 0.0
    %714 = vmatpush1.msra.mxu0 0.0
    %715 = vmatprep.subr.mxu0 0.0
    %716 = vmatpush1.msra.mxu0 0.0
    %717 = vmatprep.subr.mxu0 0.0
    %718 = vmatpush1.msra.mxu0 0.0
    %719 = vmatprep.subr.mxu0 0.0
    %720 = vmatpush1.msra.mxu0 0.0
    %721 = vmatprep.subr.mxu0 0.0
    %722 = vmatpush1.msra.mxu0 0.0
    %723 = vmatprep.subr.mxu0 0.0
    %724 = vmatpush1.msra.mxu0 0.0
    %725 = vmatprep.subr.mxu0 0.0
    %726 = vmatpush1.msra.mxu0 0.0
    %727 = vmatprep.subr.mxu0 0.0
    %728 = vmatpush1.msra.mxu0 0.0
    %729 = vmatprep.subr.mxu0 0.0
    %730 = vmatpush1.msra.mxu0 0.0
    %731 = vmatprep.subr.mxu0 0.0
    %732 = vmatpush1.msra.mxu0 0.0
    %733 = vmatprep.subr.mxu0 0.0
    %734 = vmatpush1.msra.mxu0 0.0
    %735 = vmatprep.mubr.f32.mxu0 0.0
    %736 = vmatmul.mubr.f32.gmra.mrb[0].mxu0 %v653
    %v737 = vpop.f32.mrb[0].mxu0
    %v738 = vadd.f32 0.0, %v737
    %v739 = vpop.f32.mrb[0].mxu0
    %740 = vmatprep.mubr.f32.mxu0 0.0
    %741 = vmatmul.mubr.f32.gmra.mrb[0].mxu0 %v654
    %v742 = vpop.f32.mrb[0].mxu0
    %v743 = vadd.f32 0.0, %v742
    %v744 = vpop.f32.mrb[0].mxu0
    %745 = vdwg.mxu0
    %v746 = vld [vmem:[%s23] sm:$0xff]
    %v747 = vld [vmem:[%s23 + $0x8] sm:$0xff]
    %v748 = vld [vmem:[%s23 + $0x10] sm:$0xff]
    %v749 = vld [vmem:[%s23 + $0x18] sm:$0xff]
    %v750 = vld [vmem:[%s23 + $0x20] sm:$0xff]
    %v751 = vld [vmem:[%s23 + $0x28] sm:$0xff]
    %v752 = vld [vmem:[%s23 + $0x30] sm:$0xff]
    %v753 = vld [vmem:[%s23 + $0x38] sm:$0xff]
    %v754 = vld [vmem:[%s23 + $0x40] sm:$0xff]
    %v755 = vld [vmem:[%s23 + $0x48] sm:$0xff]
    %v756 = vld [vmem:[%s23 + $0x50] sm:$0xff]
    %v757 = vld [vmem:[%s23 + $0x58] sm:$0xff]
    %v758 = vld [vmem:[%s23 + $0x60] sm:$0xff]
    %v759 = vld [vmem:[%s23 + $0x68] sm:$0xff]
    %v760 = vld [vmem:[%s23 + $0x70] sm:$0xff]
    %v761 = vld [vmem:[%s23 + $0x78] sm:$0xff]
    %762 = vmatprep.subr.mxu0 0.0
    %763 = vmatpush1.msra.mxu0 %v746
    %764 = vmatprep.subr.mxu0 0.0
    %765 = vmatpush1.msra.mxu0 %v747
    %766 = vmatprep.subr.mxu0 0.0
    %767 = vmatpush1.msra.mxu0 %v748
    %768 = vmatprep.subr.mxu0 0.0
    %769 = vmatpush1.msra.mxu0 %v749
    %770 = vmatprep.subr.mxu0 0.0
    %771 = vmatpush1.msra.mxu0 %v750
    %772 = vmatprep.subr.mxu0 0.0
    %773 = vmatpush1.msra.mxu0 %v751
    %774 = vmatprep.subr.mxu0 0.0
    %775 = vmatpush1.msra.mxu0 %v752
    %776 = vmatprep.subr.mxu0 0.0
    %777 = vmatpush1.msra.mxu0 %v753
    %778 = vmatprep.subr.mxu0 0.0
    %779 = vmatpush1.msra.mxu0 %v754
    %780 = vmatprep.subr.mxu0 0.0
    %781 = vmatpush1.msra.mxu0 %v755
    %782 = vmatprep.subr.mxu0 0.0
    %783 = vmatpush1.msra.mxu0 %v756
    %784 = vmatprep.subr.mxu0 0.0
    %785 = vmatpush1.msra.mxu0 %v757
    %786 = vmatprep.subr.mxu0 0.0
    %787 = vmatpush1.msra.mxu0 %v758
    %788 = vmatprep.subr.mxu0 0.0
    %789 = vmatpush1.msra.mxu0 %v759
    %790 = vmatprep.subr.mxu0 0.0
    %791 = vmatpush1.msra.mxu0 %v760
    %792 = vmatprep.subr.mxu0 0.0
    %793 = vmatpush1.msra.mxu0 %v761
    %794 = vmatprep.subr.mxu0 0.0
    %795 = vmatpush1.msra.mxu0 0.0
    %796 = vmatprep.subr.mxu0 0.0
    %797 = vmatpush1.msra.mxu0 0.0
    %798 = vmatprep.subr.mxu0 0.0
    %799 = vmatpush1.msra.mxu0 0.0
    %800 = vmatprep.subr.mxu0 0.0
    %801 = vmatpush1.msra.mxu0 0.0
    %802 = vmatprep.subr.mxu0 0.0
    %803 = vmatpush1.msra.mxu0 0.0
    %804 = vmatprep.subr.mxu0 0.0
    %805 = vmatpush1.msra.mxu0 0.0
    %806 = vmatprep.subr.mxu0 0.0
    %807 = vmatpush1.msra.mxu0 0.0
    %808 = vmatprep.subr.mxu0 0.0
    %809 = vmatpush1.msra.mxu0 0.0
    %810 = vmatprep.subr.mxu0 0.0
    %811 = vmatpush1.msra.mxu0 0.0
    %812 = vmatprep.subr.mxu0 0.0
    %813 = vmatpush1.msra.mxu0 0.0
    %814 = vmatprep.subr.mxu0 0.0
    %815 = vmatpush1.msra.mxu0 0.0
    %816 = vmatprep.subr.mxu0 0.0
    %817 = vmatpush1.msra.mxu0 0.0
    %818 = vmatprep.subr.mxu0 0.0
    %819 = vmatpush1.msra.mxu0 0.0
    %820 = vmatprep.subr.mxu0 0.0
    %821 = vmatpush1.msra.mxu0 0.0
    %822 = vmatprep.subr.mxu0 0.0
    %823 = vmatpush1.msra.mxu0 0.0
    %824 = vmatprep.subr.mxu0 0.0
    %825 = vmatpush1.msra.mxu0 0.0
    %826 = vmatprep.mubr.f32.mxu0 0.0
    %827 = vmatmul.mubr.f32.gmra.mrb[0].mxu0 %v653
    %v828 = vpop.f32.mrb[0].mxu0
    %v829 = vadd.f32 0.0, %v828
    %v830 = vpop.f32.mrb[0].mxu0
    %831 = vmatprep.mubr.f32.mxu0 0.0
    %832 = vmatmul.mubr.f32.gmra.mrb[0].mxu0 %v654
    %v833 = vpop.f32.mrb[0].mxu0
    %v834 = vadd.f32 0.0, %v833
    %v835 = vpop.f32.mrb[0].mxu0
    %836 = vdwg.mxu0
    %837 = vmatprep.subr.mxu0 0.0
    %838 = vmatpush1.msra.mxu0 %v829
    %839 = vmatprep.subr.mxu0 0.0
    %840 = vmatpush1.msra.mxu0 %v834
    %841 = vmatprep.subr.mxu0 0.0
    %842 = vmatpush1.msra.mxu0 0.0
    %843 = vmatprep.subr.mxu0 0.0
    %844 = vmatpush1.msra.mxu0 0.0
    %845 = vmatprep.subr.mxu0 0.0
    %846 = vmatpush1.msra.mxu0 0.0
    %847 = vmatprep.subr.mxu0 0.0
    %848 = vmatpush1.msra.mxu0 0.0
    %849 = vmatprep.subr.mxu0 0.0
    %850 = vmatpush1.msra.mxu0 0.0
    %851 = vmatprep.subr.mxu0 0.0
    %852 = vmatpush1.msra.mxu0 0.0
    %853 = vmatprep.subr.mxu0 0.0
    %854 = vmatpush1.msra.mxu0 0.0
    %855 = vmatprep.subr.mxu0 0.0
    %856 = vmatpush1.msra.mxu0 0.0
    %857 = vmatprep.subr.mxu0 0.0
    %858 = vmatpush1.msra.mxu0 0.0
    %859 = vmatprep.subr.mxu0 0.0
    %860 = vmatpush1.msra.mxu0 0.0
    %861 = vmatprep.subr.mxu0 0.0
    %862 = vmatpush1.msra.mxu0 0.0
    %863 = vmatprep.subr.mxu0 0.0
    %864 = vmatpush1.msra.mxu0 0.0
    %865 = vmatprep.subr.mxu0 0.0
    %866 = vmatpush1.msra.mxu0 0.0
    %867 = vmatprep.subr.mxu0 0.0
    %868 = vmatpush1.msra.mxu0 0.0
    %869 = vmatprep.subr.mxu0 0.0
    %870 = vmatpush1.msra.mxu0 0.0
    %871 = vmatprep.subr.mxu0 0.0
    %872 = vmatpush1.msra.mxu0 0.0
    %873 = vmatprep.subr.mxu0 0.0
    %874 = vmatpush1.msra.mxu0 0.0
    %875 = vmatprep.subr.mxu0 0.0
    %876 = vmatpush1.msra.mxu0 0.0
    %877 = vmatprep.subr.mxu0 0.0
    %878 = vmatpush1.msra.mxu0 0.0
    %879 = vmatprep.subr.mxu0 0.0
    %880 = vmatpush1.msra.mxu0 0.0
    %881 = vmatprep.subr.mxu0 0.0
    %882 = vmatpush1.msra.mxu0 0.0
    %883 = vmatprep.subr.mxu0 0.0
    %884 = vmatpush1.msra.mxu0 0.0
    %885 = vmatprep.subr.mxu0 0.0
    %886 = vmatpush1.msra.mxu0 0.0
    %887 = vmatprep.subr.mxu0 0.0
    %888 = vmatpush1.msra.mxu0 0.0
    %889 = vmatprep.subr.mxu0 0.0
    %890 = vmatpush1.msra.mxu0 0.0
    %891 = vmatprep.subr.mxu0 0.0
    %892 = vmatpush1.msra.mxu0 0.0
    %893 = vmatprep.subr.mxu0 0.0
    %894 = vmatpush1.msra.mxu0 0.0
    %895 = vmatprep.subr.mxu0 0.0
    %896 = vmatpush1.msra.mxu0 0.0
    %897 = vmatprep.subr.mxu0 0.0
    %898 = vmatpush1.msra.mxu0 0.0
    %899 = vmatprep.subr.mxu0 0.0
    %900 = vmatpush1.msra.mxu0 0.0
    %901 = vmatprep.mubr.f32.mxu0 0.0
    %902 = vmatmul.mubr.f32.gmra.mrb[0].mxu0 %v254
    %v903 = vpop.f32.mrb[0].mxu0
    %v904 = vadd.f32 0.0, %v903
    %v905 = vpop.f32.mrb[0].mxu0
    %906 = vmatprep.mubr.f32.mxu0 0.0
    %907 = vmatmul.mubr.f32.gmra.mrb[0].mxu0 %v257
    %v908 = vpop.f32.mrb[0].mxu0
    %v909 = vadd.f32 0.0, %v908
    %v910 = vpop.f32.mrb[0].mxu0
    %911 = vmatprep.mubr.f32.mxu0 0.0
    %912 = vmatmul.mubr.f32.gmra.mrb[0].mxu0 %v260
    %v913 = vpop.f32.mrb[0].mxu0
    %v914 = vadd.f32 0.0, %v913
    %v915 = vpop.f32.mrb[0].mxu0
    %916 = vmatprep.mubr.f32.mxu0 0.0
    %917 = vmatmul.mubr.f32.gmra.mrb[0].mxu0 %v263
    %v918 = vpop.f32.mrb[0].mxu0
    %v919 = vadd.f32 0.0, %v918
    %v920 = vpop.f32.mrb[0].mxu0
    %921 = vmatprep.mubr.f32.mxu0 0.0
    %922 = vmatmul.mubr.f32.gmra.mrb[0].mxu0 %v266
    %v923 = vpop.f32.mrb[0].mxu0
    %v924 = vadd.f32 0.0, %v923
    %v925 = vpop.f32.mrb[0].mxu0
    %926 = vmatprep.mubr.f32.mxu0 0.0
    %927 = vmatmul.mubr.f32.gmra.mrb[0].mxu0 %v269
    %v928 = vpop.f32.mrb[0].mxu0
    %v929 = vadd.f32 0.0, %v928
    %v930 = vpop.f32.mrb[0].mxu0
    %931 = vdwg.mxu0
    %932 = vmatprep.subr.mxu0 0.0
    %933 = vmatpush1.msra.mxu0 %v738
    %934 = vmatprep.subr.mxu0 0.0
    %935 = vmatpush1.msra.mxu0 %v743
    %936 = vmatprep.subr.mxu0 0.0
    %937 = vmatpush1.msra.mxu0 0.0
    %938 = vmatprep.subr.mxu0 0.0
    %939 = vmatpush1.msra.mxu0 0.0
    %940 = vmatprep.subr.mxu0 0.0
    %941 = vmatpush1.msra.mxu0 0.0
    %942 = vmatprep.subr.mxu0 0.0
    %943 = vmatpush1.msra.mxu0 0.0
    %944 = vmatprep.subr.mxu0 0.0
    %945 = vmatpush1.msra.mxu0 0.0
    %946 = vmatprep.subr.mxu0 0.0
    %947 = vmatpush1.msra.mxu0 0.0
    %948 = vmatprep.subr.mxu0 0.0
    %949 = vmatpush1.msra.mxu0 0.0
    %950 = vmatprep.subr.mxu0 0.0
    %951 = vmatpush1.msra.mxu0 0.0
    %952 = vmatprep.subr.mxu0 0.0
    %953 = vmatpush1.msra.mxu0 0.0
    %954 = vmatprep.subr.mxu0 0.0
    %955 = vmatpush1.msra.mxu0 0.0
    %956 = vmatprep.subr.mxu0 0.0
    %957 = vmatpush1.msra.mxu0 0.0
    %958 = vmatprep.subr.mxu0 0.0
    %959 = vmatpush1.msra.mxu0 0.0
    %960 = vmatprep.subr.mxu0 0.0
    %961 = vmatpush1.msra.mxu0 0.0
    %962 = vmatprep.subr.mxu0 0.0
    %963 = vmatpush1.msra.mxu0 0.0
    %964 = vmatprep.subr.mxu0 0.0
    %965 = vmatpush1.msra.mxu0 0.0
    %966 = vmatprep.subr.mxu0 0.0
    %967 = vmatpush1.msra.mxu0 0.0
    %968 = vmatprep.subr.mxu0 0.0
    %969 = vmatpush1.msra.mxu0 0.0
    %970 = vmatprep.subr.mxu0 0.0
    %971 = vmatpush1.msra.mxu0 0.0
    %972 = vmatprep.subr.mxu0 0.0
    %973 = vmatpush1.msra.mxu0 0.0
    %974 = vmatprep.subr.mxu0 0.0
    %975 = vmatpush1.msra.mxu0 0.0
    %976 = vmatprep.subr.mxu0 0.0
    %977 = vmatpush1.msra.mxu0 0.0
    %978 = vmatprep.subr.mxu0 0.0
    %979 = vmatpush1.msra.mxu0 0.0
    %980 = vmatprep.subr.mxu0 0.0
    %981 = vmatpush1.msra.mxu0 0.0
    %982 = vmatprep.subr.mxu0 0.0
    %983 = vmatpush1.msra.mxu0 0.0
    %984 = vmatprep.subr.mxu0 0.0
    %985 = vmatpush1.msra.mxu0 0.0
    %986 = vmatprep.subr.mxu0 0.0
    %987 = vmatpush1.msra.mxu0 0.0
    %988 = vmatprep.subr.mxu0 0.0
    %989 = vmatpush1.msra.mxu0 0.0
    %990 = vmatprep.subr.mxu0 0.0
    %991 = vmatpush1.msra.mxu0 0.0
    %992 = vmatprep.subr.mxu0 0.0
    %993 = vmatpush1.msra.mxu0 0.0
    %994 = vmatprep.subr.mxu0 0.0
    %995 = vmatpush1.msra.mxu0 0.0
    %996 = vmatprep.mubr.f32.mxu0 0.0
    %997 = vmatmul.mubr.f32.gmra.mrb[0].mxu0 %v141
    %v998 = vpop.f32.mrb[0].mxu0
    %v999 = vadd.f32 %v904, %v998
    %v1000 = vpop.f32.mrb[0].mxu0
    %1001 = vmatprep.mubr.f32.mxu0 0.0
    %1002 = vmatmul.mubr.f32.gmra.mrb[0].mxu0 %v144
    %v1003 = vpop.f32.mrb[0].mxu0
    %v1004 = vadd.f32 %v909, %v1003
    %v1005 = vpop.f32.mrb[0].mxu0
    %1006 = vmatprep.mubr.f32.mxu0 0.0
    %1007 = vmatmul.mubr.f32.gmra.mrb[0].mxu0 %v147
    %v1008 = vpop.f32.mrb[0].mxu0
    %v1009 = vadd.f32 %v914, %v1008
    %v1010 = vpop.f32.mrb[0].mxu0
    %1011 = vmatprep.mubr.f32.mxu0 0.0
    %1012 = vmatmul.mubr.f32.gmra.mrb[0].mxu0 %v150
    %v1013 = vpop.f32.mrb[0].mxu0
    %v1014 = vadd.f32 %v919, %v1013
    %v1015 = vpop.f32.mrb[0].mxu0
    %1016 = vmatprep.mubr.f32.mxu0 0.0
    %1017 = vmatmul.mubr.f32.gmra.mrb[0].mxu0 %v153
    %v1018 = vpop.f32.mrb[0].mxu0
    %v1019 = vadd.f32 %v924, %v1018
    %v1020 = vpop.f32.mrb[0].mxu0
    %1021 = vmatprep.mubr.f32.mxu0 0.0
    %1022 = vmatmul.mubr.f32.gmra.mrb[0].mxu0 %v156
    %v1023 = vpop.f32.mrb[0].mxu0
    %v1024 = vadd.f32 %v929, %v1023
    %v1025 = vpop.f32.mrb[0].mxu0
    %1026 = vdwg.mxu0
    %v1027 = vld [vmem:[%s25] sm:$0x1]
    %v1029 = vlaneseq
    %v1030 = vshrl.u32 %v1029, 7
    %v1031 = vsub.s32 0, %v1030
    %v1032 = vrot.slane %v1027, %v1031
    %v1034 = vmul.f32 %v403, %v1032
    %v1035 = vmul.f32 %v410, %v1032
    %v1036 = vmul.f32 %v417, %v1032
    %v1037 = vmul.f32 %v424, %v1032
    %v1038 = vmul.f32 %v431, %v1032
    %v1039 = vmul.f32 %v438, %v1032
    %v1040 = vadd.f32 %v999, %v1034
    %v1041 = vadd.f32 %v1004, %v1035
    %v1042 = vadd.f32 %v1009, %v1036
    %v1043 = vadd.f32 %v1014, %v1037
    %v1044 = vadd.f32 %v1019, %v1038
    %v1045 = vadd.f32 %v1024, %v1039
    %v1046 = vld [vmem:[%s27] sm:$0x1]
    %v1048 = vlaneseq
    %v1049 = vshrl.u32 %v1048, 7
    %v1050 = vsub.s32 0, %v1049
    %v1051 = vrot.slane %v1046, %v1050
    %v1053 = vadd.f32 %v1040, %v1051
    %v1054 = vadd.f32 %v1041, %v1051
    %v1055 = vadd.f32 %v1042, %v1051
    %v1056 = vadd.f32 %v1043, %v1051
    %v1057 = vadd.f32 %v1044, %v1051
    %v1058 = vadd.f32 %v1045, %v1051
    %v1059 = vxor.u32 %v1053, 2147483648
    %v1060 = vxor.u32 %v1054, 2147483648
    %v1061 = vxor.u32 %v1055, 2147483648
    %v1062 = vxor.u32 %v1056, 2147483648
    %v1063 = vxor.u32 %v1057, 2147483648
    %v1064 = vxor.u32 %v1058, 2147483648
    %v1065 = vmul.f32 %v1059, 1.442695
    %v1066 = vpow.pop %v1065
    %v1067 = vmul.f32 %v1060, 1.442695
    %v1068 = vpow.pop %v1067
    %v1069 = vmul.f32 %v1061, 1.442695
    %v1070 = vpow.pop %v1069
    %v1071 = vmul.f32 %v1062, 1.442695
    %v1072 = vpow.pop %v1071
    %v1073 = vmul.f32 %v1063, 1.442695
    %v1074 = vpow.pop %v1073
    %v1075 = vmul.f32 %v1064, 1.442695
    %v1076 = vpow.pop %v1075
    %v1077 = vadd.f32 %v1066, 1.0
    %v1078 = vadd.f32 %v1068, 1.0
    %v1079 = vadd.f32 %v1070, 1.0
    %v1080 = vadd.f32 %v1072, 1.0
    %v1081 = vadd.f32 %v1074, 1.0
    %v1082 = vadd.f32 %v1076, 1.0
    %v1083 = vrcp.pop %v1077
    %v1084 = vmul.f32 1.0, %v1083
    %v1085 = vrcp.pop %v1078
    %v1086 = vmul.f32 1.0, %v1085
    %v1087 = vrcp.pop %v1079
    %v1088 = vmul.f32 1.0, %v1087
    %v1089 = vrcp.pop %v1080
    %v1090 = vmul.f32 1.0, %v1089
    %v1091 = vrcp.pop %v1081
    %v1092 = vmul.f32 1.0, %v1091
    %v1093 = vrcp.pop %v1082
    %v1094 = vmul.f32 1.0, %v1093
    %v1095 = vmul.f32 %v1053, %v1084
    %v1096 = vmul.f32 %v1054, %v1086
    %v1097 = vmul.f32 %v1055, %v1088
    %v1098 = vmul.f32 %v1056, %v1090
    %v1099 = vmul.f32 %v1057, %v1092
    %v1100 = vmul.f32 %v1058, %v1094
    %v1101 = vld [vmem:[%s29] sm:$0xff]
    %v1102 = vld [vmem:[%s29 + $0x8] sm:$0xff]
    %v1103 = vld [vmem:[%s29 + $0x10] sm:$0xff]
    %v1104 = vld [vmem:[%s29 + $0x18] sm:$0xff]
    %v1105 = vld [vmem:[%s29 + $0x20] sm:$0xff]
    %v1106 = vld [vmem:[%s29 + $0x28] sm:$0xff]
    %v1107 = vld [vmem:[%s29 + $0x30] sm:$0xff]
    %v1108 = vld [vmem:[%s29 + $0x38] sm:$0xff]
    %v1109 = vld [vmem:[%s29 + $0x40] sm:$0xff]
    %v1110 = vld [vmem:[%s29 + $0x48] sm:$0xff]
    %v1111 = vld [vmem:[%s29 + $0x50] sm:$0xff]
    %v1112 = vld [vmem:[%s29 + $0x58] sm:$0xff]
    %v1113 = vld [vmem:[%s29 + $0x60] sm:$0xff]
    %v1114 = vld [vmem:[%s29 + $0x68] sm:$0xff]
    %v1115 = vld [vmem:[%s29 + $0x70] sm:$0xff]
    %v1116 = vld [vmem:[%s29 + $0x78] sm:$0xff]
    %v1117 = vld [vmem:[%s31] sm:$0x1]
    %v1119 = vlaneseq
    %v1120 = vshrl.u32 %v1119, 7
    %v1121 = vsub.s32 0, %v1120
    %v1122 = vrot.slane %v1117, %v1121
    %1124 = vmatprep.subr.mxu0 0.0
    %1125 = vmatpush1.msra.mxu0 %v1101
    %1126 = vmatprep.subr.mxu0 0.0
    %1127 = vmatpush1.msra.mxu0 %v1102
    %1128 = vmatprep.subr.mxu0 0.0
    %1129 = vmatpush1.msra.mxu0 %v1103
    %1130 = vmatprep.subr.mxu0 0.0
    %1131 = vmatpush1.msra.mxu0 %v1104
    %1132 = vmatprep.subr.mxu0 0.0
    %1133 = vmatpush1.msra.mxu0 %v1105
    %1134 = vmatprep.subr.mxu0 0.0
    %1135 = vmatpush1.msra.mxu0 %v1106
    %1136 = vmatprep.subr.mxu0 0.0
    %1137 = vmatpush1.msra.mxu0 %v1107
    %1138 = vmatprep.subr.mxu0 0.0
    %1139 = vmatpush1.msra.mxu0 %v1108
    %1140 = vmatprep.subr.mxu0 0.0
    %1141 = vmatpush1.msra.mxu0 %v1109
    %1142 = vmatprep.subr.mxu0 0.0
    %1143 = vmatpush1.msra.mxu0 %v1110
    %1144 = vmatprep.subr.mxu0 0.0
    %1145 = vmatpush1.msra.mxu0 %v1111
    %1146 = vmatprep.subr.mxu0 0.0
    %1147 = vmatpush1.msra.mxu0 %v1112
    %1148 = vmatprep.subr.mxu0 0.0
    %1149 = vmatpush1.msra.mxu0 %v1113
    %1150 = vmatprep.subr.mxu0 0.0
    %1151 = vmatpush1.msra.mxu0 %v1114
    %1152 = vmatprep.subr.mxu0 0.0
    %1153 = vmatpush1.msra.mxu0 %v1115
    %1154 = vmatprep.subr.mxu0 0.0
    %1155 = vmatpush1.msra.mxu0 %v1116
    %1156 = vmatprep.subr.mxu0 0.0
    %1157 = vmatpush1.msra.mxu0 0.0
    %1158 = vmatprep.subr.mxu0 0.0
    %1159 = vmatpush1.msra.mxu0 0.0
    %1160 = vmatprep.subr.mxu0 0.0
    %1161 = vmatpush1.msra.mxu0 0.0
    %1162 = vmatprep.subr.mxu0 0.0
    %1163 = vmatpush1.msra.mxu0 0.0
    %1164 = vmatprep.subr.mxu0 0.0
    %1165 = vmatpush1.msra.mxu0 0.0
    %1166 = vmatprep.subr.mxu0 0.0
    %1167 = vmatpush1.msra.mxu0 0.0
    %1168 = vmatprep.subr.mxu0 0.0
    %1169 = vmatpush1.msra.mxu0 0.0
    %1170 = vmatprep.subr.mxu0 0.0
    %1171 = vmatpush1.msra.mxu0 0.0
    %1172 = vmatprep.subr.mxu0 0.0
    %1173 = vmatpush1.msra.mxu0 0.0
    %1174 = vmatprep.subr.mxu0 0.0
    %1175 = vmatpush1.msra.mxu0 0.0
    %1176 = vmatprep.subr.mxu0 0.0
    %1177 = vmatpush1.msra.mxu0 0.0
    %1178 = vmatprep.subr.mxu0 0.0
    %1179 = vmatpush1.msra.mxu0 0.0
    %1180 = vmatprep.subr.mxu0 0.0
    %1181 = vmatpush1.msra.mxu0 0.0
    %1182 = vmatprep.subr.mxu0 0.0
    %1183 = vmatpush1.msra.mxu0 0.0
    %1184 = vmatprep.subr.mxu0 0.0
    %1185 = vmatpush1.msra.mxu0 0.0
    %1186 = vmatprep.subr.mxu0 0.0
    %1187 = vmatpush1.msra.mxu0 0.0
    %1188 = vmatprep.mubr.f32.mxu0 0.0
    %1189 = vmatmul.mubr.f32.gmra.mrb[0].mxu0 %v1095
    %v1190 = vpop.f32.mrb[0].mxu0
    %v1191 = vadd.f32 %v1122, %v1190
    %v1192 = vpop.f32.mrb[0].mxu0
    %1193 = vmatprep.mubr.f32.mxu0 0.0
    %1194 = vmatmul.mubr.f32.gmra.mrb[0].mxu0 %v1096
    %v1195 = vpop.f32.mrb[0].mxu0
    %v1196 = vadd.f32 %v1122, %v1195
    %v1197 = vpop.f32.mrb[0].mxu0
    %1198 = vmatprep.mubr.f32.mxu0 0.0
    %1199 = vmatmul.mubr.f32.gmra.mrb[0].mxu0 %v1097
    %v1200 = vpop.f32.mrb[0].mxu0
    %v1201 = vadd.f32 %v1122, %v1200
    %v1202 = vpop.f32.mrb[0].mxu0
    %1203 = vmatprep.mubr.f32.mxu0 0.0
    %1204 = vmatmul.mubr.f32.gmra.mrb[0].mxu0 %v1098
    %v1205 = vpop.f32.mrb[0].mxu0
    %v1206 = vadd.f32 %v1122, %v1205
    %v1207 = vpop.f32.mrb[0].mxu0
    %1208 = vmatprep.mubr.f32.mxu0 0.0
    %1209 = vmatmul.mubr.f32.gmra.mrb[0].mxu0 %v1099
    %v1210 = vpop.f32.mrb[0].mxu0
    %v1211 = vadd.f32 %v1122, %v1210
    %v1212 = vpop.f32.mrb[0].mxu0
    %1213 = vmatprep.mubr.f32.mxu0 0.0
    %1214 = vmatmul.mubr.f32.gmra.mrb[0].mxu0 %v1100
    %v1215 = vpop.f32.mrb[0].mxu0
    %v1216 = vadd.f32 %v1122, %v1215
    %v1217 = vpop.f32.mrb[0].mxu0
    %1218 = vdwg.mxu0
    %v1219 = vxor.u32 %v1191, 2147483648
    %v1220 = vxor.u32 %v1196, 2147483648
    %v1221 = vxor.u32 %v1201, 2147483648
    %v1222 = vxor.u32 %v1206, 2147483648
    %v1223 = vxor.u32 %v1211, 2147483648
    %v1224 = vxor.u32 %v1216, 2147483648
    %v1225 = vmul.f32 %v1219, 1.442695
    %v1226 = vpow.pop %v1225
    %v1227 = vmul.f32 %v1220, 1.442695
    %v1228 = vpow.pop %v1227
    %v1229 = vmul.f32 %v1221, 1.442695
    %v1230 = vpow.pop %v1229
    %v1231 = vmul.f32 %v1222, 1.442695
    %v1232 = vpow.pop %v1231
    %v1233 = vmul.f32 %v1223, 1.442695
    %v1234 = vpow.pop %v1233
    %v1235 = vmul.f32 %v1224, 1.442695
    %v1236 = vpow.pop %v1235
    %v1237 = vadd.f32 %v1226, 1.0
    %v1238 = vadd.f32 %v1228, 1.0
    %v1239 = vadd.f32 %v1230, 1.0
    %v1240 = vadd.f32 %v1232, 1.0
    %v1241 = vadd.f32 %v1234, 1.0
    %v1242 = vadd.f32 %v1236, 1.0
    %v1243 = vrcp.pop %v1237
    %v1244 = vmul.f32 1.0, %v1243
    %v1245 = vrcp.pop %v1238
    %v1246 = vmul.f32 1.0, %v1245
    %v1247 = vrcp.pop %v1239
    %v1248 = vmul.f32 1.0, %v1247
    %v1249 = vrcp.pop %v1240
    %v1250 = vmul.f32 1.0, %v1249
    %v1251 = vrcp.pop %v1241
    %v1252 = vmul.f32 1.0, %v1251
    %v1253 = vrcp.pop %v1242
    %v1254 = vmul.f32 1.0, %v1253
    %v1255 = vmul.f32 %v1191, %v1244
    %v1256 = vmul.f32 %v1196, %v1246
    %v1257 = vmul.f32 %v1201, %v1248
    %v1258 = vmul.f32 %v1206, %v1250
    %v1259 = vmul.f32 %v1211, %v1252
    %v1260 = vmul.f32 %v1216, %v1254
    %vm1261 = vcmask 392192
    %v1263 = vsel %vm1261, %v135, 0
    %v1266 = vsel %vm1261, %v136, 0
    %1268 = vmatprep.subr.mxu0 0.0
    %1269 = vmatpush1.msra.mxu0 %v1255
    %1270 = vmatprep.subr.mxu0 0.0
    %1271 = vmatpush1.msra.mxu0 %v1256
    %1272 = vmatprep.subr.mxu0 0.0
    %1273 = vmatpush1.msra.mxu0 %v1257
    %1274 = vmatprep.subr.mxu0 0.0
    %1275 = vmatpush1.msra.mxu0 %v1258
    %1276 = vmatprep.subr.mxu0 0.0
    %1277 = vmatpush1.msra.mxu0 %v1259
    %1278 = vmatprep.subr.mxu0 0.0
    %1279 = vmatpush1.msra.mxu0 %v1260
    %1280 = vmatprep.subr.mxu0 0.0
    %1281 = vmatpush1.msra.mxu0 0.0
    %1282 = vmatprep.subr.mxu0 0.0
    %1283 = vmatpush1.msra.mxu0 0.0
    %1284 = vmatprep.subr.mxu0 0.0
    %1285 = vmatpush1.msra.mxu0 0.0
    %1286 = vmatprep.subr.mxu0 0.0
    %1287 = vmatpush1.msra.mxu0 0.0
    %1288 = vmatprep.subr.mxu0 0.0
    %1289 = vmatpush1.msra.mxu0 0.0
    %1290 = vmatprep.subr.mxu0 0.0
    %1291 = vmatpush1.msra.mxu0 0.0
    %1292 = vmatprep.subr.mxu0 0.0
    %1293 = vmatpush1.msra.mxu0 0.0
    %1294 = vmatprep.subr.mxu0 0.0
    %1295 = vmatpush1.msra.mxu0 0.0
    %1296 = vmatprep.subr.mxu0 0.0
    %1297 = vmatpush1.msra.mxu0 0.0
    %1298 = vmatprep.subr.mxu0 0.0
    %1299 = vmatpush1.msra.mxu0 0.0
    %1300 = vmatprep.subr.mxu0 0.0
    %1301 = vmatpush1.msra.mxu0 0.0
    %1302 = vmatprep.subr.mxu0 0.0
    %1303 = vmatpush1.msra.mxu0 0.0
    %1304 = vmatprep.subr.mxu0 0.0
    %1305 = vmatpush1.msra.mxu0 0.0
    %1306 = vmatprep.subr.mxu0 0.0
    %1307 = vmatpush1.msra.mxu0 0.0
    %1308 = vmatprep.subr.mxu0 0.0
    %1309 = vmatpush1.msra.mxu0 0.0
    %1310 = vmatprep.subr.mxu0 0.0
    %1311 = vmatpush1.msra.mxu0 0.0
    %1312 = vmatprep.subr.mxu0 0.0
    %1313 = vmatpush1.msra.mxu0 0.0
    %1314 = vmatprep.subr.mxu0 0.0
    %1315 = vmatpush1.msra.mxu0 0.0
    %1316 = vmatprep.subr.mxu0 0.0
    %1317 = vmatpush1.msra.mxu0 0.0
    %1318 = vmatprep.subr.mxu0 0.0
    %1319 = vmatpush1.msra.mxu0 0.0
    %1320 = vmatprep.subr.mxu0 0.0
    %1321 = vmatpush1.msra.mxu0 0.0
    %1322 = vmatprep.subr.mxu0 0.0
    %1323 = vmatpush1.msra.mxu0 0.0
    %1324 = vmatprep.subr.mxu0 0.0
    %1325 = vmatpush1.msra.mxu0 0.0
    %1326 = vmatprep.subr.mxu0 0.0
    %1327 = vmatpush1.msra.mxu0 0.0
    %1328 = vmatprep.subr.mxu0 0.0
    %1329 = vmatpush1.msra.mxu0 0.0
    %1330 = vmatprep.subr.mxu0 0.0
    %1331 = vmatpush1.msra.mxu0 0.0
    %1332 = vmatprep.mubr.f32.mxu0 0.0
    %1333 = vmatmul.mubr.f32.gmra.mrb[0].mxu0 %v1263
    %v1334 = vpop.f32.mrb[0].mxu0
    %v1335 = vadd.f32 0.0, %v1334
    %v1336 = vpop.f32.mrb[0].mxu0
    %1337 = vmatprep.mubr.f32.mxu0 0.0
    %1338 = vmatmul.mubr.f32.gmra.mrb[0].mxu0 %v1266
    %v1339 = vpop.f32.mrb[0].mxu0
    %v1340 = vadd.f32 0.0, %v1339
    %v1341 = vpop.f32.mrb[0].mxu0
    %1342 = vdwg.mxu0
    %v1343 = vld [vmem:[%s33] sm:$0xff]
    %v1344 = vld [vmem:[%s33 + $0x8] sm:$0xff]
    %v1345 = vld [vmem:[%s33 + $0x10] sm:$0xff]
    %v1346 = vld [vmem:[%s33 + $0x18] sm:$0xff]
    %v1347 = vld [vmem:[%s33 + $0x20] sm:$0xff]
    %v1348 = vld [vmem:[%s33 + $0x28] sm:$0xff]
    %v1349 = vld [vmem:[%s33 + $0x30] sm:$0xff]
    %v1350 = vld [vmem:[%s33 + $0x38] sm:$0xff]
    %v1351 = vld [vmem:[%s33 + $0x40] sm:$0xff]
    %v1352 = vld [vmem:[%s33 + $0x48] sm:$0xff]
    %v1353 = vld [vmem:[%s33 + $0x50] sm:$0xff]
    %v1354 = vld [vmem:[%s33 + $0x58] sm:$0xff]
    %v1355 = vld [vmem:[%s33 + $0x60] sm:$0xff]
    %v1356 = vld [vmem:[%s33 + $0x68] sm:$0xff]
    %v1357 = vld [vmem:[%s33 + $0x70] sm:$0xff]
    %v1358 = vld [vmem:[%s33 + $0x78] sm:$0xff]
    %v1359 = vld [vmem:[%s35] sm:$0xff]
    %v1360 = vld [vmem:[%s35 + $0x8] sm:$0xff]
    %v1361 = vld [vmem:[%s35 + $0x10] sm:$0xff]
    %v1362 = vld [vmem:[%s35 + $0x18] sm:$0xff]
    %v1363 = vld [vmem:[%s35 + $0x20] sm:$0xff]
    %v1364 = vld [vmem:[%s35 + $0x28] sm:$0xff]
    %v1365 = vld [vmem:[%s35 + $0x30] sm:$0xff]
    %v1366 = vld [vmem:[%s35 + $0x38] sm:$0xff]
    %v1367 = vld [vmem:[%s35 + $0x40] sm:$0xff]
    %v1368 = vld [vmem:[%s35 + $0x48] sm:$0xff]
    %v1369 = vld [vmem:[%s35 + $0x50] sm:$0xff]
    %v1370 = vld [vmem:[%s35 + $0x58] sm:$0xff]
    %v1371 = vld [vmem:[%s35 + $0x60] sm:$0xff]
    %v1372 = vld [vmem:[%s35 + $0x68] sm:$0xff]
    %v1373 = vld [vmem:[%s35 + $0x70] sm:$0xff]
    %v1374 = vld [vmem:[%s35 + $0x78] sm:$0xff]
    %1375 = vmatprep.subr.mxu0 0.0
    %1376 = vmatpush1.msra.mxu0 %v1359
    %1377 = vmatprep.subr.mxu0 0.0
    %1378 = vmatpush1.msra.mxu0 %v1360
    %1379 = vmatprep.subr.mxu0 0.0
    %1380 = vmatpush1.msra.mxu0 %v1361
    %1381 = vmatprep.subr.mxu0 0.0
    %1382 = vmatpush1.msra.mxu0 %v1362
    %1383 = vmatprep.subr.mxu0 0.0
    %1384 = vmatpush1.msra.mxu0 %v1363
    %1385 = vmatprep.subr.mxu0 0.0
    %1386 = vmatpush1.msra.mxu0 %v1364
    %1387 = vmatprep.subr.mxu0 0.0
    %1388 = vmatpush1.msra.mxu0 %v1365
    %1389 = vmatprep.subr.mxu0 0.0
    %1390 = vmatpush1.msra.mxu0 %v1366
    %1391 = vmatprep.subr.mxu0 0.0
    %1392 = vmatpush1.msra.mxu0 %v1367
    %1393 = vmatprep.subr.mxu0 0.0
    %1394 = vmatpush1.msra.mxu0 %v1368
    %1395 = vmatprep.subr.mxu0 0.0
    %1396 = vmatpush1.msra.mxu0 %v1369
    %1397 = vmatprep.subr.mxu0 0.0
    %1398 = vmatpush1.msra.mxu0 %v1370
    %1399 = vmatprep.subr.mxu0 0.0
    %1400 = vmatpush1.msra.mxu0 %v1371
    %1401 = vmatprep.subr.mxu0 0.0
    %1402 = vmatpush1.msra.mxu0 %v1372
    %1403 = vmatprep.subr.mxu0 0.0
    %1404 = vmatpush1.msra.mxu0 %v1373
    %1405 = vmatprep.subr.mxu0 0.0
    %1406 = vmatpush1.msra.mxu0 %v1374
    %1407 = vmatprep.subr.mxu0 0.0
    %1408 = vmatpush1.msra.mxu0 0.0
    %1409 = vmatprep.subr.mxu0 0.0
    %1410 = vmatpush1.msra.mxu0 0.0
    %1411 = vmatprep.subr.mxu0 0.0
    %1412 = vmatpush1.msra.mxu0 0.0
    %1413 = vmatprep.subr.mxu0 0.0
    %1414 = vmatpush1.msra.mxu0 0.0
    %1415 = vmatprep.subr.mxu0 0.0
    %1416 = vmatpush1.msra.mxu0 0.0
    %1417 = vmatprep.subr.mxu0 0.0
    %1418 = vmatpush1.msra.mxu0 0.0
    %1419 = vmatprep.subr.mxu0 0.0
    %1420 = vmatpush1.msra.mxu0 0.0
    %1421 = vmatprep.subr.mxu0 0.0
    %1422 = vmatpush1.msra.mxu0 0.0
    %1423 = vmatprep.subr.mxu0 0.0
    %1424 = vmatpush1.msra.mxu0 0.0
    %1425 = vmatprep.subr.mxu0 0.0
    %1426 = vmatpush1.msra.mxu0 0.0
    %1427 = vmatprep.subr.mxu0 0.0
    %1428 = vmatpush1.msra.mxu0 0.0
    %1429 = vmatprep.subr.mxu0 0.0
    %1430 = vmatpush1.msra.mxu0 0.0
    %1431 = vmatprep.subr.mxu0 0.0
    %1432 = vmatpush1.msra.mxu0 0.0
    %1433 = vmatprep.subr.mxu0 0.0
    %1434 = vmatpush1.msra.mxu0 0.0
    %1435 = vmatprep.subr.mxu0 0.0
    %1436 = vmatpush1.msra.mxu0 0.0
    %1437 = vmatprep.subr.mxu0 0.0
    %1438 = vmatpush1.msra.mxu0 0.0
    %1439 = vmatprep.mubr.f32.mxu0 0.0
    %1440 = vmatmul.mubr.f32.gmra.mrb[0].mxu0 %v1335
    %v1441 = vpop.f32.mrb[0].mxu0
    %v1442 = vadd.f32 0.0, %v1441
    %v1443 = vpop.f32.mrb[0].mxu0
    %1444 = vmatprep.mubr.f32.mxu0 0.0
    %1445 = vmatmul.mubr.f32.gmra.mrb[0].mxu0 %v1340
    %v1446 = vpop.f32.mrb[0].mxu0
    %v1447 = vadd.f32 0.0, %v1446
    %v1448 = vpop.f32.mrb[0].mxu0
    %1449 = vdwg.mxu0
    %1450 = vmatprep.subr.mxu0 0.0
    %1451 = vmatpush1.msra.mxu0 %v1343
    %1452 = vmatprep.subr.mxu0 0.0
    %1453 = vmatpush1.msra.mxu0 %v1344
    %1454 = vmatprep.subr.mxu0 0.0
    %1455 = vmatpush1.msra.mxu0 %v1345
    %1456 = vmatprep.subr.mxu0 0.0
    %1457 = vmatpush1.msra.mxu0 %v1346
    %1458 = vmatprep.subr.mxu0 0.0
    %1459 = vmatpush1.msra.mxu0 %v1347
    %1460 = vmatprep.subr.mxu0 0.0
    %1461 = vmatpush1.msra.mxu0 %v1348
    %1462 = vmatprep.subr.mxu0 0.0
    %1463 = vmatpush1.msra.mxu0 %v1349
    %1464 = vmatprep.subr.mxu0 0.0
    %1465 = vmatpush1.msra.mxu0 %v1350
    %1466 = vmatprep.subr.mxu0 0.0
    %1467 = vmatpush1.msra.mxu0 %v1351
    %1468 = vmatprep.subr.mxu0 0.0
    %1469 = vmatpush1.msra.mxu0 %v1352
    %1470 = vmatprep.subr.mxu0 0.0
    %1471 = vmatpush1.msra.mxu0 %v1353
    %1472 = vmatprep.subr.mxu0 0.0
    %1473 = vmatpush1.msra.mxu0 %v1354
    %1474 = vmatprep.subr.mxu0 0.0
    %1475 = vmatpush1.msra.mxu0 %v1355
    %1476 = vmatprep.subr.mxu0 0.0
    %1477 = vmatpush1.msra.mxu0 %v1356
    %1478 = vmatprep.subr.mxu0 0.0
    %1479 = vmatpush1.msra.mxu0 %v1357
    %1480 = vmatprep.subr.mxu0 0.0
    %1481 = vmatpush1.msra.mxu0 %v1358
    %1482 = vmatprep.subr.mxu0 0.0
    %1483 = vmatpush1.msra.mxu0 0.0
    %1484 = vmatprep.subr.mxu0 0.0
    %1485 = vmatpush1.msra.mxu0 0.0
    %1486 = vmatprep.subr.mxu0 0.0
    %1487 = vmatpush1.msra.mxu0 0.0
    %1488 = vmatprep.subr.mxu0 0.0
    %1489 = vmatpush1.msra.mxu0 0.0
    %1490 = vmatprep.subr.mxu0 0.0
    %1491 = vmatpush1.msra.mxu0 0.0
    %1492 = vmatprep.subr.mxu0 0.0
    %1493 = vmatpush1.msra.mxu0 0.0
    %1494 = vmatprep.subr.mxu0 0.0
    %1495 = vmatpush1.msra.mxu0 0.0
    %1496 = vmatprep.subr.mxu0 0.0
    %1497 = vmatpush1.msra.mxu0 0.0
    %1498 = vmatprep.subr.mxu0 0.0
    %1499 = vmatpush1.msra.mxu0 0.0
    %1500 = vmatprep.subr.mxu0 0.0
    %1501 = vmatpush1.msra.mxu0 0.0
    %1502 = vmatprep.subr.mxu0 0.0
    %1503 = vmatpush1.msra.mxu0 0.0
    %1504 = vmatprep.subr.mxu0 0.0
    %1505 = vmatpush1.msra.mxu0 0.0
    %1506 = vmatprep.subr.mxu0 0.0
    %1507 = vmatpush1.msra.mxu0 0.0
    %1508 = vmatprep.subr.mxu0 0.0
    %1509 = vmatpush1.msra.mxu0 0.0
    %1510 = vmatprep.subr.mxu0 0.0
    %1511 = vmatpush1.msra.mxu0 0.0
    %1512 = vmatprep.subr.mxu0 0.0
    %1513 = vmatpush1.msra.mxu0 0.0
    %1514 = vmatprep.mubr.f32.mxu0 0.0
    %1515 = vmatmul.mubr.f32.gmra.mrb[0].mxu0 %v653
    %v1516 = vpop.f32.mrb[0].mxu0
    %v1517 = vadd.f32 %v1442, %v1516
    %v1518 = vpop.f32.mrb[0].mxu0
    %1519 = vmatprep.mubr.f32.mxu0 0.0
    %1520 = vmatmul.mubr.f32.gmra.mrb[0].mxu0 %v654
    %v1521 = vpop.f32.mrb[0].mxu0
    %v1522 = vadd.f32 %v1447, %v1521
    %v1523 = vpop.f32.mrb[0].mxu0
    %1524 = vdwg.mxu0
    %v1525 = vld [vmem:[%s37] sm:$0x1]
    %v1527 = vlaneseq
    %v1528 = vshrl.u32 %v1527, 7
    %v1529 = vsub.s32 0, %v1528
    %v1530 = vrot.slane %v1525, %v1529
    %v1532 = vadd.f32 %v1517, %v1530
    %v1533 = vadd.f32 %v1522, %v1530
    %v1534 = vxor.u32 %v1532, 2147483648
    %v1535 = vxor.u32 %v1533, 2147483648
    %v1536 = vmul.f32 %v1534, 1.442695
    %v1537 = vpow.pop %v1536
    %v1538 = vmul.f32 %v1535, 1.442695
    %v1539 = vpow.pop %v1538
    %v1540 = vadd.f32 %v1537, 1.0
    %v1541 = vadd.f32 %v1539, 1.0
    %v1542 = vrcp.pop %v1540
    %v1543 = vmul.f32 1.0, %v1542
    %v1544 = vrcp.pop %v1541
    %v1545 = vmul.f32 1.0, %v1544
    %v1546 = vmul.f32 %v1532, %v1543
    %v1547 = vmul.f32 %v1533, %v1545
    %v1548 = vld [vmem:[%s39] sm:$0xff]
    %v1549 = vld [vmem:[%s39 + $0x8] sm:$0xff]
    %v1550 = vld [vmem:[%s39 + $0x10] sm:$0xff]
    %v1551 = vld [vmem:[%s39 + $0x18] sm:$0xff]
    %v1552 = vld [vmem:[%s39 + $0x20] sm:$0xff]
    %v1553 = vld [vmem:[%s39 + $0x28] sm:$0xff]
    %v1554 = vld [vmem:[%s39 + $0x30] sm:$0xff]
    %v1555 = vld [vmem:[%s39 + $0x38] sm:$0xff]
    %v1556 = vld [vmem:[%s39 + $0x40] sm:$0xff]
    %v1557 = vld [vmem:[%s39 + $0x48] sm:$0xff]
    %v1558 = vld [vmem:[%s39 + $0x50] sm:$0xff]
    %v1559 = vld [vmem:[%s39 + $0x58] sm:$0xff]
    %v1560 = vld [vmem:[%s39 + $0x60] sm:$0xff]
    %v1561 = vld [vmem:[%s39 + $0x68] sm:$0xff]
    %v1562 = vld [vmem:[%s39 + $0x70] sm:$0xff]
    %v1563 = vld [vmem:[%s39 + $0x78] sm:$0xff]
    %v1564 = vld [vmem:[%s41] sm:$0x1]
    %v1566 = vlaneseq
    %v1567 = vshrl.u32 %v1566, 7
    %v1568 = vsub.s32 0, %v1567
    %v1569 = vrot.slane %v1564, %v1568
    %1571 = vmatprep.subr.mxu0 0.0
    %1572 = vmatpush1.msra.mxu0 %v1548
    %1573 = vmatprep.subr.mxu0 0.0
    %1574 = vmatpush1.msra.mxu0 %v1549
    %1575 = vmatprep.subr.mxu0 0.0
    %1576 = vmatpush1.msra.mxu0 %v1550
    %1577 = vmatprep.subr.mxu0 0.0
    %1578 = vmatpush1.msra.mxu0 %v1551
    %1579 = vmatprep.subr.mxu0 0.0
    %1580 = vmatpush1.msra.mxu0 %v1552
    %1581 = vmatprep.subr.mxu0 0.0
    %1582 = vmatpush1.msra.mxu0 %v1553
    %1583 = vmatprep.subr.mxu0 0.0
    %1584 = vmatpush1.msra.mxu0 %v1554
    %1585 = vmatprep.subr.mxu0 0.0
    %1586 = vmatpush1.msra.mxu0 %v1555
    %1587 = vmatprep.subr.mxu0 0.0
    %1588 = vmatpush1.msra.mxu0 %v1556
    %1589 = vmatprep.subr.mxu0 0.0
    %1590 = vmatpush1.msra.mxu0 %v1557
    %1591 = vmatprep.subr.mxu0 0.0
    %1592 = vmatpush1.msra.mxu0 %v1558
    %1593 = vmatprep.subr.mxu0 0.0
    %1594 = vmatpush1.msra.mxu0 %v1559
    %1595 = vmatprep.subr.mxu0 0.0
    %1596 = vmatpush1.msra.mxu0 %v1560
    %1597 = vmatprep.subr.mxu0 0.0
    %1598 = vmatpush1.msra.mxu0 %v1561
    %1599 = vmatprep.subr.mxu0 0.0
    %1600 = vmatpush1.msra.mxu0 %v1562
    %1601 = vmatprep.subr.mxu0 0.0
    %1602 = vmatpush1.msra.mxu0 %v1563
    %1603 = vmatprep.subr.mxu0 0.0
    %1604 = vmatpush1.msra.mxu0 0.0
    %1605 = vmatprep.subr.mxu0 0.0
    %1606 = vmatpush1.msra.mxu0 0.0
    %1607 = vmatprep.subr.mxu0 0.0
    %1608 = vmatpush1.msra.mxu0 0.0
    %1609 = vmatprep.subr.mxu0 0.0
    %1610 = vmatpush1.msra.mxu0 0.0
    %1611 = vmatprep.subr.mxu0 0.0
    %1612 = vmatpush1.msra.mxu0 0.0
    %1613 = vmatprep.subr.mxu0 0.0
    %1614 = vmatpush1.msra.mxu0 0.0
    %1615 = vmatprep.subr.mxu0 0.0
    %1616 = vmatpush1.msra.mxu0 0.0
    %1617 = vmatprep.subr.mxu0 0.0
    %1618 = vmatpush1.msra.mxu0 0.0
    %1619 = vmatprep.subr.mxu0 0.0
    %1620 = vmatpush1.msra.mxu0 0.0
    %1621 = vmatprep.subr.mxu0 0.0
    %1622 = vmatpush1.msra.mxu0 0.0
    %1623 = vmatprep.subr.mxu0 0.0
    %1624 = vmatpush1.msra.mxu0 0.0
    %1625 = vmatprep.subr.mxu0 0.0
    %1626 = vmatpush1.msra.mxu0 0.0
    %1627 = vmatprep.subr.mxu0 0.0
    %1628 = vmatpush1.msra.mxu0 0.0
    %1629 = vmatprep.subr.mxu0 0.0
    %1630 = vmatpush1.msra.mxu0 0.0
    %1631 = vmatprep.subr.mxu0 0.0
    %1632 = vmatpush1.msra.mxu0 0.0
    %1633 = vmatprep.subr.mxu0 0.0
    %1634 = vmatpush1.msra.mxu0 0.0
    %1635 = vmatprep.mubr.f32.mxu0 0.0
    %1636 = vmatmul.mubr.f32.gmra.mrb[0].mxu0 %v1546
    %v1637 = vpop.f32.mrb[0].mxu0
    %v1638 = vadd.f32 %v1569, %v1637
    %v1639 = vpop.f32.mrb[0].mxu0
    %1640 = vmatprep.mubr.f32.mxu0 0.0
    %1641 = vmatmul.mubr.f32.gmra.mrb[0].mxu0 %v1547
    %v1642 = vpop.f32.mrb[0].mxu0
    %v1643 = vadd.f32 %v1569, %v1642
    %v1644 = vpop.f32.mrb[0].mxu0
    %1645 = vdwg.mxu0
    %v1646 = vadd.f32 %v653, %v1638
    %v1647 = vadd.f32 %v654, %v1643
    %1648 = vst [vmem:[#allocation2] sm:$0xff] %v1646
    %1649 = vst [vmem:[#allocation2 + $0x8] sm:$0xff] %v1647
    %v1650 = vld [vmem:[#allocation2] sm:$0xff]
    %v1651 = vld [vmem:[#allocation2 + $0x8] sm:$0xff]
    %s1652 = scalar_lea.vmem %s21, 128
    %v1653 = vld [vmem:[%s1652] sm:$0xff]
    %v1654 = vld [vmem:[%s1652 + $0x8] sm:$0xff]
    %v1655 = vld [vmem:[%s1652 + $0x10] sm:$0xff]
    %v1656 = vld [vmem:[%s1652 + $0x18] sm:$0xff]
    %v1657 = vld [vmem:[%s1652 + $0x20] sm:$0xff]
    %v1658 = vld [vmem:[%s1652 + $0x28] sm:$0xff]
    %v1659 = vld [vmem:[%s1652 + $0x30] sm:$0xff]
    %v1660 = vld [vmem:[%s1652 + $0x38] sm:$0xff]
    %v1661 = vld [vmem:[%s1652 + $0x40] sm:$0xff]
    %v1662 = vld [vmem:[%s1652 + $0x48] sm:$0xff]
    %v1663 = vld [vmem:[%s1652 + $0x50] sm:$0xff]
    %v1664 = vld [vmem:[%s1652 + $0x58] sm:$0xff]
    %v1665 = vld [vmem:[%s1652 + $0x60] sm:$0xff]
    %v1666 = vld [vmem:[%s1652 + $0x68] sm:$0xff]
    %v1667 = vld [vmem:[%s1652 + $0x70] sm:$0xff]
    %v1668 = vld [vmem:[%s1652 + $0x78] sm:$0xff]
    %1669 = vmatprep.subr.mxu0 0.0
    %1670 = vmatpush1.msra.mxu0 %v1653
    %1671 = vmatprep.subr.mxu0 0.0
    %1672 = vmatpush1.msra.mxu0 %v1654
    %1673 = vmatprep.subr.mxu0 0.0
    %1674 = vmatpush1.msra.mxu0 %v1655
    %1675 = vmatprep.subr.mxu0 0.0
    %1676 = vmatpush1.msra.mxu0 %v1656
    %1677 = vmatprep.subr.mxu0 0.0
    %1678 = vmatpush1.msra.mxu0 %v1657
    %1679 = vmatprep.subr.mxu0 0.0
    %1680 = vmatpush1.msra.mxu0 %v1658
    %1681 = vmatprep.subr.mxu0 0.0
    %1682 = vmatpush1.msra.mxu0 %v1659
    %1683 = vmatprep.subr.mxu0 0.0
    %1684 = vmatpush1.msra.mxu0 %v1660
    %1685 = vmatprep.subr.mxu0 0.0
    %1686 = vmatpush1.msra.mxu0 %v1661
    %1687 = vmatprep.subr.mxu0 0.0
    %1688 = vmatpush1.msra.mxu0 %v1662
    %1689 = vmatprep.subr.mxu0 0.0
    %1690 = vmatpush1.msra.mxu0 %v1663
    %1691 = vmatprep.subr.mxu0 0.0
    %1692 = vmatpush1.msra.mxu0 %v1664
    %1693 = vmatprep.subr.mxu0 0.0
    %1694 = vmatpush1.msra.mxu0 %v1665
    %1695 = vmatprep.subr.mxu0 0.0
    %1696 = vmatpush1.msra.mxu0 %v1666
    %1697 = vmatprep.subr.mxu0 0.0
    %1698 = vmatpush1.msra.mxu0 %v1667
    %1699 = vmatprep.subr.mxu0 0.0
    %1700 = vmatpush1.msra.mxu0 %v1668
    %1701 = vmatprep.subr.mxu0 0.0
    %1702 = vmatpush1.msra.mxu0 0.0
    %1703 = vmatprep.subr.mxu0 0.0
    %1704 = vmatpush1.msra.mxu0 0.0
    %1705 = vmatprep.subr.mxu0 0.0
    %1706 = vmatpush1.msra.mxu0 0.0
    %1707 = vmatprep.subr.mxu0 0.0
    %1708 = vmatpush1.msra.mxu0 0.0
    %1709 = vmatprep.subr.mxu0 0.0
    %1710 = vmatpush1.msra.mxu0 0.0
    %1711 = vmatprep.subr.mxu0 0.0
    %1712 = vmatpush1.msra.mxu0 0.0
    %1713 = vmatprep.subr.mxu0 0.0
    %1714 = vmatpush1.msra.mxu0 0.0
    %1715 = vmatprep.subr.mxu0 0.0
    %1716 = vmatpush1.msra.mxu0 0.0
    %1717 = vmatprep.subr.mxu0 0.0
    %1718 = vmatpush1.msra.mxu0 0.0
    %1719 = vmatprep.subr.mxu0 0.0
    %1720 = vmatpush1.msra.mxu0 0.0
    %1721 = vmatprep.subr.mxu0 0.0
    %1722 = vmatpush1.msra.mxu0 0.0
    %1723 = vmatprep.subr.mxu0 0.0
    %1724 = vmatpush1.msra.mxu0 0.0
    %1725 = vmatprep.subr.mxu0 0.0
    %1726 = vmatpush1.msra.mxu0 0.0
    %1727 = vmatprep.subr.mxu0 0.0
    %1728 = vmatpush1.msra.mxu0 0.0
    %1729 = vmatprep.subr.mxu0 0.0
    %1730 = vmatpush1.msra.mxu0 0.0
    %1731 = vmatprep.subr.mxu0 0.0
    %1732 = vmatpush1.msra.mxu0 0.0
    %1733 = vmatprep.mubr.f32.mxu0 0.0
    %1734 = vmatmul.mubr.f32.gmra.mrb[0].mxu0 %v1650
    %v1735 = vpop.f32.mrb[0].mxu0
    %v1736 = vadd.f32 0.0, %v1735
    %v1737 = vpop.f32.mrb[0].mxu0
    %1738 = vmatprep.mubr.f32.mxu0 0.0
    %1739 = vmatmul.mubr.f32.gmra.mrb[0].mxu0 %v1651
    %v1740 = vpop.f32.mrb[0].mxu0
    %v1741 = vadd.f32 0.0, %v1740
    %v1742 = vpop.f32.mrb[0].mxu0
    %1743 = vdwg.mxu0
    %s1744 = scalar_lea.vmem %s23, 128
    %v1745 = vld [vmem:[%s1744] sm:$0xff]
    %v1746 = vld [vmem:[%s1744 + $0x8] sm:$0xff]
    %v1747 = vld [vmem:[%s1744 + $0x10] sm:$0xff]
    %v1748 = vld [vmem:[%s1744 + $0x18] sm:$0xff]
    %v1749 = vld [vmem:[%s1744 + $0x20] sm:$0xff]
    %v1750 = vld [vmem:[%s1744 + $0x28] sm:$0xff]
    %v1751 = vld [vmem:[%s1744 + $0x30] sm:$0xff]
    %v1752 = vld [vmem:[%s1744 + $0x38] sm:$0xff]
    %v1753 = vld [vmem:[%s1744 + $0x40] sm:$0xff]
    %v1754 = vld [vmem:[%s1744 + $0x48] sm:$0xff]
    %v1755 = vld [vmem:[%s1744 + $0x50] sm:$0xff]
    %v1756 = vld [vmem:[%s1744 + $0x58] sm:$0xff]
    %v1757 = vld [vmem:[%s1744 + $0x60] sm:$0xff]
    %v1758 = vld [vmem:[%s1744 + $0x68] sm:$0xff]
    %v1759 = vld [vmem:[%s1744 + $0x70] sm:$0xff]
    %v1760 = vld [vmem:[%s1744 + $0x78] sm:$0xff]
    %1761 = vmatprep.subr.mxu0 0.0
    %1762 = vmatpush1.msra.mxu0 %v1745
    %1763 = vmatprep.subr.mxu0 0.0
    %1764 = vmatpush1.msra.mxu0 %v1746
    %1765 = vmatprep.subr.mxu0 0.0
    %1766 = vmatpush1.msra.mxu0 %v1747
    %1767 = vmatprep.subr.mxu0 0.0
    %1768 = vmatpush1.msra.mxu0 %v1748
    %1769 = vmatprep.subr.mxu0 0.0
    %1770 = vmatpush1.msra.mxu0 %v1749
    %1771 = vmatprep.subr.mxu0 0.0
    %1772 = vmatpush1.msra.mxu0 %v1750
    %1773 = vmatprep.subr.mxu0 0.0
    %1774 = vmatpush1.msra.mxu0 %v1751
    %1775 = vmatprep.subr.mxu0 0.0
    %1776 = vmatpush1.msra.mxu0 %v1752
    %1777 = vmatprep.subr.mxu0 0.0
    %1778 = vmatpush1.msra.mxu0 %v1753
    %1779 = vmatprep.subr.mxu0 0.0
    %1780 = vmatpush1.msra.mxu0 %v1754
    %1781 = vmatprep.subr.mxu0 0.0
    %1782 = vmatpush1.msra.mxu0 %v1755
    %1783 = vmatprep.subr.mxu0 0.0
    %1784 = vmatpush1.msra.mxu0 %v1756
    %1785 = vmatprep.subr.mxu0 0.0
    %1786 = vmatpush1.msra.mxu0 %v1757
    %1787 = vmatprep.subr.mxu0 0.0
    %1788 = vmatpush1.msra.mxu0 %v1758
    %1789 = vmatprep.subr.mxu0 0.0
    %1790 = vmatpush1.msra.mxu0 %v1759
    %1791 = vmatprep.subr.mxu0 0.0
    %1792 = vmatpush1.msra.mxu0 %v1760
    %1793 = vmatprep.subr.mxu0 0.0
    %1794 = vmatpush1.msra.mxu0 0.0
    %1795 = vmatprep.subr.mxu0 0.0
    %1796 = vmatpush1.msra.mxu0 0.0
    %1797 = vmatprep.subr.mxu0 0.0
    %1798 = vmatpush1.msra.mxu0 0.0
    %1799 = vmatprep.subr.mxu0 0.0
    %1800 = vmatpush1.msra.mxu0 0.0
    %1801 = vmatprep.subr.mxu0 0.0
    %1802 = vmatpush1.msra.mxu0 0.0
    %1803 = vmatprep.subr.mxu0 0.0
    %1804 = vmatpush1.msra.mxu0 0.0
    %1805 = vmatprep.subr.mxu0 0.0
    %1806 = vmatpush1.msra.mxu0 0.0
    %1807 = vmatprep.subr.mxu0 0.0
    %1808 = vmatpush1.msra.mxu0 0.0
    %1809 = vmatprep.subr.mxu0 0.0
    %1810 = vmatpush1.msra.mxu0 0.0
    %1811 = vmatprep.subr.mxu0 0.0
    %1812 = vmatpush1.msra.mxu0 0.0
    %1813 = vmatprep.subr.mxu0 0.0
    %1814 = vmatpush1.msra.mxu0 0.0
    %1815 = vmatprep.subr.mxu0 0.0
    %1816 = vmatpush1.msra.mxu0 0.0
    %1817 = vmatprep.subr.mxu0 0.0
    %1818 = vmatpush1.msra.mxu0 0.0
    %1819 = vmatprep.subr.mxu0 0.0
    %1820 = vmatpush1.msra.mxu0 0.0
    %1821 = vmatprep.subr.mxu0 0.0
    %1822 = vmatpush1.msra.mxu0 0.0
    %1823 = vmatprep.subr.mxu0 0.0
    %1824 = vmatpush1.msra.mxu0 0.0
    %1825 = vmatprep.mubr.f32.mxu0 0.0
    %1826 = vmatmul.mubr.f32.gmra.mrb[0].mxu0 %v1650
    %v1827 = vpop.f32.mrb[0].mxu0
    %v1828 = vadd.f32 0.0, %v1827
    %v1829 = vpop.f32.mrb[0].mxu0
    %1830 = vmatprep.mubr.f32.mxu0 0.0
    %1831 = vmatmul.mubr.f32.gmra.mrb[0].mxu0 %v1651
    %v1832 = vpop.f32.mrb[0].mxu0
    %v1833 = vadd.f32 0.0, %v1832
    %v1834 = vpop.f32.mrb[0].mxu0
    %1835 = vdwg.mxu0
    %1836 = vmatprep.subr.mxu0 0.0
    %1837 = vmatpush1.msra.mxu0 %v1828
    %1838 = vmatprep.subr.mxu0 0.0
    %1839 = vmatpush1.msra.mxu0 %v1833
    %1840 = vmatprep.subr.mxu0 0.0
    %1841 = vmatpush1.msra.mxu0 0.0
    %1842 = vmatprep.subr.mxu0 0.0
    %1843 = vmatpush1.msra.mxu0 0.0
    %1844 = vmatprep.subr.mxu0 0.0
    %1845 = vmatpush1.msra.mxu0 0.0
    %1846 = vmatprep.subr.mxu0 0.0
    %1847 = vmatpush1.msra.mxu0 0.0
    %1848 = vmatprep.subr.mxu0 0.0
    %1849 = vmatpush1.msra.mxu0 0.0
    %1850 = vmatprep.subr.mxu0 0.0
    %1851 = vmatpush1.msra.mxu0 0.0
    %1852 = vmatprep.subr.mxu0 0.0
    %1853 = vmatpush1.msra.mxu0 0.0
    %1854 = vmatprep.subr.mxu0 0.0
    %1855 = vmatpush1.msra.mxu0 0.0
    %1856 = vmatprep.subr.mxu0 0.0
    %1857 = vmatpush1.msra.mxu0 0.0
    %1858 = vmatprep.subr.mxu0 0.0
    %1859 = vmatpush1.msra.mxu0 0.0
    %1860 = vmatprep.subr.mxu0 0.0
    %1861 = vmatpush1.msra.mxu0 0.0
    %1862 = vmatprep.subr.mxu0 0.0
    %1863 = vmatpush1.msra.mxu0 0.0
    %1864 = vmatprep.subr.mxu0 0.0
    %1865 = vmatpush1.msra.mxu0 0.0
    %1866 = vmatprep.subr.mxu0 0.0
    %1867 = vmatpush1.msra.mxu0 0.0
    %1868 = vmatprep.subr.mxu0 0.0
    %1869 = vmatpush1.msra.mxu0 0.0
    %1870 = vmatprep.subr.mxu0 0.0
    %1871 = vmatpush1.msra.mxu0 0.0
    %1872 = vmatprep.subr.mxu0 0.0
    %1873 = vmatpush1.msra.mxu0 0.0
    %1874 = vmatprep.subr.mxu0 0.0
    %1875 = vmatpush1.msra.mxu0 0.0
    %1876 = vmatprep.subr.mxu0 0.0
    %1877 = vmatpush1.msra.mxu0 0.0
    %1878 = vmatprep.subr.mxu0 0.0
    %1879 = vmatpush1.msra.mxu0 0.0
    %1880 = vmatprep.subr.mxu0 0.0
    %1881 = vmatpush1.msra.mxu0 0.0
    %1882 = vmatprep.subr.mxu0 0.0
    %1883 = vmatpush1.msra.mxu0 0.0
    %1884 = vmatprep.subr.mxu0 0.0
    %1885 = vmatpush1.msra.mxu0 0.0
    %1886 = vmatprep.subr.mxu0 0.0
    %1887 = vmatpush1.msra.mxu0 0.0
    %1888 = vmatprep.subr.mxu0 0.0
    %1889 = vmatpush1.msra.mxu0 0.0
    %1890 = vmatprep.subr.mxu0 0.0
    %1891 = vmatpush1.msra.mxu0 0.0
    %1892 = vmatprep.subr.mxu0 0.0
    %1893 = vmatpush1.msra.mxu0 0.0
    %1894 = vmatprep.subr.mxu0 0.0
    %1895 = vmatpush1.msra.mxu0 0.0
    %1896 = vmatprep.subr.mxu0 0.0
    %1897 = vmatpush1.msra.mxu0 0.0
    %1898 = vmatprep.subr.mxu0 0.0
    %1899 = vmatpush1.msra.mxu0 0.0
    %1900 = vmatprep.mubr.f32.mxu0 0.0
    %1901 = vmatmul.mubr.f32.gmra.mrb[0].mxu0 %v254
    %v1902 = vpop.f32.mrb[0].mxu0
    %v1903 = vadd.f32 0.0, %v1902
    %v1904 = vpop.f32.mrb[0].mxu0
    %1905 = vmatprep.mubr.f32.mxu0 0.0
    %1906 = vmatmul.mubr.f32.gmra.mrb[0].mxu0 %v257
    %v1907 = vpop.f32.mrb[0].mxu0
    %v1908 = vadd.f32 0.0, %v1907
    %v1909 = vpop.f32.mrb[0].mxu0
    %1910 = vmatprep.mubr.f32.mxu0 0.0
    %1911 = vmatmul.mubr.f32.gmra.mrb[0].mxu0 %v260
    %v1912 = vpop.f32.mrb[0].mxu0
    %v1913 = vadd.f32 0.0, %v1912
    %v1914 = vpop.f32.mrb[0].mxu0
    %1915 = vmatprep.mubr.f32.mxu0 0.0
    %1916 = vmatmul.mubr.f32.gmra.mrb[0].mxu0 %v263
    %v1917 = vpop.f32.mrb[0].mxu0
    %v1918 = vadd.f32 0.0, %v1917
    %v1919 = vpop.f32.mrb[0].mxu0
    %1920 = vmatprep.mubr.f32.mxu0 0.0
    %1921 = vmatmul.mubr.f32.gmra.mrb[0].mxu0 %v266
    %v1922 = vpop.f32.mrb[0].mxu0
    %v1923 = vadd.f32 0.0, %v1922
    %v1924 = vpop.f32.mrb[0].mxu0
    %1925 = vmatprep.mubr.f32.mxu0 0.0
    %1926 = vmatmul.mubr.f32.gmra.mrb[0].mxu0 %v269
    %v1927 = vpop.f32.mrb[0].mxu0
    %v1928 = vadd.f32 0.0, %v1927
    %v1929 = vpop.f32.mrb[0].mxu0
    %1930 = vdwg.mxu0
    %1931 = vmatprep.subr.mxu0 0.0
    %1932 = vmatpush1.msra.mxu0 %v1736
    %1933 = vmatprep.subr.mxu0 0.0
    %1934 = vmatpush1.msra.mxu0 %v1741
    %1935 = vmatprep.subr.mxu0 0.0
    %1936 = vmatpush1.msra.mxu0 0.0
    %1937 = vmatprep.subr.mxu0 0.0
    %1938 = vmatpush1.msra.mxu0 0.0
    %1939 = vmatprep.subr.mxu0 0.0
    %1940 = vmatpush1.msra.mxu0 0.0
    %1941 = vmatprep.subr.mxu0 0.0
    %1942 = vmatpush1.msra.mxu0 0.0
    %1943 = vmatprep.subr.mxu0 0.0
    %1944 = vmatpush1.msra.mxu0 0.0
    %1945 = vmatprep.subr.mxu0 0.0
    %1946 = vmatpush1.msra.mxu0 0.0
    %1947 = vmatprep.subr.mxu0 0.0
    %1948 = vmatpush1.msra.mxu0 0.0
    %1949 = vmatprep.subr.mxu0 0.0
    %1950 = vmatpush1.msra.mxu0 0.0
    %1951 = vmatprep.subr.mxu0 0.0
    %1952 = vmatpush1.msra.mxu0 0.0
    %1953 = vmatprep.subr.mxu0 0.0
    %1954 = vmatpush1.msra.mxu0 0.0
    %1955 = vmatprep.subr.mxu0 0.0
    %1956 = vmatpush1.msra.mxu0 0.0
    %1957 = vmatprep.subr.mxu0 0.0
    %1958 = vmatpush1.msra.mxu0 0.0
    %1959 = vmatprep.subr.mxu0 0.0
    %1960 = vmatpush1.msra.mxu0 0.0
    %1961 = vmatprep.subr.mxu0 0.0
    %1962 = vmatpush1.msra.mxu0 0.0
    %1963 = vmatprep.subr.mxu0 0.0
    %1964 = vmatpush1.msra.mxu0 0.0
    %1965 = vmatprep.subr.mxu0 0.0
    %1966 = vmatpush1.msra.mxu0 0.0
    %1967 = vmatprep.subr.mxu0 0.0
    %1968 = vmatpush1.msra.mxu0 0.0
    %1969 = vmatprep.subr.mxu0 0.0
    %1970 = vmatpush1.msra.mxu0 0.0
    %1971 = vmatprep.subr.mxu0 0.0
    %1972 = vmatpush1.msra.mxu0 0.0
    %1973 = vmatprep.subr.mxu0 0.0
    %1974 = vmatpush1.msra.mxu0 0.0
    %1975 = vmatprep.subr.mxu0 0.0
    %1976 = vmatpush1.msra.mxu0 0.0
    %1977 = vmatprep.subr.mxu0 0.0
    %1978 = vmatpush1.msra.mxu0 0.0
    %1979 = vmatprep.subr.mxu0 0.0
    %1980 = vmatpush1.msra.mxu0 0.0
    %1981 = vmatprep.subr.mxu0 0.0
    %1982 = vmatpush1.msra.mxu0 0.0
    %1983 = vmatprep.subr.mxu0 0.0
    %1984 = vmatpush1.msra.mxu0 0.0
    %1985 = vmatprep.subr.mxu0 0.0
    %1986 = vmatpush1.msra.mxu0 0.0
    %1987 = vmatprep.subr.mxu0 0.0
    %1988 = vmatpush1.msra.mxu0 0.0
    %1989 = vmatprep.subr.mxu0 0.0
    %1990 = vmatpush1.msra.mxu0 0.0
    %1991 = vmatprep.subr.mxu0 0.0
    %1992 = vmatpush1.msra.mxu0 0.0
    %1993 = vmatprep.subr.mxu0 0.0
    %1994 = vmatpush1.msra.mxu0 0.0
    %1995 = vmatprep.mubr.f32.mxu0 0.0
    %1996 = vmatmul.mubr.f32.gmra.mrb[0].mxu0 %v141
    %v1997 = vpop.f32.mrb[0].mxu0
    %v1998 = vadd.f32 %v1903, %v1997
    %v1999 = vpop.f32.mrb[0].mxu0
    %2000 = vmatprep.mubr.f32.mxu0 0.0
    %2001 = vmatmul.mubr.f32.gmra.mrb[0].mxu0 %v144
    %v2002 = vpop.f32.mrb[0].mxu0
    %v2003 = vadd.f32 %v1908, %v2002
    %v2004 = vpop.f32.mrb[0].mxu0
    %2005 = vmatprep.mubr.f32.mxu0 0.0
    %2006 = vmatmul.mubr.f32.gmra.mrb[0].mxu0 %v147
    %v2007 = vpop.f32.mrb[0].mxu0
    %v2008 = vadd.f32 %v1913, %v2007
    %v2009 = vpop.f32.mrb[0].mxu0
    %2010 = vmatprep.mubr.f32.mxu0 0.0
    %2011 = vmatmul.mubr.f32.gmra.mrb[0].mxu0 %v150
    %v2012 = vpop.f32.mrb[0].mxu0
    %v2013 = vadd.f32 %v1918, %v2012
    %v2014 = vpop.f32.mrb[0].mxu0
    %2015 = vmatprep.mubr.f32.mxu0 0.0
    %2016 = vmatmul.mubr.f32.gmra.mrb[0].mxu0 %v153
    %v2017 = vpop.f32.mrb[0].mxu0
    %v2018 = vadd.f32 %v1923, %v2017
    %v2019 = vpop.f32.mrb[0].mxu0
    %2020 = vmatprep.mubr.f32.mxu0 0.0
    %2021 = vmatmul.mubr.f32.gmra.mrb[0].mxu0 %v156
    %v2022 = vpop.f32.mrb[0].mxu0
    %v2023 = vadd.f32 %v1928, %v2022
    %v2024 = vpop.f32.mrb[0].mxu0
    %2025 = vdwg.mxu0
    %s2026 = scalar_lea.vmem %s25, 1
    %v2027 = vld [vmem:[%s2026] sm:$0x1]
    %v2029 = vlaneseq
    %v2030 = vshrl.u32 %v2029, 7
    %v2031 = vsub.s32 0, %v2030
    %v2032 = vrot.slane %v2027, %v2031
    %v2034 = vmul.f32 %v403, %v2032
    %v2035 = vmul.f32 %v410, %v2032
    %v2036 = vmul.f32 %v417, %v2032
    %v2037 = vmul.f32 %v424, %v2032
    %v2038 = vmul.f32 %v431, %v2032
    %v2039 = vmul.f32 %v438, %v2032
    %v2040 = vadd.f32 %v1998, %v2034
    %v2041 = vadd.f32 %v2003, %v2035
    %v2042 = vadd.f32 %v2008, %v2036
    %v2043 = vadd.f32 %v2013, %v2037
    %v2044 = vadd.f32 %v2018, %v2038
    %v2045 = vadd.f32 %v2023, %v2039
    %s2046 = scalar_lea.vmem %s27, 1
    %v2047 = vld [vmem:[%s2046] sm:$0x1]
    %v2049 = vlaneseq
    %v2050 = vshrl.u32 %v2049, 7
    %v2051 = vsub.s32 0, %v2050
    %v2052 = vrot.slane %v2047, %v2051
    %v2054 = vadd.f32 %v2040, %v2052
    %v2055 = vadd.f32 %v2041, %v2052
    %v2056 = vadd.f32 %v2042, %v2052
    %v2057 = vadd.f32 %v2043, %v2052
    %v2058 = vadd.f32 %v2044, %v2052
    %v2059 = vadd.f32 %v2045, %v2052
    %v2060 = vxor.u32 %v2054, 2147483648
    %v2061 = vxor.u32 %v2055, 2147483648
    %v2062 = vxor.u32 %v2056, 2147483648
    %v2063 = vxor.u32 %v2057, 2147483648
    %v2064 = vxor.u32 %v2058, 2147483648
    %v2065 = vxor.u32 %v2059, 2147483648
    %v2066 = vmul.f32 %v2060, 1.442695
    %v2067 = vpow.pop %v2066
    %v2068 = vmul.f32 %v2061, 1.442695
    %v2069 = vpow.pop %v2068
    %v2070 = vmul.f32 %v2062, 1.442695
    %v2071 = vpow.pop %v2070
    %v2072 = vmul.f32 %v2063, 1.442695
    %v2073 = vpow.pop %v2072
    %v2074 = vmul.f32 %v2064, 1.442695
    %v2075 = vpow.pop %v2074
    %v2076 = vmul.f32 %v2065, 1.442695
    %v2077 = vpow.pop %v2076
    %v2078 = vadd.f32 %v2067, 1.0
    %v2079 = vadd.f32 %v2069, 1.0
    %v2080 = vadd.f32 %v2071, 1.0
    %v2081 = vadd.f32 %v2073, 1.0
    %v2082 = vadd.f32 %v2075, 1.0
    %v2083 = vadd.f32 %v2077, 1.0
    %v2084 = vrcp.pop %v2078
    %v2085 = vmul.f32 1.0, %v2084
    %v2086 = vrcp.pop %v2079
    %v2087 = vmul.f32 1.0, %v2086
    %v2088 = vrcp.pop %v2080
    %v2089 = vmul.f32 1.0, %v2088
    %v2090 = vrcp.pop %v2081
    %v2091 = vmul.f32 1.0, %v2090
    %v2092 = vrcp.pop %v2082
    %v2093 = vmul.f32 1.0, %v2092
    %v2094 = vrcp.pop %v2083
    %v2095 = vmul.f32 1.0, %v2094
    %v2096 = vmul.f32 %v2054, %v2085
    %v2097 = vmul.f32 %v2055, %v2087
    %v2098 = vmul.f32 %v2056, %v2089
    %v2099 = vmul.f32 %v2057, %v2091
    %v2100 = vmul.f32 %v2058, %v2093
    %v2101 = vmul.f32 %v2059, %v2095
    %s2102 = scalar_lea.vmem %s29, 128
    %v2103 = vld [vmem:[%s2102] sm:$0xff]
    %v2104 = vld [vmem:[%s2102 + $0x8] sm:$0xff]
    %v2105 = vld [vmem:[%s2102 + $0x10] sm:$0xff]
    %v2106 = vld [vmem:[%s2102 + $0x18] sm:$0xff]
    %v2107 = vld [vmem:[%s2102 + $0x20] sm:$0xff]
    %v2108 = vld [vmem:[%s2102 + $0x28] sm:$0xff]
    %v2109 = vld [vmem:[%s2102 + $0x30] sm:$0xff]
    %v2110 = vld [vmem:[%s2102 + $0x38] sm:$0xff]
    %v2111 = vld [vmem:[%s2102 + $0x40] sm:$0xff]
    %v2112 = vld [vmem:[%s2102 + $0x48] sm:$0xff]
    %v2113 = vld [vmem:[%s2102 + $0x50] sm:$0xff]
    %v2114 = vld [vmem:[%s2102 + $0x58] sm:$0xff]
    %v2115 = vld [vmem:[%s2102 + $0x60] sm:$0xff]
    %v2116 = vld [vmem:[%s2102 + $0x68] sm:$0xff]
    %v2117 = vld [vmem:[%s2102 + $0x70] sm:$0xff]
    %v2118 = vld [vmem:[%s2102 + $0x78] sm:$0xff]
    %s2119 = scalar_lea.vmem %s31, 1
    %v2120 = vld [vmem:[%s2119] sm:$0x1]
    %v2122 = vlaneseq
    %v2123 = vshrl.u32 %v2122, 7
    %v2124 = vsub.s32 0, %v2123
    %v2125 = vrot.slane %v2120, %v2124
    %2127 = vmatprep.subr.mxu0 0.0
    %2128 = vmatpush1.msra.mxu0 %v2103
    %2129 = vmatprep.subr.mxu0 0.0
    %2130 = vmatpush1.msra.mxu0 %v2104
    %2131 = vmatprep.subr.mxu0 0.0
    %2132 = vmatpush1.msra.mxu0 %v2105
    %2133 = vmatprep.subr.mxu0 0.0
    %2134 = vmatpush1.msra.mxu0 %v2106
    %2135 = vmatprep.subr.mxu0 0.0
    %2136 = vmatpush1.msra.mxu0 %v2107
    %2137 = vmatprep.subr.mxu0 0.0
    %2138 = vmatpush1.msra.mxu0 %v2108
    %2139 = vmatprep.subr.mxu0 0.0
    %2140 = vmatpush1.msra.mxu0 %v2109
    %2141 = vmatprep.subr.mxu0 0.0
    %2142 = vmatpush1.msra.mxu0 %v2110
    %2143 = vmatprep.subr.mxu0 0.0
    %2144 = vmatpush1.msra.mxu0 %v2111
    %2145 = vmatprep.subr.mxu0 0.0
    %2146 = vmatpush1.msra.mxu0 %v2112
    %2147 = vmatprep.subr.mxu0 0.0
    %2148 = vmatpush1.msra.mxu0 %v2113
    %2149 = vmatprep.subr.mxu0 0.0
    %2150 = vmatpush1.msra.mxu0 %v2114
    %2151 = vmatprep.subr.mxu0 0.0
    %2152 = vmatpush1.msra.mxu0 %v2115
    %2153 = vmatprep.subr.mxu0 0.0
    %2154 = vmatpush1.msra.mxu0 %v2116
    %2155 = vmatprep.subr.mxu0 0.0
    %2156 = vmatpush1.msra.mxu0 %v2117
    %2157 = vmatprep.subr.mxu0 0.0
    %2158 = vmatpush1.msra.mxu0 %v2118
    %2159 = vmatprep.subr.mxu0 0.0
    %2160 = vmatpush1.msra.mxu0 0.0
    %2161 = vmatprep.subr.mxu0 0.0
    %2162 = vmatpush1.msra.mxu0 0.0
    %2163 = vmatprep.subr.mxu0 0.0
    %2164 = vmatpush1.msra.mxu0 0.0
    %2165 = vmatprep.subr.mxu0 0.0
    %2166 = vmatpush1.msra.mxu0 0.0
    %2167 = vmatprep.subr.mxu0 0.0
    %2168 = vmatpush1.msra.mxu0 0.0
    %2169 = vmatprep.subr.mxu0 0.0
    %2170 = vmatpush1.msra.mxu0 0.0
    %2171 = vmatprep.subr.mxu0 0.0
    %2172 = vmatpush1.msra.mxu0 0.0
    %2173 = vmatprep.subr.mxu0 0.0
    %2174 = vmatpush1.msra.mxu0 0.0
    %2175 = vmatprep.subr.mxu0 0.0
    %2176 = vmatpush1.msra.mxu0 0.0
    %2177 = vmatprep.subr.mxu0 0.0
    %2178 = vmatpush1.msra.mxu0 0.0
    %2179 = vmatprep.subr.mxu0 0.0
    %2180 = vmatpush1.msra.mxu0 0.0
    %2181 = vmatprep.subr.mxu0 0.0
    %2182 = vmatpush1.msra.mxu0 0.0
    %2183 = vmatprep.subr.mxu0 0.0
    %2184 = vmatpush1.msra.mxu0 0.0
    %2185 = vmatprep.subr.mxu0 0.0
    %2186 = vmatpush1.msra.mxu0 0.0
    %2187 = vmatprep.subr.mxu0 0.0
    %2188 = vmatpush1.msra.mxu0 0.0
    %2189 = vmatprep.subr.mxu0 0.0
    %2190 = vmatpush1.msra.mxu0 0.0
    %2191 = vmatprep.mubr.f32.mxu0 0.0
    %2192 = vmatmul.mubr.f32.gmra.mrb[0].mxu0 %v2096
    %v2193 = vpop.f32.mrb[0].mxu0
    %v2194 = vadd.f32 %v2125, %v2193
    %v2195 = vpop.f32.mrb[0].mxu0
    %2196 = vmatprep.mubr.f32.mxu0 0.0
    %2197 = vmatmul.mubr.f32.gmra.mrb[0].mxu0 %v2097
    %v2198 = vpop.f32.mrb[0].mxu0
    %v2199 = vadd.f32 %v2125, %v2198
    %v2200 = vpop.f32.mrb[0].mxu0
    %2201 = vmatprep.mubr.f32.mxu0 0.0
    %2202 = vmatmul.mubr.f32.gmra.mrb[0].mxu0 %v2098
    %v2203 = vpop.f32.mrb[0].mxu0
    %v2204 = vadd.f32 %v2125, %v2203
    %v2205 = vpop.f32.mrb[0].mxu0
    %2206 = vmatprep.mubr.f32.mxu0 0.0
    %2207 = vmatmul.mubr.f32.gmra.mrb[0].mxu0 %v2099
    %v2208 = vpop.f32.mrb[0].mxu0
    %v2209 = vadd.f32 %v2125, %v2208
    %v2210 = vpop.f32.mrb[0].mxu0
    %2211 = vmatprep.mubr.f32.mxu0 0.0
    %2212 = vmatmul.mubr.f32.gmra.mrb[0].mxu0 %v2100
    %v2213 = vpop.f32.mrb[0].mxu0
    %v2214 = vadd.f32 %v2125, %v2213
    %v2215 = vpop.f32.mrb[0].mxu0
    %2216 = vmatprep.mubr.f32.mxu0 0.0
    %2217 = vmatmul.mubr.f32.gmra.mrb[0].mxu0 %v2101
    %v2218 = vpop.f32.mrb[0].mxu0
    %v2219 = vadd.f32 %v2125, %v2218
    %v2220 = vpop.f32.mrb[0].mxu0
    %2221 = vdwg.mxu0
    %v2222 = vxor.u32 %v2194, 2147483648
    %v2223 = vxor.u32 %v2199, 2147483648
    %v2224 = vxor.u32 %v2204, 2147483648
    %v2225 = vxor.u32 %v2209, 2147483648
    %v2226 = vxor.u32 %v2214, 2147483648
    %v2227 = vxor.u32 %v2219, 2147483648
    %v2228 = vmul.f32 %v2222, 1.442695
    %v2229 = vpow.pop %v2228
    %v2230 = vmul.f32 %v2223, 1.442695
    %v2231 = vpow.pop %v2230
    %v2232 = vmul.f32 %v2224, 1.442695
    %v2233 = vpow.pop %v2232
    %v2234 = vmul.f32 %v2225, 1.442695
    %v2235 = vpow.pop %v2234
    %v2236 = vmul.f32 %v2226, 1.442695
    %v2237 = vpow.pop %v2236
    %v2238 = vmul.f32 %v2227, 1.442695
    %v2239 = vpow.pop %v2238
    %v2240 = vadd.f32 %v2229, 1.0
    %v2241 = vadd.f32 %v2231, 1.0
    %v2242 = vadd.f32 %v2233, 1.0
    %v2243 = vadd.f32 %v2235, 1.0
    %v2244 = vadd.f32 %v2237, 1.0
    %v2245 = vadd.f32 %v2239, 1.0
    %v2246 = vrcp.pop %v2240
    %v2247 = vmul.f32 1.0, %v2246
    %v2248 = vrcp.pop %v2241
    %v2249 = vmul.f32 1.0, %v2248
    %v2250 = vrcp.pop %v2242
    %v2251 = vmul.f32 1.0, %v2250
    %v2252 = vrcp.pop %v2243
    %v2253 = vmul.f32 1.0, %v2252
    %v2254 = vrcp.pop %v2244
    %v2255 = vmul.f32 1.0, %v2254
    %v2256 = vrcp.pop %v2245
    %v2257 = vmul.f32 1.0, %v2256
    %v2258 = vmul.f32 %v2194, %v2247
    %v2259 = vmul.f32 %v2199, %v2249
    %v2260 = vmul.f32 %v2204, %v2251
    %v2261 = vmul.f32 %v2209, %v2253
    %v2262 = vmul.f32 %v2214, %v2255
    %v2263 = vmul.f32 %v2219, %v2257
    %2264 = vmatprep.subr.mxu0 0.0
    %2265 = vmatpush1.msra.mxu0 %v2258
    %2266 = vmatprep.subr.mxu0 0.0
    %2267 = vmatpush1.msra.mxu0 %v2259
    %2268 = vmatprep.subr.mxu0 0.0
    %2269 = vmatpush1.msra.mxu0 %v2260
    %2270 = vmatprep.subr.mxu0 0.0
    %2271 = vmatpush1.msra.mxu0 %v2261
    %2272 = vmatprep.subr.mxu0 0.0
    %2273 = vmatpush1.msra.mxu0 %v2262
    %2274 = vmatprep.subr.mxu0 0.0
    %2275 = vmatpush1.msra.mxu0 %v2263
    %2276 = vmatprep.subr.mxu0 0.0
    %2277 = vmatpush1.msra.mxu0 0.0
    %2278 = vmatprep.subr.mxu0 0.0
    %2279 = vmatpush1.msra.mxu0 0.0
    %2280 = vmatprep.subr.mxu0 0.0
    %2281 = vmatpush1.msra.mxu0 0.0
    %2282 = vmatprep.subr.mxu0 0.0
    %2283 = vmatpush1.msra.mxu0 0.0
    %2284 = vmatprep.subr.mxu0 0.0
    %2285 = vmatpush1.msra.mxu0 0.0
    %2286 = vmatprep.subr.mxu0 0.0
    %2287 = vmatpush1.msra.mxu0 0.0
    %2288 = vmatprep.subr.mxu0 0.0
    %2289 = vmatpush1.msra.mxu0 0.0
    %2290 = vmatprep.subr.mxu0 0.0
    %2291 = vmatpush1.msra.mxu0 0.0
    %2292 = vmatprep.subr.mxu0 0.0
    %2293 = vmatpush1.msra.mxu0 0.0
    %2294 = vmatprep.subr.mxu0 0.0
    %2295 = vmatpush1.msra.mxu0 0.0
    %2296 = vmatprep.subr.mxu0 0.0
    %2297 = vmatpush1.msra.mxu0 0.0
    %2298 = vmatprep.subr.mxu0 0.0
    %2299 = vmatpush1.msra.mxu0 0.0
    %2300 = vmatprep.subr.mxu0 0.0
    %2301 = vmatpush1.msra.mxu0 0.0
    %2302 = vmatprep.subr.mxu0 0.0
    %2303 = vmatpush1.msra.mxu0 0.0
    %2304 = vmatprep.subr.mxu0 0.0
    %2305 = vmatpush1.msra.mxu0 0.0
    %2306 = vmatprep.subr.mxu0 0.0
    %2307 = vmatpush1.msra.mxu0 0.0
    %2308 = vmatprep.subr.mxu0 0.0
    %2309 = vmatpush1.msra.mxu0 0.0
    %2310 = vmatprep.subr.mxu0 0.0
    %2311 = vmatpush1.msra.mxu0 0.0
    %2312 = vmatprep.subr.mxu0 0.0
    %2313 = vmatpush1.msra.mxu0 0.0
    %2314 = vmatprep.subr.mxu0 0.0
    %2315 = vmatpush1.msra.mxu0 0.0
    %2316 = vmatprep.subr.mxu0 0.0
    %2317 = vmatpush1.msra.mxu0 0.0
    %2318 = vmatprep.subr.mxu0 0.0
    %2319 = vmatpush1.msra.mxu0 0.0
    %2320 = vmatprep.subr.mxu0 0.0
    %2321 = vmatpush1.msra.mxu0 0.0
    %2322 = vmatprep.subr.mxu0 0.0
    %2323 = vmatpush1.msra.mxu0 0.0
    %2324 = vmatprep.subr.mxu0 0.0
    %2325 = vmatpush1.msra.mxu0 0.0
    %2326 = vmatprep.subr.mxu0 0.0
    %2327 = vmatpush1.msra.mxu0 0.0
    %2328 = vmatprep.mubr.f32.mxu0 0.0
    %2329 = vmatmul.mubr.f32.gmra.mrb[0].mxu0 %v1263
    %v2330 = vpop.f32.mrb[0].mxu0
    %v2331 = vadd.f32 0.0, %v2330
    %v2332 = vpop.f32.mrb[0].mxu0
    %2333 = vmatprep.mubr.f32.mxu0 0.0
    %2334 = vmatmul.mubr.f32.gmra.mrb[0].mxu0 %v1266
    %v2335 = vpop.f32.mrb[0].mxu0
    %v2336 = vadd.f32 0.0, %v2335
    %v2337 = vpop.f32.mrb[0].mxu0
    %2338 = vdwg.mxu0
    %s2339 = scalar_lea.vmem %s33, 128
    %v2340 = vld [vmem:[%s2339] sm:$0xff]
    %v2341 = vld [vmem:[%s2339 + $0x8] sm:$0xff]
    %v2342 = vld [vmem:[%s2339 + $0x10] sm:$0xff]
    %v2343 = vld [vmem:[%s2339 + $0x18] sm:$0xff]
    %v2344 = vld [vmem:[%s2339 + $0x20] sm:$0xff]
    %v2345 = vld [vmem:[%s2339 + $0x28] sm:$0xff]
    %v2346 = vld [vmem:[%s2339 + $0x30] sm:$0xff]
    %v2347 = vld [vmem:[%s2339 + $0x38] sm:$0xff]
    %v2348 = vld [vmem:[%s2339 + $0x40] sm:$0xff]
    %v2349 = vld [vmem:[%s2339 + $0x48] sm:$0xff]
    %v2350 = vld [vmem:[%s2339 + $0x50] sm:$0xff]
    %v2351 = vld [vmem:[%s2339 + $0x58] sm:$0xff]
    %v2352 = vld [vmem:[%s2339 + $0x60] sm:$0xff]
    %v2353 = vld [vmem:[%s2339 + $0x68] sm:$0xff]
    %v2354 = vld [vmem:[%s2339 + $0x70] sm:$0xff]
    %v2355 = vld [vmem:[%s2339 + $0x78] sm:$0xff]
    %s2356 = scalar_lea.vmem %s35, 128
    %v2357 = vld [vmem:[%s2356] sm:$0xff]
    %v2358 = vld [vmem:[%s2356 + $0x8] sm:$0xff]
    %v2359 = vld [vmem:[%s2356 + $0x10] sm:$0xff]
    %v2360 = vld [vmem:[%s2356 + $0x18] sm:$0xff]
    %v2361 = vld [vmem:[%s2356 + $0x20] sm:$0xff]
    %v2362 = vld [vmem:[%s2356 + $0x28] sm:$0xff]
    %v2363 = vld [vmem:[%s2356 + $0x30] sm:$0xff]
    %v2364 = vld [vmem:[%s2356 + $0x38] sm:$0xff]
    %v2365 = vld [vmem:[%s2356 + $0x40] sm:$0xff]
    %v2366 = vld [vmem:[%s2356 + $0x48] sm:$0xff]
    %v2367 = vld [vmem:[%s2356 + $0x50] sm:$0xff]
    %v2368 = vld [vmem:[%s2356 + $0x58] sm:$0xff]
    %v2369 = vld [vmem:[%s2356 + $0x60] sm:$0xff]
    %v2370 = vld [vmem:[%s2356 + $0x68] sm:$0xff]
    %v2371 = vld [vmem:[%s2356 + $0x70] sm:$0xff]
    %v2372 = vld [vmem:[%s2356 + $0x78] sm:$0xff]
    %2373 = vmatprep.subr.mxu0 0.0
    %2374 = vmatpush1.msra.mxu0 %v2357
    %2375 = vmatprep.subr.mxu0 0.0
    %2376 = vmatpush1.msra.mxu0 %v2358
    %2377 = vmatprep.subr.mxu0 0.0
    %2378 = vmatpush1.msra.mxu0 %v2359
    %2379 = vmatprep.subr.mxu0 0.0
    %2380 = vmatpush1.msra.mxu0 %v2360
    %2381 = vmatprep.subr.mxu0 0.0
    %2382 = vmatpush1.msra.mxu0 %v2361
    %2383 = vmatprep.subr.mxu0 0.0
    %2384 = vmatpush1.msra.mxu0 %v2362
    %2385 = vmatprep.subr.mxu0 0.0
    %2386 = vmatpush1.msra.mxu0 %v2363
    %2387 = vmatprep.subr.mxu0 0.0
    %2388 = vmatpush1.msra.mxu0 %v2364
    %2389 = vmatprep.subr.mxu0 0.0
    %2390 = vmatpush1.msra.mxu0 %v2365
    %2391 = vmatprep.subr.mxu0 0.0
    %2392 = vmatpush1.msra.mxu0 %v2366
    %2393 = vmatprep.subr.mxu0 0.0
    %2394 = vmatpush1.msra.mxu0 %v2367
    %2395 = vmatprep.subr.mxu0 0.0
    %2396 = vmatpush1.msra.mxu0 %v2368
    %2397 = vmatprep.subr.mxu0 0.0
    %2398 = vmatpush1.msra.mxu0 %v2369
    %2399 = vmatprep.subr.mxu0 0.0
    %2400 = vmatpush1.msra.mxu0 %v2370
    %2401 = vmatprep.subr.mxu0 0.0
    %2402 = vmatpush1.msra.mxu0 %v2371
    %2403 = vmatprep.subr.mxu0 0.0
    %2404 = vmatpush1.msra.mxu0 %v2372
    %2405 = vmatprep.subr.mxu0 0.0
    %2406 = vmatpush1.msra.mxu0 0.0
    %2407 = vmatprep.subr.mxu0 0.0
    %2408 = vmatpush1.msra.mxu0 0.0
    %2409 = vmatprep.subr.mxu0 0.0
    %2410 = vmatpush1.msra.mxu0 0.0
    %2411 = vmatprep.subr.mxu0 0.0
    %2412 = vmatpush1.msra.mxu0 0.0
    %2413 = vmatprep.subr.mxu0 0.0
    %2414 = vmatpush1.msra.mxu0 0.0
    %2415 = vmatprep.subr.mxu0 0.0
    %2416 = vmatpush1.msra.mxu0 0.0
    %2417 = vmatprep.subr.mxu0 0.0
    %2418 = vmatpush1.msra.mxu0 0.0
    %2419 = vmatprep.subr.mxu0 0.0
    %2420 = vmatpush1.msra.mxu0 0.0
    %2421 = vmatprep.subr.mxu0 0.0
    %2422 = vmatpush1.msra.mxu0 0.0
    %2423 = vmatprep.subr.mxu0 0.0
    %2424 = vmatpush1.msra.mxu0 0.0
    %2425 = vmatprep.subr.mxu0 0.0
    %2426 = vmatpush1.msra.mxu0 0.0
    %2427 = vmatprep.subr.mxu0 0.0
    %2428 = vmatpush1.msra.mxu0 0.0
    %2429 = vmatprep.subr.mxu0 0.0
    %2430 = vmatpush1.msra.mxu0 0.0
    %2431 = vmatprep.subr.mxu0 0.0
    %2432 = vmatpush1.msra.mxu0 0.0
    %2433 = vmatprep.subr.mxu0 0.0
    %2434 = vmatpush1.msra.mxu0 0.0
    %2435 = vmatprep.subr.mxu0 0.0
    %2436 = vmatpush1.msra.mxu0 0.0
    %2437 = vmatprep.mubr.f32.mxu0 0.0
    %2438 = vmatmul.mubr.f32.gmra.mrb[0].mxu0 %v2331
    %v2439 = vpop.f32.mrb[0].mxu0
    %v2440 = vadd.f32 0.0, %v2439
    %v2441 = vpop.f32.mrb[0].mxu0
    %2442 = vmatprep.mubr.f32.mxu0 0.0
    %2443 = vmatmul.mubr.f32.gmra.mrb[0].mxu0 %v2336
    %v2444 = vpop.f32.mrb[0].mxu0
    %v2445 = vadd.f32 0.0, %v2444
    %v2446 = vpop.f32.mrb[0].mxu0
    %2447 = vdwg.mxu0
    %2448 = vmatprep.subr.mxu0 0.0
    %2449 = vmatpush1.msra.mxu0 %v2340
    %2450 = vmatprep.subr.mxu0 0.0
    %2451 = vmatpush1.msra.mxu0 %v2341
    %2452 = vmatprep.subr.mxu0 0.0
    %2453 = vmatpush1.msra.mxu0 %v2342
    %2454 = vmatprep.subr.mxu0 0.0
    %2455 = vmatpush1.msra.mxu0 %v2343
    %2456 = vmatprep.subr.mxu0 0.0
    %2457 = vmatpush1.msra.mxu0 %v2344
    %2458 = vmatprep.subr.mxu0 0.0
    %2459 = vmatpush1.msra.mxu0 %v2345
    %2460 = vmatprep.subr.mxu0 0.0
    %2461 = vmatpush1.msra.mxu0 %v2346
    %2462 = vmatprep.subr.mxu0 0.0
    %2463 = vmatpush1.msra.mxu0 %v2347
    %2464 = vmatprep.subr.mxu0 0.0
    %2465 = vmatpush1.msra.mxu0 %v2348
    %2466 = vmatprep.subr.mxu0 0.0
    %2467 = vmatpush1.msra.mxu0 %v2349
    %2468 = vmatprep.subr.mxu0 0.0
    %2469 = vmatpush1.msra.mxu0 %v2350
    %2470 = vmatprep.subr.mxu0 0.0
    %2471 = vmatpush1.msra.mxu0 %v2351
    %2472 = vmatprep.subr.mxu0 0.0
    %2473 = vmatpush1.msra.mxu0 %v2352
    %2474 = vmatprep.subr.mxu0 0.0
    %2475 = vmatpush1.msra.mxu0 %v2353
    %2476 = vmatprep.subr.mxu0 0.0
    %2477 = vmatpush1.msra.mxu0 %v2354
    %2478 = vmatprep.subr.mxu0 0.0
    %2479 = vmatpush1.msra.mxu0 %v2355
    %2480 = vmatprep.subr.mxu0 0.0
    %2481 = vmatpush1.msra.mxu0 0.0
    %2482 = vmatprep.subr.mxu0 0.0
    %2483 = vmatpush1.msra.mxu0 0.0
    %2484 = vmatprep.subr.mxu0 0.0
    %2485 = vmatpush1.msra.mxu0 0.0
    %2486 = vmatprep.subr.mxu0 0.0
    %2487 = vmatpush1.msra.mxu0 0.0
    %2488 = vmatprep.subr.mxu0 0.0
    %2489 = vmatpush1.msra.mxu0 0.0
    %2490 = vmatprep.subr.mxu0 0.0
    %2491 = vmatpush1.msra.mxu0 0.0
    %2492 = vmatprep.subr.mxu0 0.0
    %2493 = vmatpush1.msra.mxu0 0.0
    %2494 = vmatprep.subr.mxu0 0.0
    %2495 = vmatpush1.msra.mxu0 0.0
    %2496 = vmatprep.subr.mxu0 0.0
    %2497 = vmatpush1.msra.mxu0 0.0
    %2498 = vmatprep.subr.mxu0 0.0
    %2499 = vmatpush1.msra.mxu0 0.0
    %2500 = vmatprep.subr.mxu0 0.0
    %2501 = vmatpush1.msra.mxu0 0.0
    %2502 = vmatprep.subr.mxu0 0.0
    %2503 = vmatpush1.msra.mxu0 0.0
    %2504 = vmatprep.subr.mxu0 0.0
    %2505 = vmatpush1.msra.mxu0 0.0
    %2506 = vmatprep.subr.mxu0 0.0
    %2507 = vmatpush1.msra.mxu0 0.0
    %2508 = vmatprep.subr.mxu0 0.0
    %2509 = vmatpush1.msra.mxu0 0.0
    %2510 = vmatprep.subr.mxu0 0.0
    %2511 = vmatpush1.msra.mxu0 0.0
    %2512 = vmatprep.mubr.f32.mxu0 0.0
    %2513 = vmatmul.mubr.f32.gmra.mrb[0].mxu0 %v1650
    %v2514 = vpop.f32.mrb[0].mxu0
    %v2515 = vadd.f32 %v2440, %v2514
    %v2516 = vpop.f32.mrb[0].mxu0
    %2517 = vmatprep.mubr.f32.mxu0 0.0
    %2518 = vmatmul.mubr.f32.gmra.mrb[0].mxu0 %v1651
    %v2519 = vpop.f32.mrb[0].mxu0
    %v2520 = vadd.f32 %v2445, %v2519
    %v2521 = vpop.f32.mrb[0].mxu0
    %2522 = vdwg.mxu0
    %s2523 = scalar_lea.vmem %s37, 1
    %v2524 = vld [vmem:[%s2523] sm:$0x1]
    %v2526 = vlaneseq
    %v2527 = vshrl.u32 %v2526, 7
    %v2528 = vsub.s32 0, %v2527
    %v2529 = vrot.slane %v2524, %v2528
    %v2531 = vadd.f32 %v2515, %v2529
    %v2532 = vadd.f32 %v2520, %v2529
    %v2533 = vxor.u32 %v2531, 2147483648
    %v2534 = vxor.u32 %v2532, 2147483648
    %v2535 = vmul.f32 %v2533, 1.442695
    %v2536 = vpow.pop %v2535
    %v2537 = vmul.f32 %v2534, 1.442695
    %v2538 = vpow.pop %v2537
    %v2539 = vadd.f32 %v2536, 1.0
    %v2540 = vadd.f32 %v2538, 1.0
    %v2541 = vrcp.pop %v2539
    %v2542 = vmul.f32 1.0, %v2541
    %v2543 = vrcp.pop %v2540
    %v2544 = vmul.f32 1.0, %v2543
    %v2545 = vmul.f32 %v2531, %v2542
    %v2546 = vmul.f32 %v2532, %v2544
    %s2547 = scalar_lea.vmem %s39, 128
    %v2548 = vld [vmem:[%s2547] sm:$0xff]
    %v2549 = vld [vmem:[%s2547 + $0x8] sm:$0xff]
    %v2550 = vld [vmem:[%s2547 + $0x10] sm:$0xff]
    %v2551 = vld [vmem:[%s2547 + $0x18] sm:$0xff]
    %v2552 = vld [vmem:[%s2547 + $0x20] sm:$0xff]
    %v2553 = vld [vmem:[%s2547 + $0x28] sm:$0xff]
    %v2554 = vld [vmem:[%s2547 + $0x30] sm:$0xff]
    %v2555 = vld [vmem:[%s2547 + $0x38] sm:$0xff]
    %v2556 = vld [vmem:[%s2547 + $0x40] sm:$0xff]
    %v2557 = vld [vmem:[%s2547 + $0x48] sm:$0xff]
    %v2558 = vld [vmem:[%s2547 + $0x50] sm:$0xff]
    %v2559 = vld [vmem:[%s2547 + $0x58] sm:$0xff]
    %v2560 = vld [vmem:[%s2547 + $0x60] sm:$0xff]
    %v2561 = vld [vmem:[%s2547 + $0x68] sm:$0xff]
    %v2562 = vld [vmem:[%s2547 + $0x70] sm:$0xff]
    %v2563 = vld [vmem:[%s2547 + $0x78] sm:$0xff]
    %s2564 = scalar_lea.vmem %s41, 1
    %v2565 = vld [vmem:[%s2564] sm:$0x1]
    %v2567 = vlaneseq
    %v2568 = vshrl.u32 %v2567, 7
    %v2569 = vsub.s32 0, %v2568
    %v2570 = vrot.slane %v2565, %v2569
    %2572 = vmatprep.subr.mxu0 0.0
    %2573 = vmatpush1.msra.mxu0 %v2548
    %2574 = vmatprep.subr.mxu0 0.0
    %2575 = vmatpush1.msra.mxu0 %v2549
    %2576 = vmatprep.subr.mxu0 0.0
    %2577 = vmatpush1.msra.mxu0 %v2550
    %2578 = vmatprep.subr.mxu0 0.0
    %2579 = vmatpush1.msra.mxu0 %v2551
    %2580 = vmatprep.subr.mxu0 0.0
    %2581 = vmatpush1.msra.mxu0 %v2552
    %2582 = vmatprep.subr.mxu0 0.0
    %2583 = vmatpush1.msra.mxu0 %v2553
    %2584 = vmatprep.subr.mxu0 0.0
    %2585 = vmatpush1.msra.mxu0 %v2554
    %2586 = vmatprep.subr.mxu0 0.0
    %2587 = vmatpush1.msra.mxu0 %v2555
    %2588 = vmatprep.subr.mxu0 0.0
    %2589 = vmatpush1.msra.mxu0 %v2556
    %2590 = vmatprep.subr.mxu0 0.0
    %2591 = vmatpush1.msra.mxu0 %v2557
    %2592 = vmatprep.subr.mxu0 0.0
    %2593 = vmatpush1.msra.mxu0 %v2558
    %2594 = vmatprep.subr.mxu0 0.0
    %2595 = vmatpush1.msra.mxu0 %v2559
    %2596 = vmatprep.subr.mxu0 0.0
    %2597 = vmatpush1.msra.mxu0 %v2560
    %2598 = vmatprep.subr.mxu0 0.0
    %2599 = vmatpush1.msra.mxu0 %v2561
    %2600 = vmatprep.subr.mxu0 0.0
    %2601 = vmatpush1.msra.mxu0 %v2562
    %2602 = vmatprep.subr.mxu0 0.0
    %2603 = vmatpush1.msra.mxu0 %v2563
    %2604 = vmatprep.subr.mxu0 0.0
    %2605 = vmatpush1.msra.mxu0 0.0
    %2606 = vmatprep.subr.mxu0 0.0
    %2607 = vmatpush1.msra.mxu0 0.0
    %2608 = vmatprep.subr.mxu0 0.0
    %2609 = vmatpush1.msra.mxu0 0.0
    %2610 = vmatprep.subr.mxu0 0.0
    %2611 = vmatpush1.msra.mxu0 0.0
    %2612 = vmatprep.subr.mxu0 0.0
    %2613 = vmatpush1.msra.mxu0 0.0
    %2614 = vmatprep.subr.mxu0 0.0
    %2615 = vmatpush1.msra.mxu0 0.0
    %2616 = vmatprep.subr.mxu0 0.0
    %2617 = vmatpush1.msra.mxu0 0.0
    %2618 = vmatprep.subr.mxu0 0.0
    %2619 = vmatpush1.msra.mxu0 0.0
    %2620 = vmatprep.subr.mxu0 0.0
    %2621 = vmatpush1.msra.mxu0 0.0
    %2622 = vmatprep.subr.mxu0 0.0
    %2623 = vmatpush1.msra.mxu0 0.0
    %2624 = vmatprep.subr.mxu0 0.0
    %2625 = vmatpush1.msra.mxu0 0.0
    %2626 = vmatprep.subr.mxu0 0.0
    %2627 = vmatpush1.msra.mxu0 0.0
    %2628 = vmatprep.subr.mxu0 0.0
    %2629 = vmatpush1.msra.mxu0 0.0
    %2630 = vmatprep.subr.mxu0 0.0
    %2631 = vmatpush1.msra.mxu0 0.0
    %2632 = vmatprep.subr.mxu0 0.0
    %2633 = vmatpush1.msra.mxu0 0.0
    %2634 = vmatprep.subr.mxu0 0.0
    %2635 = vmatpush1.msra.mxu0 0.0
    %2636 = vmatprep.mubr.f32.mxu0 0.0
    %2637 = vmatmul.mubr.f32.gmra.mrb[0].mxu0 %v2545
    %v2638 = vpop.f32.mrb[0].mxu0
    %v2639 = vadd.f32 %v2570, %v2638
    %v2640 = vpop.f32.mrb[0].mxu0
    %2641 = vmatprep.mubr.f32.mxu0 0.0
    %2642 = vmatmul.mubr.f32.gmra.mrb[0].mxu0 %v2546
    %v2643 = vpop.f32.mrb[0].mxu0
    %v2644 = vadd.f32 %v2570, %v2643
    %v2645 = vpop.f32.mrb[0].mxu0
    %2646 = vdwg.mxu0
    %v2647 = vadd.f32 %v1650, %v2639
    %v2648 = vadd.f32 %v1651, %v2644
    %2649 = vst [vmem:[#allocation2] sm:$0xff] %v2647
    %2650 = vst [vmem:[#allocation2 + $0x8] sm:$0xff] %v2648
    %v2651 = vld [vmem:[#allocation2] sm:$0xff]
    %v2652 = vld [vmem:[#allocation2 + $0x8] sm:$0xff]
    %v2653 = vld [vmem:[%s43] sm:$0xff]
    %v2654 = vld [vmem:[%s43 + $0x8] sm:$0xff]
    %v2655 = vld [vmem:[%s43 + $0x10] sm:$0xff]
    %v2656 = vld [vmem:[%s43 + $0x18] sm:$0xff]
    %v2657 = vld [vmem:[%s43 + $0x20] sm:$0xff]
    %v2658 = vld [vmem:[%s43 + $0x28] sm:$0xff]
    %v2659 = vld [vmem:[%s43 + $0x30] sm:$0xff]
    %v2660 = vld [vmem:[%s43 + $0x38] sm:$0xff]
    %v2661 = vld [vmem:[%s43 + $0x40] sm:$0xff]
    %v2662 = vld [vmem:[%s43 + $0x48] sm:$0xff]
    %v2663 = vld [vmem:[%s43 + $0x50] sm:$0xff]
    %v2664 = vld [vmem:[%s43 + $0x58] sm:$0xff]
    %v2665 = vld [vmem:[%s43 + $0x60] sm:$0xff]
    %v2666 = vld [vmem:[%s43 + $0x68] sm:$0xff]
    %v2667 = vld [vmem:[%s43 + $0x70] sm:$0xff]
    %v2668 = vld [vmem:[%s43 + $0x78] sm:$0xff]
    %v2669 = vld [vmem:[%s45] sm:$0x1]
    %v2671 = vlaneseq
    %v2672 = vshrl.u32 %v2671, 7
    %v2673 = vsub.s32 0, %v2672
    %v2674 = vrot.slane %v2669, %v2673
    %2676 = vmatprep.subr.mxu0 0.0
    %2677 = vmatpush1.msra.mxu0 %v2653
    %2678 = vmatprep.subr.mxu0 0.0
    %2679 = vmatpush1.msra.mxu0 %v2654
    %2680 = vmatprep.subr.mxu0 0.0
    %2681 = vmatpush1.msra.mxu0 %v2655
    %2682 = vmatprep.subr.mxu0 0.0
    %2683 = vmatpush1.msra.mxu0 %v2656
    %2684 = vmatprep.subr.mxu0 0.0
    %2685 = vmatpush1.msra.mxu0 %v2657
    %2686 = vmatprep.subr.mxu0 0.0
    %2687 = vmatpush1.msra.mxu0 %v2658
    %2688 = vmatprep.subr.mxu0 0.0
    %2689 = vmatpush1.msra.mxu0 %v2659
    %2690 = vmatprep.subr.mxu0 0.0
    %2691 = vmatpush1.msra.mxu0 %v2660
    %2692 = vmatprep.subr.mxu0 0.0
    %2693 = vmatpush1.msra.mxu0 %v2661
    %2694 = vmatprep.subr.mxu0 0.0
    %2695 = vmatpush1.msra.mxu0 %v2662
    %2696 = vmatprep.subr.mxu0 0.0
    %2697 = vmatpush1.msra.mxu0 %v2663
    %2698 = vmatprep.subr.mxu0 0.0
    %2699 = vmatpush1.msra.mxu0 %v2664
    %2700 = vmatprep.subr.mxu0 0.0
    %2701 = vmatpush1.msra.mxu0 %v2665
    %2702 = vmatprep.subr.mxu0 0.0
    %2703 = vmatpush1.msra.mxu0 %v2666
    %2704 = vmatprep.subr.mxu0 0.0
    %2705 = vmatpush1.msra.mxu0 %v2667
    %2706 = vmatprep.subr.mxu0 0.0
    %2707 = vmatpush1.msra.mxu0 %v2668
    %2708 = vmatprep.subr.mxu0 0.0
    %2709 = vmatpush1.msra.mxu0 0.0
    %2710 = vmatprep.subr.mxu0 0.0
    %2711 = vmatpush1.msra.mxu0 0.0
    %2712 = vmatprep.subr.mxu0 0.0
    %2713 = vmatpush1.msra.mxu0 0.0
    %2714 = vmatprep.subr.mxu0 0.0
    %2715 = vmatpush1.msra.mxu0 0.0
    %2716 = vmatprep.subr.mxu0 0.0
    %2717 = vmatpush1.msra.mxu0 0.0
    %2718 = vmatprep.subr.mxu0 0.0
    %2719 = vmatpush1.msra.mxu0 0.0
    %2720 = vmatprep.subr.mxu0 0.0
    %2721 = vmatpush1.msra.mxu0 0.0
    %2722 = vmatprep.subr.mxu0 0.0
    %2723 = vmatpush1.msra.mxu0 0.0
    %2724 = vmatprep.subr.mxu0 0.0
    %2725 = vmatpush1.msra.mxu0 0.0
    %2726 = vmatprep.subr.mxu0 0.0
    %2727 = vmatpush1.msra.mxu0 0.0
    %2728 = vmatprep.subr.mxu0 0.0
    %2729 = vmatpush1.msra.mxu0 0.0
    %2730 = vmatprep.subr.mxu0 0.0
    %2731 = vmatpush1.msra.mxu0 0.0
    %2732 = vmatprep.subr.mxu0 0.0
    %2733 = vmatpush1.msra.mxu0 0.0
    %2734 = vmatprep.subr.mxu0 0.0
    %2735 = vmatpush1.msra.mxu0 0.0
    %2736 = vmatprep.subr.mxu0 0.0
    %2737 = vmatpush1.msra.mxu0 0.0
    %2738 = vmatprep.subr.mxu0 0.0
    %2739 = vmatpush1.msra.mxu0 0.0
    %2740 = vmatprep.mubr.f32.mxu0 0.0
    %2741 = vmatmul.mubr.f32.gmra.mrb[0].mxu0 %v2651
    %v2742 = vpop.f32.mrb[0].mxu0
    %v2743 = vadd.f32 %v2674, %v2742
    %v2744 = vpop.f32.mrb[0].mxu0
    %2745 = vmatprep.mubr.f32.mxu0 0.0
    %2746 = vmatmul.mubr.f32.gmra.mrb[0].mxu0 %v2652
    %v2747 = vpop.f32.mrb[0].mxu0
    %v2748 = vadd.f32 %v2674, %v2747
    %v2749 = vpop.f32.mrb[0].mxu0
    %2750 = vdwg.mxu0
    %v2751 = vxor.u32 %v2743, 2147483648
    %v2752 = vxor.u32 %v2748, 2147483648
    %v2753 = vmul.f32 %v2751, 1.442695
    %v2754 = vpow.pop %v2753
    %v2755 = vmul.f32 %v2752, 1.442695
    %v2756 = vpow.pop %v2755
    %v2757 = vadd.f32 %v2754, 1.0
    %v2758 = vadd.f32 %v2756, 1.0
    %v2759 = vrcp.pop %v2757
    %v2760 = vmul.f32 1.0, %v2759
    %v2761 = vrcp.pop %v2758
    %v2762 = vmul.f32 1.0, %v2761
    %v2763 = vmul.f32 %v2743, %v2760
    %v2764 = vmul.f32 %v2748, %v2762
    %v2765 = vld [vmem:[%s47] sm:$0xff]
    %v2766 = vld [vmem:[%s47 + $0x8] sm:$0xff]
    %v2767 = vld [vmem:[%s47 + $0x10] sm:$0xff]
    %v2768 = vld [vmem:[%s47 + $0x18] sm:$0xff]
    %v2769 = vld [vmem:[%s47 + $0x20] sm:$0xff]
    %v2770 = vld [vmem:[%s47 + $0x28] sm:$0xff]
    %v2771 = vld [vmem:[%s47 + $0x30] sm:$0xff]
    %v2772 = vld [vmem:[%s47 + $0x38] sm:$0xff]
    %v2773 = vld [vmem:[%s47 + $0x40] sm:$0xff]
    %v2774 = vld [vmem:[%s47 + $0x48] sm:$0xff]
    %v2775 = vld [vmem:[%s47 + $0x50] sm:$0xff]
    %v2776 = vld [vmem:[%s47 + $0x58] sm:$0xff]
    %v2777 = vld [vmem:[%s47 + $0x60] sm:$0xff]
    %v2778 = vld [vmem:[%s47 + $0x68] sm:$0xff]
    %v2779 = vld [vmem:[%s47 + $0x70] sm:$0xff]
    %v2780 = vld [vmem:[%s47 + $0x78] sm:$0xff]
    %v2781 = vld [vmem:[%s49] sm:$0x1]
    %v2783 = vlaneseq
    %v2784 = vshrl.u32 %v2783, 7
    %v2785 = vsub.s32 0, %v2784
    %v2786 = vrot.slane %v2781, %v2785
    %2788 = vmatprep.subr.mxu0 0.0
    %2789 = vmatpush1.msra.mxu0 %v2765
    %2790 = vmatprep.subr.mxu0 0.0
    %2791 = vmatpush1.msra.mxu0 %v2766
    %2792 = vmatprep.subr.mxu0 0.0
    %2793 = vmatpush1.msra.mxu0 %v2767
    %2794 = vmatprep.subr.mxu0 0.0
    %2795 = vmatpush1.msra.mxu0 %v2768
    %2796 = vmatprep.subr.mxu0 0.0
    %2797 = vmatpush1.msra.mxu0 %v2769
    %2798 = vmatprep.subr.mxu0 0.0
    %2799 = vmatpush1.msra.mxu0 %v2770
    %2800 = vmatprep.subr.mxu0 0.0
    %2801 = vmatpush1.msra.mxu0 %v2771
    %2802 = vmatprep.subr.mxu0 0.0
    %2803 = vmatpush1.msra.mxu0 %v2772
    %2804 = vmatprep.subr.mxu0 0.0
    %2805 = vmatpush1.msra.mxu0 %v2773
    %2806 = vmatprep.subr.mxu0 0.0
    %2807 = vmatpush1.msra.mxu0 %v2774
    %2808 = vmatprep.subr.mxu0 0.0
    %2809 = vmatpush1.msra.mxu0 %v2775
    %2810 = vmatprep.subr.mxu0 0.0
    %2811 = vmatpush1.msra.mxu0 %v2776
    %2812 = vmatprep.subr.mxu0 0.0
    %2813 = vmatpush1.msra.mxu0 %v2777
    %2814 = vmatprep.subr.mxu0 0.0
    %2815 = vmatpush1.msra.mxu0 %v2778
    %2816 = vmatprep.subr.mxu0 0.0
    %2817 = vmatpush1.msra.mxu0 %v2779
    %2818 = vmatprep.subr.mxu0 0.0
    %2819 = vmatpush1.msra.mxu0 %v2780
    %2820 = vmatprep.subr.mxu0 0.0
    %2821 = vmatpush1.msra.mxu0 0.0
    %2822 = vmatprep.subr.mxu0 0.0
    %2823 = vmatpush1.msra.mxu0 0.0
    %2824 = vmatprep.subr.mxu0 0.0
    %2825 = vmatpush1.msra.mxu0 0.0
    %2826 = vmatprep.subr.mxu0 0.0
    %2827 = vmatpush1.msra.mxu0 0.0
    %2828 = vmatprep.subr.mxu0 0.0
    %2829 = vmatpush1.msra.mxu0 0.0
    %2830 = vmatprep.subr.mxu0 0.0
    %2831 = vmatpush1.msra.mxu0 0.0
    %2832 = vmatprep.subr.mxu0 0.0
    %2833 = vmatpush1.msra.mxu0 0.0
    %2834 = vmatprep.subr.mxu0 0.0
    %2835 = vmatpush1.msra.mxu0 0.0
    %2836 = vmatprep.subr.mxu0 0.0
    %2837 = vmatpush1.msra.mxu0 0.0
    %2838 = vmatprep.subr.mxu0 0.0
    %2839 = vmatpush1.msra.mxu0 0.0
    %2840 = vmatprep.subr.mxu0 0.0
    %2841 = vmatpush1.msra.mxu0 0.0
    %2842 = vmatprep.subr.mxu0 0.0
    %2843 = vmatpush1.msra.mxu0 0.0
    %2844 = vmatprep.subr.mxu0 0.0
    %2845 = vmatpush1.msra.mxu0 0.0
    %2846 = vmatprep.subr.mxu0 0.0
    %2847 = vmatpush1.msra.mxu0 0.0
    %2848 = vmatprep.subr.mxu0 0.0
    %2849 = vmatpush1.msra.mxu0 0.0
    %2850 = vmatprep.subr.mxu0 0.0
    %2851 = vmatpush1.msra.mxu0 0.0
    %2852 = vmatprep.mubr.f32.mxu0 0.0
    %2853 = vmatmul.mubr.f32.gmra.mrb[0].mxu0 %v2763
    %v2854 = vpop.f32.mrb[0].mxu0
    %v2855 = vadd.f32 %v2786, %v2854
    %v2856 = vpop.f32.mrb[0].mxu0
    %2857 = vmatprep.mubr.f32.mxu0 0.0
    %2858 = vmatmul.mubr.f32.gmra.mrb[0].mxu0 %v2764
    %v2859 = vpop.f32.mrb[0].mxu0
    %v2860 = vadd.f32 %v2786, %v2859
    %v2861 = vpop.f32.mrb[0].mxu0
    %2862 = vdwg.mxu0
    %v2863 = vld [vmem:[%s11] sm:$0x3]
    %v2865 = vsel %vm139, %v2863, 0
    %2867 = vmatprep.subr.mxu0 0.0
    %2868 = vmatpush1.msra.mxu0 %v2855
    %2869 = vmatprep.subr.mxu0 0.0
    %2870 = vmatpush1.msra.mxu0 %v2860
    %2871 = vmatprep.subr.mxu0 0.0
    %2872 = vmatpush1.msra.mxu0 0.0
    %2873 = vmatprep.subr.mxu0 0.0
    %2874 = vmatpush1.msra.mxu0 0.0
    %2875 = vmatprep.subr.mxu0 0.0
    %2876 = vmatpush1.msra.mxu0 0.0
    %2877 = vmatprep.subr.mxu0 0.0
    %2878 = vmatpush1.msra.mxu0 0.0
    %2879 = vmatprep.subr.mxu0 0.0
    %2880 = vmatpush1.msra.mxu0 0.0
    %2881 = vmatprep.subr.mxu0 0.0
    %2882 = vmatpush1.msra.mxu0 0.0
    %2883 = vmatprep.subr.mxu0 0.0
    %2884 = vmatpush1.msra.mxu0 0.0
    %2885 = vmatprep.subr.mxu0 0.0
    %2886 = vmatpush1.msra.mxu0 0.0
    %2887 = vmatprep.subr.mxu0 0.0
    %2888 = vmatpush1.msra.mxu0 0.0
    %2889 = vmatprep.subr.mxu0 0.0
    %2890 = vmatpush1.msra.mxu0 0.0
    %2891 = vmatprep.subr.mxu0 0.0
    %2892 = vmatpush1.msra.mxu0 0.0
    %2893 = vmatprep.subr.mxu0 0.0
    %2894 = vmatpush1.msra.mxu0 0.0
    %2895 = vmatprep.subr.mxu0 0.0
    %2896 = vmatpush1.msra.mxu0 0.0
    %2897 = vmatprep.subr.mxu0 0.0
    %2898 = vmatpush1.msra.mxu0 0.0
    %2899 = vmatprep.subr.mxu0 0.0
    %2900 = vmatpush1.msra.mxu0 0.0
    %2901 = vmatprep.subr.mxu0 0.0
    %2902 = vmatpush1.msra.mxu0 0.0
    %2903 = vmatprep.subr.mxu0 0.0
    %2904 = vmatpush1.msra.mxu0 0.0
    %2905 = vmatprep.subr.mxu0 0.0
    %2906 = vmatpush1.msra.mxu0 0.0
    %2907 = vmatprep.subr.mxu0 0.0
    %2908 = vmatpush1.msra.mxu0 0.0
    %2909 = vmatprep.subr.mxu0 0.0
    %2910 = vmatpush1.msra.mxu0 0.0
    %2911 = vmatprep.subr.mxu0 0.0
    %2912 = vmatpush1.msra.mxu0 0.0
    %2913 = vmatprep.subr.mxu0 0.0
    %2914 = vmatpush1.msra.mxu0 0.0
    %2915 = vmatprep.subr.mxu0 0.0
    %2916 = vmatpush1.msra.mxu0 0.0
    %2917 = vmatprep.subr.mxu0 0.0
    %2918 = vmatpush1.msra.mxu0 0.0
    %2919 = vmatprep.subr.mxu0 0.0
    %2920 = vmatpush1.msra.mxu0 0.0
    %2921 = vmatprep.subr.mxu0 0.0
    %2922 = vmatpush1.msra.mxu0 0.0
    %2923 = vmatprep.subr.mxu0 0.0
    %2924 = vmatpush1.msra.mxu0 0.0
    %2925 = vmatprep.subr.mxu0 0.0
    %2926 = vmatpush1.msra.mxu0 0.0
    %2927 = vmatprep.subr.mxu0 0.0
    %2928 = vmatpush1.msra.mxu0 0.0
    %2929 = vmatprep.subr.mxu0 0.0
    %2930 = vmatpush1.msra.mxu0 0.0
    %2931 = vmatprep.mubr.f32.mxu0 0.0
    %2932 = vmatmul.mubr.f32.gmra.mrb[0].mxu0 %v2865
    %v2933 = vpop.f32.mrb[0].mxu0
    %v2934 = vadd.f32 0.0, %v2933
    %v2935 = vpop.f32.mrb[0].mxu0
    %2936 = vdwg.mxu0
    %v2937 = vld [vmem:[%s51] sm:$0xff]
    %v2938 = vld [vmem:[%s51 + $0x8] sm:$0xff]
    %v2939 = vld [vmem:[%s51 + $0x10] sm:$0xff]
    %v2940 = vld [vmem:[%s51 + $0x18] sm:$0xff]
    %v2941 = vld [vmem:[%s51 + $0x20] sm:$0xff]
    %v2942 = vld [vmem:[%s51 + $0x28] sm:$0xff]
    %v2943 = vld [vmem:[%s51 + $0x30] sm:$0xff]
    %v2944 = vld [vmem:[%s51 + $0x38] sm:$0xff]
    %v2945 = vld [vmem:[%s51 + $0x40] sm:$0xff]
    %v2946 = vld [vmem:[%s51 + $0x48] sm:$0xff]
    %v2947 = vld [vmem:[%s51 + $0x50] sm:$0xff]
    %v2948 = vld [vmem:[%s51 + $0x58] sm:$0xff]
    %v2949 = vld [vmem:[%s51 + $0x60] sm:$0xff]
    %v2950 = vld [vmem:[%s51 + $0x68] sm:$0xff]
    %v2951 = vld [vmem:[%s51 + $0x70] sm:$0xff]
    %v2952 = vld [vmem:[%s51 + $0x78] sm:$0xff]
    %v2953 = vld [vmem:[%s53] sm:$0x1]
    %v2955 = vlaneseq
    %v2956 = vshrl.u32 %v2955, 7
    %v2957 = vsub.s32 0, %v2956
    %v2958 = vrot.slane %v2953, %v2957
    %2960 = vmatprep.subr.mxu0 0.0
    %2961 = vmatpush1.msra.mxu0 %v2937
    %2962 = vmatprep.subr.mxu0 0.0
    %2963 = vmatpush1.msra.mxu0 %v2938
    %2964 = vmatprep.subr.mxu0 0.0
    %2965 = vmatpush1.msra.mxu0 %v2939
    %2966 = vmatprep.subr.mxu0 0.0
    %2967 = vmatpush1.msra.mxu0 %v2940
    %2968 = vmatprep.subr.mxu0 0.0
    %2969 = vmatpush1.msra.mxu0 %v2941
    %2970 = vmatprep.subr.mxu0 0.0
    %2971 = vmatpush1.msra.mxu0 %v2942
    %2972 = vmatprep.subr.mxu0 0.0
    %2973 = vmatpush1.msra.mxu0 %v2943
    %2974 = vmatprep.subr.mxu0 0.0
    %2975 = vmatpush1.msra.mxu0 %v2944
    %2976 = vmatprep.subr.mxu0 0.0
    %2977 = vmatpush1.msra.mxu0 %v2945
    %2978 = vmatprep.subr.mxu0 0.0
    %2979 = vmatpush1.msra.mxu0 %v2946
    %2980 = vmatprep.subr.mxu0 0.0
    %2981 = vmatpush1.msra.mxu0 %v2947
    %2982 = vmatprep.subr.mxu0 0.0
    %2983 = vmatpush1.msra.mxu0 %v2948
    %2984 = vmatprep.subr.mxu0 0.0
    %2985 = vmatpush1.msra.mxu0 %v2949
    %2986 = vmatprep.subr.mxu0 0.0
    %2987 = vmatpush1.msra.mxu0 %v2950
    %2988 = vmatprep.subr.mxu0 0.0
    %2989 = vmatpush1.msra.mxu0 %v2951
    %2990 = vmatprep.subr.mxu0 0.0
    %2991 = vmatpush1.msra.mxu0 %v2952
    %2992 = vmatprep.subr.mxu0 0.0
    %2993 = vmatpush1.msra.mxu0 0.0
    %2994 = vmatprep.subr.mxu0 0.0
    %2995 = vmatpush1.msra.mxu0 0.0
    %2996 = vmatprep.subr.mxu0 0.0
    %2997 = vmatpush1.msra.mxu0 0.0
    %2998 = vmatprep.subr.mxu0 0.0
    %2999 = vmatpush1.msra.mxu0 0.0
    %3000 = vmatprep.subr.mxu0 0.0
    %3001 = vmatpush1.msra.mxu0 0.0
    %3002 = vmatprep.subr.mxu0 0.0
    %3003 = vmatpush1.msra.mxu0 0.0
    %3004 = vmatprep.subr.mxu0 0.0
    %3005 = vmatpush1.msra.mxu0 0.0
    %3006 = vmatprep.subr.mxu0 0.0
    %3007 = vmatpush1.msra.mxu0 0.0
    %3008 = vmatprep.subr.mxu0 0.0
    %3009 = vmatpush1.msra.mxu0 0.0
    %3010 = vmatprep.subr.mxu0 0.0
    %3011 = vmatpush1.msra.mxu0 0.0
    %3012 = vmatprep.subr.mxu0 0.0
    %3013 = vmatpush1.msra.mxu0 0.0
    %3014 = vmatprep.subr.mxu0 0.0
    %3015 = vmatpush1.msra.mxu0 0.0
    %3016 = vmatprep.subr.mxu0 0.0
    %3017 = vmatpush1.msra.mxu0 0.0
    %3018 = vmatprep.subr.mxu0 0.0
    %3019 = vmatpush1.msra.mxu0 0.0
    %3020 = vmatprep.subr.mxu0 0.0
    %3021 = vmatpush1.msra.mxu0 0.0
    %3022 = vmatprep.subr.mxu0 0.0
    %3023 = vmatpush1.msra.mxu0 0.0
    %3024 = vmatprep.mubr.f32.mxu0 0.0
    %3025 = vmatmul.mubr.f32.gmra.mrb[0].mxu0 %v2934
    %v3026 = vpop.f32.mrb[0].mxu0
    %v3027 = vadd.f32 %v2958, %v3026
    %v3028 = vpop.f32.mrb[0].mxu0
    %3029 = vdwg.mxu0
    %v3030 = vxor.u32 %v3027, 2147483648
    %v3031 = vmul.f32 %v3030, 1.442695
    %v3032 = vpow.pop %v3031
    %v3033 = vadd.f32 %v3032, 1.0
    %v3034 = vrcp.pop %v3033
    %v3035 = vmul.f32 1.0, %v3034
    %v3036 = vmul.f32 %v3027, %v3035
    %v3037 = vld [vmem:[%s55] sm:$0xff]
    %v3038 = vld [vmem:[%s55 + $0x8] sm:$0xff]
    %v3039 = vld [vmem:[%s55 + $0x10] sm:$0xff]
    %v3040 = vld [vmem:[%s55 + $0x18] sm:$0xff]
    %v3041 = vld [vmem:[%s55 + $0x20] sm:$0xff]
    %v3042 = vld [vmem:[%s55 + $0x28] sm:$0xff]
    %v3043 = vld [vmem:[%s55 + $0x30] sm:$0xff]
    %v3044 = vld [vmem:[%s55 + $0x38] sm:$0xff]
    %v3045 = vld [vmem:[%s55 + $0x40] sm:$0xff]
    %v3046 = vld [vmem:[%s55 + $0x48] sm:$0xff]
    %v3047 = vld [vmem:[%s55 + $0x50] sm:$0xff]
    %v3048 = vld [vmem:[%s55 + $0x58] sm:$0xff]
    %v3049 = vld [vmem:[%s55 + $0x60] sm:$0xff]
    %v3050 = vld [vmem:[%s55 + $0x68] sm:$0xff]
    %v3051 = vld [vmem:[%s55 + $0x70] sm:$0xff]
    %v3052 = vld [vmem:[%s55 + $0x78] sm:$0xff]
    %v3053 = vld [vmem:[%s57] sm:$0x1]
    %v3055 = vlaneseq
    %v3056 = vshrl.u32 %v3055, 7
    %v3057 = vsub.s32 0, %v3056
    %v3058 = vrot.slane %v3053, %v3057
    %3060 = vmatprep.subr.mxu0 0.0
    %3061 = vmatpush1.msra.mxu0 %v3037
    %3062 = vmatprep.subr.mxu0 0.0
    %3063 = vmatpush1.msra.mxu0 %v3038
    %3064 = vmatprep.subr.mxu0 0.0
    %3065 = vmatpush1.msra.mxu0 %v3039
    %3066 = vmatprep.subr.mxu0 0.0
    %3067 = vmatpush1.msra.mxu0 %v3040
    %3068 = vmatprep.subr.mxu0 0.0
    %3069 = vmatpush1.msra.mxu0 %v3041
    %3070 = vmatprep.subr.mxu0 0.0
    %3071 = vmatpush1.msra.mxu0 %v3042
    %3072 = vmatprep.subr.mxu0 0.0
    %3073 = vmatpush1.msra.mxu0 %v3043
    %3074 = vmatprep.subr.mxu0 0.0
    %3075 = vmatpush1.msra.mxu0 %v3044
    %3076 = vmatprep.subr.mxu0 0.0
    %3077 = vmatpush1.msra.mxu0 %v3045
    %3078 = vmatprep.subr.mxu0 0.0
    %3079 = vmatpush1.msra.mxu0 %v3046
    %3080 = vmatprep.subr.mxu0 0.0
    %3081 = vmatpush1.msra.mxu0 %v3047
    %3082 = vmatprep.subr.mxu0 0.0
    %3083 = vmatpush1.msra.mxu0 %v3048
    %3084 = vmatprep.subr.mxu0 0.0
    %3085 = vmatpush1.msra.mxu0 %v3049
    %3086 = vmatprep.subr.mxu0 0.0
    %3087 = vmatpush1.msra.mxu0 %v3050
    %3088 = vmatprep.subr.mxu0 0.0
    %3089 = vmatpush1.msra.mxu0 %v3051
    %3090 = vmatprep.subr.mxu0 0.0
    %3091 = vmatpush1.msra.mxu0 %v3052
    %3092 = vmatprep.subr.mxu0 0.0
    %3093 = vmatpush1.msra.mxu0 0.0
    %3094 = vmatprep.subr.mxu0 0.0
    %3095 = vmatpush1.msra.mxu0 0.0
    %3096 = vmatprep.subr.mxu0 0.0
    %3097 = vmatpush1.msra.mxu0 0.0
    %3098 = vmatprep.subr.mxu0 0.0
    %3099 = vmatpush1.msra.mxu0 0.0
    %3100 = vmatprep.subr.mxu0 0.0
    %3101 = vmatpush1.msra.mxu0 0.0
    %3102 = vmatprep.subr.mxu0 0.0
    %3103 = vmatpush1.msra.mxu0 0.0
    %3104 = vmatprep.subr.mxu0 0.0
    %3105 = vmatpush1.msra.mxu0 0.0
    %3106 = vmatprep.subr.mxu0 0.0
    %3107 = vmatpush1.msra.mxu0 0.0
    %3108 = vmatprep.subr.mxu0 0.0
    %3109 = vmatpush1.msra.mxu0 0.0
    %3110 = vmatprep.subr.mxu0 0.0
    %3111 = vmatpush1.msra.mxu0 0.0
    %3112 = vmatprep.subr.mxu0 0.0
    %3113 = vmatpush1.msra.mxu0 0.0
    %3114 = vmatprep.subr.mxu0 0.0
    %3115 = vmatpush1.msra.mxu0 0.0
    %3116 = vmatprep.subr.mxu0 0.0
    %3117 = vmatpush1.msra.mxu0 0.0
    %3118 = vmatprep.subr.mxu0 0.0
    %3119 = vmatpush1.msra.mxu0 0.0
    %3120 = vmatprep.subr.mxu0 0.0
    %3121 = vmatpush1.msra.mxu0 0.0
    %3122 = vmatprep.subr.mxu0 0.0
    %3123 = vmatpush1.msra.mxu0 0.0
    %3124 = vmatprep.mubr.f32.mxu0 0.0
    %3125 = vmatmul.mubr.f32.gmra.mrb[0].mxu0 %v3036
    %v3126 = vpop.f32.mrb[0].mxu0
    %v3127 = vadd.f32 %v3058, %v3126
    %v3128 = vpop.f32.mrb[0].mxu0
    %3129 = vdwg.mxu0
    %3130 = vst [vmem:[#allocation3] sm:$0x3] %v3127
    // Predicated region
    $region118: #{egnn_forward.1} parent=1 // pred_check
      _
    $region119: #{egnn_forward.1} parent=1 // pred_check_branch
      %3132 = sbr.rel (0) target = $region121
    $region120: #{egnn_forward.1} parent=1 // pred_region
      %s3134 = ssub.s32 32, 32
      %3135 = vsyncadd [#allocation4], %s3134
      %s3137 = sshll.u32 [#allocation3], 4
      %s3138 = int_to_ptr.vmem [resolvable:$true] %s3137
      %3140 = dma.vmem_to_hbm [thread:$0]  %s3138, 32, %s59, [#allocation4]
    $region121: #{egnn_forward.1} parent=1 // pred_fallthru
      _
    // Predicated region
    $region122: #{egnn_forward.1} parent=1 // pred_check
      _
    $region123: #{egnn_forward.1} parent=1 // pred_check_branch
      %3142 = sbr.rel (0) target = $region125
    $region124: #{egnn_forward.1} parent=1 // pred_region
      %3143 = dma.done [#allocation4], 32
    $region125: #{egnn_forward.1} parent=1 // pred_fallthru
      _
    %3144 = vsyncpa [#allocation4], 1

</llo_original>
